<compile_context>
chip_gen: v7x
topology: tpu7x:2x2x1
jax: 0.10.0
libtpu: 0.0.40
codegen_flags: <defaults>
</compile_context>

<pallas_src>
import functools

import jax
import jax.numpy as jnp
from jax.experimental import pallas as pl
from jax.experimental.pallas import tpu as pltpu


# =============================================================================
# Kernel 1: fused 3x3 conv + bias + ReLU (+ optional 2x2/2 maxpool), NHWC
# =============================================================================

def _conv3x3_kernel(x_ref, w_ref, b_ref, o_ref, xp_ref, *, th, pool):
    # x_ref : (1, H, W, Cin)     bf16  full image of sample n (resident across row tiles)
    # w_ref : (3, 3*Cin, Cout)   bf16  per-dy weight, dx taps concatenated along K
    # b_ref : (1, Cout)          f32
    # o_ref : (1, th_out, Wo, Cout) bf16
    # xp_ref: (H+2, W+2, Cin)    bf16  VMEM scratch: zero-padded copy of the image
    r = pl.program_id(1)
    H, W, Cin = x_ref.shape[1], x_ref.shape[2], x_ref.shape[3]
    Cout = o_ref.shape[3]

    # Build the zero-padded image in VMEM once per sample.  The row-tile axis is
    # marked "arbitrary", so all r-steps of one sample run on the same core and
    # see this scratch.  Replaces the wrapper-side jnp.pad HBM round trip.
    @pl.when(r == 0)
    def _():
        xp_ref[...] = jnp.zeros_like(xp_ref)
        xp_ref[pl.ds(1, H), pl.ds(1, W), :] = x_ref[0]

    row0 = pl.multiple_of(r * th, th)
    acc = jnp.zeros((th * W, Cout), jnp.float32)
    # dx taps merged along the contraction: 3 matmuls with K = 3*Cin instead of
    # 9 matmuls with K = Cin (fills the MXU contraction depth much better).
    for dy in range(3):
        rows = xp_ref[pl.ds(row0 + dy, th), :, :]          # (th, W+2, Cin)
        lhs = jnp.concatenate(
            [rows[:, 0:W, :], rows[:, 1:1 + W, :], rows[:, 2:2 + W, :]],
            axis=-1).reshape(th * W, 3 * Cin)
        acc += jnp.dot(lhs, w_ref[dy], preferred_element_type=jnp.float32)
    acc = jnp.maximum(acc + b_ref[...], 0.0)

    if pool:
        y = acc.reshape(th // 2, 2, W, Cout)
        y = jnp.max(y, axis=1)                              # (th//2, W, Cout)
        y = y.reshape(th // 2, W // 2, 2, Cout)
        y = jnp.max(y, axis=2)                              # (th//2, W//2, Cout)
        o_ref[...] = y.reshape(1, th // 2, W // 2, Cout).astype(o_ref.dtype)
    else:
        # TODO(synk): for Cout=64 layers the 64-wide last dim means masked stores;
        # packing two W columns per 128-lane row would make the store lane-dense
        # at the price of an unpack relayout in the consumer.
        o_ref[...] = acc.reshape(1, th, W, Cout).astype(o_ref.dtype)


def conv3x3_relu(x, w, b, *, pool):
    """x: (N,H,W,Cin) bf16, w: (3, 3*Cin, Cout) bf16, b: (Cout,) f32."""
    N, H, W, Cin = x.shape
    Cout = w.shape[-1]
    th = min(H, 8)                       # <= 8 output rows per step: small f32 acc
    assert H % th == 0
    if pool:
        assert th % 2 == 0 and W % 2 == 0
    th_out = th // 2 if pool else th
    Ho, Wo = (H // 2, W // 2) if pool else (H, W)

    b2 = b.reshape(1, Cout).astype(jnp.float32)
    kernel = functools.partial(_conv3x3_kernel, th=th, pool=pool)
    return pl.pallas_call(
        kernel,
        out_shape=jax.ShapeDtypeStruct((N, Ho, Wo, Cout), jnp.bfloat16),
        grid_spec=pltpu.PrefetchScalarGridSpec(
            num_scalar_prefetch=0,
            grid=(N, H // th),
            in_specs=[
                # full (unpadded) image: same block for every row tile -> one DMA per n
                pl.BlockSpec((1, H, W, Cin), lambda n, r: (n, 0, 0, 0)),
                pl.BlockSpec((3, 3 * Cin, Cout), lambda n, r: (0, 0, 0)),
                pl.BlockSpec((1, Cout), lambda n, r: (0, 0)),
            ],
            out_specs=pl.BlockSpec((1, th_out, Wo, Cout), lambda n, r: (n, r, 0, 0)),
            scratch_shapes=[pltpu.VMEM((H + 2, W + 2, Cin), jnp.bfloat16)],
        ),
        compiler_params=pltpu.CompilerParams(
            dimension_semantics=("parallel", "arbitrary"),   # N gives >=2 blocks for v7x's 2 TCs
            vmem_limit_bytes=32 * 1024 * 1024),
    )(x, w, b2)


# =============================================================================
# Kernel 2: quantized linear (int8 weight, per-out-channel scale) + bias [+ ReLU]
#   (used for conv1_1-as-im2col-matmul and for FC2)
# =============================================================================

def _linear_q_kernel(x_ref, w_ref, s_ref, b_ref, o_ref, acc_ref, *, apply_relu):
    k = pl.program_id(1)

    @pl.when(k == 0)
    def _():
        acc_ref[...] = jnp.zeros_like(acc_ref)

    # int8 weight tile dequantized by cast (scale folded in at the epilogue);
    # halves the weight HBM stream and works on all TPU generations.
    acc_ref[...] += jnp.dot(x_ref[...], w_ref[...].astype(jnp.bfloat16),
                            preferred_element_type=jnp.float32)

    @pl.when(k == pl.num_programs(1) - 1)
    def _():
        res = acc_ref[...] * s_ref[...] + b_ref[...]
        if apply_relu:
            res = jnp.maximum(res, 0.0)
        o_ref[...] = res.astype(o_ref.dtype)


def linear_q(x, w_i8, scale, b, *, relu, tn, tk, out_dtype=jnp.float32):
    """x: (M,K) bf16, w_i8: (K,N) int8, scale/b: (N,) f32."""
    M, K = x.shape
    N = w_i8.shape[1]
    assert K % tk == 0 and N % tn == 0
    s2 = scale.reshape(1, N).astype(jnp.float32)
    b2 = b.reshape(1, N).astype(jnp.float32)
    kernel = functools.partial(_linear_q_kernel, apply_relu=relu)
    return pl.pallas_call(
        kernel,
        out_shape=jax.ShapeDtypeStruct((M, N), out_dtype),
        grid_spec=pltpu.PrefetchScalarGridSpec(
            num_scalar_prefetch=0,
            grid=(N // tn, K // tk),
            in_specs=[
                pl.BlockSpec((M, tk), lambda j, k: (0, k)),
                pl.BlockSpec((tk, tn), lambda j, k: (k, j)),
                pl.BlockSpec((1, tn), lambda j, k: (0, j)),
                pl.BlockSpec((1, tn), lambda j, k: (0, j)),
            ],
            out_specs=pl.BlockSpec((M, tn), lambda j, k: (0, j)),
            scratch_shapes=[pltpu.VMEM((M, tn), jnp.float32)],
        ),
        compiler_params=pltpu.CompilerParams(
            dimension_semantics=("parallel", "arbitrary"),
            # weight tiles kept <= ~2 MiB int8 so buffers + dequant temp stay
            # well under v7x's 64 MiB VMEM
            vmem_limit_bytes=32 * 1024 * 1024),
    )(x, w_i8, s2, b2)


# =============================================================================
# Kernel 3: fused "tail": conv4_2, conv4_3, pool, conv5_1..conv5_3, pool,
#           adaptive-avgpool fold, FC1 + ReLU — one pallas_call.
#   Spatial is 4x4 / 2x2 / 1x1 here, so per-layer launches would be pure
#   overhead; all activations live in registers, only weights are streamed.
# =============================================================================

def _tail_kernel(x_ref, wc_ref, sc_ref, bc_ref, w1_ref, s1_ref, b1_ref, o_ref):
    # x_ref : (N, 4, 4, 512) bf16
    # wc_ref: (5, 3, 1536, 512) int8   conv4_2, conv4_3, conv5_1, conv5_2, conv5_3
    # sc_ref/bc_ref: (5, 512) f32      per-out-channel dequant scale / bias
    # w1_ref: (512, 4096) int8         FC1 weight with the 7x7 avgpool fold applied
    # s1_ref/b1_ref: (1, 4096) f32
    # o_ref : (N, 4096) bf16

    def conv(x, li):
        n, h, w, c = x.shape
        zw = jnp.zeros((n, h, 1, c), x.dtype)
        xp = jnp.concatenate([zw, x, zw], axis=2)           # pad W
        zh = jnp.zeros((n, 1, w + 2, c), x.dtype)
        xp = jnp.concatenate([zh, xp, zh], axis=1)          # pad H
        acc = jnp.zeros((n * h * w, 512), jnp.float32)
        for dy in range(3):                                  # 3 matmuls, K = 3*C
            rows = xp[:, dy:dy + h, :, :]
            lhs = jnp.concatenate(
                [rows[:, :, 0:w, :], rows[:, :, 1:1 + w, :], rows[:, :, 2:2 + w, :]],
                axis=-1).reshape(n * h * w, 3 * c)
            acc += jnp.dot(lhs, wc_ref[li, dy].astype(jnp.bfloat16),
                           preferred_element_type=jnp.float32)
        acc = acc * sc_ref[li].reshape(1, 512) + bc_ref[li].reshape(1, 512)
        acc = jnp.maximum(acc, 0.0)
        return acc.reshape(n, h, w, 512).astype(jnp.bfloat16)

    def pool2(x):                                            # 2x2 stride-2 maxpool
        n, h, w, c = x.shape
        x = x.reshape(n * (h // 2), 2, w, c)
        x = jnp.max(x, axis=1)
        x = x.reshape(n * (h // 2), w // 2, 2, c)
        x = jnp.max(x, axis=2)
        return x.reshape(n, h // 2, w // 2, c)

    x = x_ref[...]                       # (N, 4, 4, 512)
    x = conv(x, 0)                       # conv4_2
    x = conv(x, 1)                       # conv4_3
    x = pool2(x)                         # -> (N, 2, 2, 512)
    x = conv(x, 2)                       # conv5_1
    x = conv(x, 3)                       # conv5_2
    x = conv(x, 4)                       # conv5_3
    x = pool2(x)                         # -> (N, 1, 1, 512)
    feat = x.reshape(x.shape[0], 512)    # (N, 512)

    # AdaptiveAvgPool2d((7,7)) of a 1x1 map is an exact broadcast; its 49-way
    # contribution is folded into w1 at init, so FC1 runs with K = 512.
    h = jnp.dot(feat, w1_ref[...].astype(jnp.bfloat16),
                preferred_element_type=jnp.float32)
    h = jnp.maximum(h * s1_ref[...] + b1_ref[...], 0.0)
    o_ref[...] = h.astype(o_ref.dtype)


def tail_block(x, wc, sc, bc, w1, s1, b1):
    N = x.shape[0]
    return pl.pallas_call(
        _tail_kernel,
        out_shape=jax.ShapeDtypeStruct((N, 4096), jnp.bfloat16),
        grid_spec=pltpu.PrefetchScalarGridSpec(
            num_scalar_prefetch=0,
            grid=(1,),
            in_specs=[
                pl.BlockSpec(x.shape, lambda i: (0, 0, 0, 0)),
                pl.BlockSpec(wc.shape, lambda i: (0, 0, 0, 0)),
                pl.BlockSpec(sc.shape, lambda i: (0, 0)),
                pl.BlockSpec(bc.shape, lambda i: (0, 0)),
                pl.BlockSpec(w1.shape, lambda i: (0, 0)),
                pl.BlockSpec((1, 4096), lambda i: (0, 0)),
                pl.BlockSpec((1, 4096), lambda i: (0, 0)),
            ],
            out_specs=pl.BlockSpec((N, 4096), lambda i: (0, 0)),
        ),
        compiler_params=pltpu.CompilerParams(
            dimension_semantics=("arbitrary",),
            # int8 weights keep single-step residency at ~13.5 MiB; 48 MiB cap
            # leaves headroom even if buffers get duplicated, and fits v7x.
            vmem_limit_bytes=48 * 1024 * 1024),
    )(x, wc, sc, bc, w1, s1.reshape(1, 4096), b1.reshape(1, 4096))


# =============================================================================
# VGG16 backbone definition (deterministic synthetic parameters)
# =============================================================================

def _quantize_cols(w):
    """Symmetric per-output-column int8 quantization of a (K, N) f32 weight."""
    amax = jnp.max(jnp.abs(w), axis=0)
    s = jnp.maximum(amax, 1e-6) / 127.0
    wq = jnp.clip(jnp.round(w / s), -127.0, 127.0).astype(jnp.int8)
    return wq, s.astype(jnp.float32)


def init_params(key):
    """Kaiming-scaled random parameters matching torchvision VGG16 shapes.

    Conv weights are laid out (dy, dx*Cin, Cout) to match the in-kernel dx-merge.
    Large streamed weights (tail convs, FC1, FC2, conv1_1) are int8 + per-channel
    scale; small resident head conv weights stay bf16; biases are f32."""
    keys = iter(jax.random.split(key, 64))

    def conv_w(cin, cout):
        scale = (2.0 / (9.0 * cin)) ** 0.5
        w = jax.random.normal(next(keys), (3, 3, cin, cout), jnp.float32) * scale
        return w.reshape(3, 3 * cin, cout)          # (dy, dx*cin, cout)

    def bias(cout):
        return jax.random.normal(next(keys), (cout,), jnp.float32) * 0.01

    params = {}

    # conv1_1 (3 -> 64): executed as one im2col matmul with K = 27.
    w = conv_w(3, 64).reshape(27, 64)
    w_i8, s = _quantize_cols(w)
    params['conv1_1'] = (w_i8, s, bias(64))

    # conv1_2 .. conv4_1: generic fused conv(+ReLU[+pool]) kernel, bf16 weights.
    head = [(64, 64, True),     # conv1_2  + pool
            (64, 128, False),   # conv2_1
            (128, 128, True),   # conv2_2  + pool
            (128, 256, False),  # conv3_1
            (256, 256, False),  # conv3_2
            (256, 256, True),   # conv3_3  + pool
            (256, 512, False)]  # conv4_1
    params['convs'] = [(conv_w(cin, cout).astype(jnp.bfloat16), bias(cout), pool)
                       for cin, cout, pool in head]

    # tail convs: conv4_2, conv4_3, conv5_1, conv5_2, conv5_3 (all 512 -> 512), int8.
    wcs, scs, bcs = [], [], []
    for _ in range(5):
        w = conv_w(512, 512)
        wi, s = _quantize_cols(w.reshape(3 * 1536, 512))
        wcs.append(wi.reshape(3, 1536, 512))
        scs.append(s)
        bcs.append(bias(512))
    wc, sc, bc = jnp.stack(wcs), jnp.stack(scs), jnp.stack(bcs)

    # FC1: Linear(25088, 4096).  The 7x7 adaptive-avgpool broadcast (torch NCHW
    # flatten order c*49 + k) is folded in f32: w1_eff[c] = sum_k W1[c*49 + k].
    fin = 512 * 7 * 7
    w1 = jax.random.normal(next(keys), (fin, 4096), jnp.float32) * (2.0 / fin) ** 0.5
    w1 = w1.reshape(512, 49, 4096).sum(axis=1)
    w1_i8, s1 = _quantize_cols(w1)
    params['tail'] = (wc, sc, bc, w1_i8, s1, bias(4096))

    # FC2: Linear(4096, 4096)
    w2 = jax.random.normal(next(keys), (4096, 4096), jnp.float32) * (2.0 / 4096.0) ** 0.5
    w2_i8, s2 = _quantize_cols(w2)
    params['fc2'] = (w2_i8, s2, bias(4096))
    return params


def vgg16_backbone_forward(x_nchw, params):
    """Input: (N, 3, 32, 32) float32 (torch NCHW). Output: (N, 4096) float32."""
    x = jnp.transpose(x_nchw, (0, 2, 3, 1)).astype(jnp.bfloat16)   # NHWC bf16
    N, H, W, _ = x.shape
    assert (H, W) == (32, 32), "specialized to 32x32 inputs (1x1 pre-avgpool map)"
    # TODO(synk): generalize the adaptive-avgpool path for inputs whose final
    # feature map is larger than 1x1 (e.g. 224x224); the 7x7-broadcast fold into
    # FC1 is exact only for the 1x1 case.

    # conv1_1 as a single im2col matmul (K = 27) — avoids the 3-lane-wide conv.
    w, s, b = params['conv1_1']
    xp = jnp.pad(x, ((0, 0), (1, 1), (1, 1), (0, 0)))
    cols = [xp[:, dy:dy + H, dx:dx + W, :] for dy in range(3) for dx in range(3)]
    xc = jnp.concatenate(cols, axis=-1).reshape(N * H * W, 27)
    x = linear_q(xc, w, s, b, relu=True, tn=64, tk=27,
                 out_dtype=jnp.bfloat16).reshape(N, H, W, 64)

    # conv1_2 .. conv4_1: fused conv + bias + ReLU (+ 2x2 maxpool), padding in VMEM.
    for w, b, pool in params['convs']:
        x = conv3x3_relu(x, w, b, pool=pool)                # -> (N, 4, 4, 512)

    # conv4_2 .. conv5_3 + maxpools + avgpool fold + FC1 + ReLU: one fused kernel.
    wc, sc, bc, w1, s1, b1 = params['tail']
    h = tail_block(x, wc, sc, bc, w1, s1, b1)               # (N, 4096) bf16

    # classifier tail: Linear(4096, 4096) + ReLU.
    # TODO(synk): Dropout layers are treated as identity (eval-mode semantics).
    w2, s2, b2 = params['fc2']
    return linear_q(h, w2, s2, b2, relu=True, tn=2048, tk=1024,
                    out_dtype=jnp.float32)                  # (N, 4096) == feature_dim


if __name__ == "__main__":
    key = jax.random.PRNGKey(0)
    kx, kp = jax.random.split(key)
    # small input consistent with the module: batch=2, 3 channels, 32x32 spatial
    x = jax.random.normal(kx, (2, 3, 32, 32), jnp.float32)   # NCHW, like torch
    params = init_params(kp)

    out = vgg16_backbone_forward(x, params)
    out = jax.block_until_ready(out)

    assert out.shape == (2, 4096), out.shape
    assert out.dtype == jnp.float32
    assert bool(jnp.all(jnp.isfinite(out)))
    print("KERNEL_OK")
</pallas_src>

<mosaic_0001>
module attributes {stable_mosaic.version = 11 : i64} {
  func.func @_linear_q_kernel(%arg0: i32, %arg1: i32, %arg2: memref<2048x27xbf16, #tpu.memory_space<vmem>>, %arg3: memref<27x64xi8, #tpu.memory_space<vmem>>, %arg4: memref<1x64xf32, #tpu.memory_space<vmem>>, %arg5: memref<1x64xf32, #tpu.memory_space<vmem>>, %arg6: memref<2048x64xbf16, #tpu.memory_space<vmem>>, %arg7: memref<2048x64xf32, #tpu.memory_space<vmem>>) attributes {dimension_semantics = [#tpu.dimension_semantics<parallel>, #tpu.dimension_semantics<arbitrary>], iteration_bounds = array<i64: 1, 1>, scalar_prefetch = 0 : i64, scratch_operands = 1 : i64, tpu.core_type = #tpu.core_type<tc>, window_params = [{transform_indices = @transform_0, window_bounds = array<i64: 2048, 27>}, {transform_indices = @transform_1, window_bounds = array<i64: 27, 64>}, {transform_indices = @transform_2, window_bounds = array<i64: 1, 64>}, {transform_indices = @transform_3, window_bounds = array<i64: 1, 64>}, {transform_indices = @transform_4, window_bounds = array<i64: 2048, 64>}]} {
    %c0_i32 = arith.constant 0 : i32
    %0 = arith.cmpi eq, %arg1, %c0_i32 : i32
    %1 = arith.extui %0 : i1 to i32
    %c0_i32_0 = arith.constant 0 : i32
    %2 = arith.cmpi ne, %1, %c0_i32_0 : i32
    scf.if %2 {
      %cst_10 = arith.constant 0.000000e+00 : f32
      %13 = vector.broadcast %cst_10 : f32 to vector<2048x64xf32>
      %c0_11 = arith.constant 0 : index
      %c0_12 = arith.constant 0 : index
      %14 = vector.load %arg7[%c0_11, %c0_12] : memref<2048x64xf32, #tpu.memory_space<vmem>>, vector<2048x64xf32>
      tpu.vector_store %arg7[%c0_11, %c0_12], %13 {strides = array<i32>} : memref<2048x64xf32, #tpu.memory_space<vmem>>, vector<2048x64xf32>,
    } else {
    }
    %c0 = arith.constant 0 : index
    %c0_1 = arith.constant 0 : index
    %3 = vector.load %arg7[%c0, %c0_1] : memref<2048x64xf32, #tpu.memory_space<vmem>>, vector<2048x64xf32>
    %c0_2 = arith.constant 0 : index
    %c0_3 = arith.constant 0 : index
    %4 = vector.load %arg2[%c0_2, %c0_3] : memref<2048x27xbf16, #tpu.memory_space<vmem>>, vector<2048x27xbf16>
    %c0_4 = arith.constant 0 : index
    %c0_5 = arith.constant 0 : index
    %5 = vector.load %arg3[%c0_4, %c0_5] : memref<27x64xi8, #tpu.memory_space<vmem>>, vector<27x64xi8>
    %6 = arith.sitofp %5 : vector<27x64xi8> to vector<27x64xbf16>
    %cst = arith.constant dense<0.000000e+00> : vector<2048x64xf32>
    %7 = tpu.matmul %4, %6, %cst {dimension_numbers = #tpu.dot_dimension_numbers<[1], [0], [0], [1], [0, 0, 1, 1], [], []>} : vector<2048x27xbf16>, vector<27x64xbf16>, vector<2048x64xf32> -> vector<2048x64xf32>
    %8 = arith.addf %3, %7 : vector<2048x64xf32>
    %c0_6 = arith.constant 0 : index
    %c0_7 = arith.constant 0 : index
    %9 = vector.load %arg7[%c0_6, %c0_7] : memref<2048x64xf32, #tpu.memory_space<vmem>>, vector<2048x64xf32>
    tpu.vector_store %arg7[%c0_6, %c0_7], %8 {strides = array<i32>} : memref<2048x64xf32, #tpu.memory_space<vmem>>, vector<2048x64xf32>,
    %c0_i32_8 = arith.constant 0 : i32
    %10 = arith.cmpi eq, %arg1, %c0_i32_8 : i32
    %11 = arith.extui %10 : i1 to i32
    %c0_i32_9 = arith.constant 0 : i32
    %12 = arith.cmpi ne, %11, %c0_i32_9 : i32
    scf.if %12 {
      %c0_10 = arith.constant 0 : index
      %c0_11 = arith.constant 0 : index
      %13 = vector.load %arg7[%c0_10, %c0_11] : memref<2048x64xf32, #tpu.memory_space<vmem>>, vector<2048x64xf32>
      %c0_12 = arith.constant 0 : index
      %c0_13 = arith.constant 0 : index
      %14 = vector.load %arg4[%c0_12, %c0_13] : memref<1x64xf32, #tpu.memory_space<vmem>>, vector<1x64xf32>
      %15 = vector.broadcast %14 : vector<1x64xf32> to vector<2048x64xf32>
      %16 = arith.mulf %13, %15 : vector<2048x64xf32>
      %c0_14 = arith.constant 0 : index
      %c0_15 = arith.constant 0 : index
      %17 = vector.load %arg5[%c0_14, %c0_15] : memref<1x64xf32, #tpu.memory_space<vmem>>, vector<1x64xf32>
      %18 = vector.broadcast %17 : vector<1x64xf32> to vector<2048x64xf32>
      %19 = arith.addf %16, %18 : vector<2048x64xf32>
      %cst_16 = arith.constant 0.000000e+00 : f32
      %20 = vector.broadcast %cst_16 : f32 to vector<2048x64xf32>
      %21 = arith.maximumf %19, %20 : vector<2048x64xf32>
      %22 = arith.truncf %21 : vector<2048x64xf32> to vector<2048x64xbf16>
      %c0_17 = arith.constant 0 : index
      %c0_18 = arith.constant 0 : index
      %23 = vector.load %arg6[%c0_17, %c0_18] : memref<2048x64xbf16, #tpu.memory_space<vmem>>, vector<2048x64xbf16>
      tpu.vector_store %arg6[%c0_17, %c0_18], %22 {strides = array<i32>} : memref<2048x64xbf16, #tpu.memory_space<vmem>>, vector<2048x64xbf16>,
    } else {
    }
    return
  }
  func.func @transform_0(%arg0: i32, %arg1: i32) -> (i32, i32) {
    %c0_i32 = arith.constant 0 : i32
    %c0_i32_0 = arith.constant 0 : i32
    return %c0_i32, %arg1 : i32, i32
  }
  func.func @transform_1(%arg0: i32, %arg1: i32) -> (i32, i32) {
    %c0_i32 = arith.constant 0 : i32
    return %arg1, %arg0 : i32, i32
  }
  func.func @transform_2(%arg0: i32, %arg1: i32) -> (i32, i32) {
    %c0_i32 = arith.constant 0 : i32
    %c0_i32_0 = arith.constant 0 : i32
    return %c0_i32, %arg0 : i32, i32
  }
  func.func @transform_3(%arg0: i32, %arg1: i32) -> (i32, i32) {
    %c0_i32 = arith.constant 0 : i32
    %c0_i32_0 = arith.constant 0 : i32
    return %c0_i32, %arg0 : i32, i32
  }
  func.func @transform_4(%arg0: i32, %arg1: i32) -> (i32, i32) {
    %c0_i32 = arith.constant 0 : i32
    %c0_i32_0 = arith.constant 0 : i32
    return %c0_i32, %arg0 : i32, i32
  }
}

</mosaic_0001>

<llo_original>
// kernel: tpu_custom_call.1
$region0: #{tpu_custom_call.1}
  #allocation0 [shape = 'u32[]', space=smem, size = 0x4, offset = 0x4, fixed_abs, tag = 'smem constant byte address 0x4 - core index']
  #allocation1 [shape = 'u32[144,128]{1,0:T(1,128)}', space=vmem, size = 0x12000, scoped, tag = 'internal scratch']
  #allocation2 [shape = 'f32[2048,64]{1,0:T(8,128)}', space=vmem, size = 0x100000, scoped, tag = 'scratch operand']
  %s0 = inlined_call_operand.vmem [shape: bf16[2048,27], index: 0, kind: input, shape index: {}]
  %s1 = inlined_call_operand.vmem [shape: s8[27,64], index: 1, kind: input, shape index: {}]
  %s2 = inlined_call_operand.vmem [shape: f32[1,64], index: 2, kind: input, shape index: {}]
  %s3 = inlined_call_operand.vmem [shape: f32[1,64], index: 3, kind: input, shape index: {}]
  %s4 = inlined_call_operand.vmem [shape: bf16[2048,64], index: 4, kind: output, shape index: {}]
  %s5 = sld [smem:[#allocation0]]
  $region34: #{tpu_custom_call.1} parent=0
    _
  %s7 = ssub.s32 1, %s5
  %s8 = scalar_select 0, %s7, %s5
  // Predicated region
  $region2: #{tpu_custom_call.1} parent=0 // pred_check
    _
  $region3: #{tpu_custom_call.1} parent=0 // pred_check_branch
    %10 = sbr.rel (0) target = $region5
  $region4: #{tpu_custom_call.1} parent=0 // pred_region
    _
  $region5: #{tpu_custom_call.1} parent=0 // pred_fallthru
    _
  // Predicated region
  $region6: #{tpu_custom_call.1} parent=0 // pred_check
    _
  $region7: #{tpu_custom_call.1} parent=0 // pred_check_branch
    %12 = sbr.rel (0) target = $region9
  $region8: #{tpu_custom_call.1} parent=0 // pred_region
    _
  $region9: #{tpu_custom_call.1} parent=0 // pred_fallthru
    _
  // Predicated region
  $region10: #{tpu_custom_call.1} parent=0 // pred_check
    _
  $region11: #{tpu_custom_call.1} parent=0 // pred_check_branch
    %14 = sbr.rel (0) target = $region13
  $region12: #{tpu_custom_call.1} parent=0 // pred_region
    _
  $region13: #{tpu_custom_call.1} parent=0 // pred_fallthru
    _
  // Predicated region
  $region14: #{tpu_custom_call.1} parent=0 // pred_check
    _
  $region15: #{tpu_custom_call.1} parent=0 // pred_check_branch
    %16 = sbr.rel (0) target = $region17
  $region16: #{tpu_custom_call.1} parent=0 // pred_region
    _
  $region17: #{tpu_custom_call.1} parent=0 // pred_fallthru
    _
  %p18 = scmp.eq.s32.totalorder 0, 0
  // Predicated region
  $region18: #{tpu_custom_call.1} parent=0 // pred_check
    %p19 = pneg %p18
  $region19: #{tpu_custom_call.1} parent=0 // pred_check_branch
    %21 = sbr.rel (%p19) target = $region21
  $region20: #{tpu_custom_call.1} parent=0 // pred_region
    %vm22 = vcmask 523264
    %23 = vst.msk [vmem:[#allocation2] sm:$0xff] %vm22, 0.0
    %24 = vst.msk [vmem:[#allocation2 + $0x8] sm:$0xff] %vm22, 0.0
    %25 = vst.msk [vmem:[#allocation2 + $0x10] sm:$0xff] %vm22, 0.0
    %26 = vst.msk [vmem:[#allocation2 + $0x18] sm:$0xff] %vm22, 0.0
    %27 = vst.msk [vmem:[#allocation2 + $0x20] sm:$0xff] %vm22, 0.0
    %28 = vst.msk [vmem:[#allocation2 + $0x28] sm:$0xff] %vm22, 0.0
    %29 = vst.msk [vmem:[#allocation2 + $0x30] sm:$0xff] %vm22, 0.0
    %30 = vst.msk [vmem:[#allocation2 + $0x38] sm:$0xff] %vm22, 0.0
    %31 = vst.msk [vmem:[#allocation2 + $0x40] sm:$0xff] %vm22, 0.0
    %32 = vst.msk [vmem:[#allocation2 + $0x48] sm:$0xff] %vm22, 0.0
    %33 = vst.msk [vmem:[#allocation2 + $0x50] sm:$0xff] %vm22, 0.0
    %34 = vst.msk [vmem:[#allocation2 + $0x58] sm:$0xff] %vm22, 0.0
    %35 = vst.msk [vmem:[#allocation2 + $0x60] sm:$0xff] %vm22, 0.0
    %36 = vst.msk [vmem:[#allocation2 + $0x68] sm:$0xff] %vm22, 0.0
    %37 = vst.msk [vmem:[#allocation2 + $0x70] sm:$0xff] %vm22, 0.0
    %38 = vst.msk [vmem:[#allocation2 + $0x78] sm:$0xff] %vm22, 0.0
    %39 = vst.msk [vmem:[#allocation2 + $0x80] sm:$0xff] %vm22, 0.0
    %40 = vst.msk [vmem:[#allocation2 + $0x88] sm:$0xff] %vm22, 0.0
    %41 = vst.msk [vmem:[#allocation2 + $0x90] sm:$0xff] %vm22, 0.0
    %42 = vst.msk [vmem:[#allocation2 + $0x98] sm:$0xff] %vm22, 0.0
    %43 = vst.msk [vmem:[#allocation2 + $0xa0] sm:$0xff] %vm22, 0.0
    %44 = vst.msk [vmem:[#allocation2 + $0xa8] sm:$0xff] %vm22, 0.0
    %45 = vst.msk [vmem:[#allocation2 + $0xb0] sm:$0xff] %vm22, 0.0
    %46 = vst.msk [vmem:[#allocation2 + $0xb8] sm:$0xff] %vm22, 0.0
    %47 = vst.msk [vmem:[#allocation2 + $0xc0] sm:$0xff] %vm22, 0.0
    %48 = vst.msk [vmem:[#allocation2 + $0xc8] sm:$0xff] %vm22, 0.0
    %49 = vst.msk [vmem:[#allocation2 + $0xd0] sm:$0xff] %vm22, 0.0
    %50 = vst.msk [vmem:[#allocation2 + $0xd8] sm:$0xff] %vm22, 0.0
    %51 = vst.msk [vmem:[#allocation2 + $0xe0] sm:$0xff] %vm22, 0.0
    %52 = vst.msk [vmem:[#allocation2 + $0xe8] sm:$0xff] %vm22, 0.0
    %53 = vst.msk [vmem:[#allocation2 + $0xf0] sm:$0xff] %vm22, 0.0
    %54 = vst.msk [vmem:[#allocation2 + $0xf8] sm:$0xff] %vm22, 0.0
    %55 = vst.msk [vmem:[#allocation2 + $0x100] sm:$0xff] %vm22, 0.0
    %56 = vst.msk [vmem:[#allocation2 + $0x108] sm:$0xff] %vm22, 0.0
    %57 = vst.msk [vmem:[#allocation2 + $0x110] sm:$0xff] %vm22, 0.0
    %58 = vst.msk [vmem:[#allocation2 + $0x118] sm:$0xff] %vm22, 0.0
    %59 = vst.msk [vmem:[#allocation2 + $0x120] sm:$0xff] %vm22, 0.0
    %60 = vst.msk [vmem:[#allocation2 + $0x128] sm:$0xff] %vm22, 0.0
    %61 = vst.msk [vmem:[#allocation2 + $0x130] sm:$0xff] %vm22, 0.0
    %62 = vst.msk [vmem:[#allocation2 + $0x138] sm:$0xff] %vm22, 0.0
    %63 = vst.msk [vmem:[#allocation2 + $0x140] sm:$0xff] %vm22, 0.0
    %64 = vst.msk [vmem:[#allocation2 + $0x148] sm:$0xff] %vm22, 0.0
    %65 = vst.msk [vmem:[#allocation2 + $0x150] sm:$0xff] %vm22, 0.0
    %66 = vst.msk [vmem:[#allocation2 + $0x158] sm:$0xff] %vm22, 0.0
    %67 = vst.msk [vmem:[#allocation2 + $0x160] sm:$0xff] %vm22, 0.0
    %68 = vst.msk [vmem:[#allocation2 + $0x168] sm:$0xff] %vm22, 0.0
    %69 = vst.msk [vmem:[#allocation2 + $0x170] sm:$0xff] %vm22, 0.0
    %70 = vst.msk [vmem:[#allocation2 + $0x178] sm:$0xff] %vm22, 0.0
    %71 = vst.msk [vmem:[#allocation2 + $0x180] sm:$0xff] %vm22, 0.0
    %72 = vst.msk [vmem:[#allocation2 + $0x188] sm:$0xff] %vm22, 0.0
    %73 = vst.msk [vmem:[#allocation2 + $0x190] sm:$0xff] %vm22, 0.0
    %74 = vst.msk [vmem:[#allocation2 + $0x198] sm:$0xff] %vm22, 0.0
    %75 = vst.msk [vmem:[#allocation2 + $0x1a0] sm:$0xff] %vm22, 0.0
    %76 = vst.msk [vmem:[#allocation2 + $0x1a8] sm:$0xff] %vm22, 0.0
    %77 = vst.msk [vmem:[#allocation2 + $0x1b0] sm:$0xff] %vm22, 0.0
    %78 = vst.msk [vmem:[#allocation2 + $0x1b8] sm:$0xff] %vm22, 0.0
    %79 = vst.msk [vmem:[#allocation2 + $0x1c0] sm:$0xff] %vm22, 0.0
    %80 = vst.msk [vmem:[#allocation2 + $0x1c8] sm:$0xff] %vm22, 0.0
    %81 = vst.msk [vmem:[#allocation2 + $0x1d0] sm:$0xff] %vm22, 0.0
    %82 = vst.msk [vmem:[#allocation2 + $0x1d8] sm:$0xff] %vm22, 0.0
    %83 = vst.msk [vmem:[#allocation2 + $0x1e0] sm:$0xff] %vm22, 0.0
    %84 = vst.msk [vmem:[#allocation2 + $0x1e8] sm:$0xff] %vm22, 0.0
    %85 = vst.msk [vmem:[#allocation2 + $0x1f0] sm:$0xff] %vm22, 0.0
    %86 = vst.msk [vmem:[#allocation2 + $0x1f8] sm:$0xff] %vm22, 0.0
    %87 = vst.msk [vmem:[#allocation2 + $0x200] sm:$0xff] %vm22, 0.0
    %88 = vst.msk [vmem:[#allocation2 + $0x208] sm:$0xff] %vm22, 0.0
    %89 = vst.msk [vmem:[#allocation2 + $0x210] sm:$0xff] %vm22, 0.0
    %90 = vst.msk [vmem:[#allocation2 + $0x218] sm:$0xff] %vm22, 0.0
    %91 = vst.msk [vmem:[#allocation2 + $0x220] sm:$0xff] %vm22, 0.0
    %92 = vst.msk [vmem:[#allocation2 + $0x228] sm:$0xff] %vm22, 0.0
    %93 = vst.msk [vmem:[#allocation2 + $0x230] sm:$0xff] %vm22, 0.0
    %94 = vst.msk [vmem:[#allocation2 + $0x238] sm:$0xff] %vm22, 0.0
    %95 = vst.msk [vmem:[#allocation2 + $0x240] sm:$0xff] %vm22, 0.0
    %96 = vst.msk [vmem:[#allocation2 + $0x248] sm:$0xff] %vm22, 0.0
    %97 = vst.msk [vmem:[#allocation2 + $0x250] sm:$0xff] %vm22, 0.0
    %98 = vst.msk [vmem:[#allocation2 + $0x258] sm:$0xff] %vm22, 0.0
    %99 = vst.msk [vmem:[#allocation2 + $0x260] sm:$0xff] %vm22, 0.0
    %100 = vst.msk [vmem:[#allocation2 + $0x268] sm:$0xff] %vm22, 0.0
    %101 = vst.msk [vmem:[#allocation2 + $0x270] sm:$0xff] %vm22, 0.0
    %102 = vst.msk [vmem:[#allocation2 + $0x278] sm:$0xff] %vm22, 0.0
    %103 = vst.msk [vmem:[#allocation2 + $0x280] sm:$0xff] %vm22, 0.0
    %104 = vst.msk [vmem:[#allocation2 + $0x288] sm:$0xff] %vm22, 0.0
    %105 = vst.msk [vmem:[#allocation2 + $0x290] sm:$0xff] %vm22, 0.0
    %106 = vst.msk [vmem:[#allocation2 + $0x298] sm:$0xff] %vm22, 0.0
    %107 = vst.msk [vmem:[#allocation2 + $0x2a0] sm:$0xff] %vm22, 0.0
    %108 = vst.msk [vmem:[#allocation2 + $0x2a8] sm:$0xff] %vm22, 0.0
    %109 = vst.msk [vmem:[#allocation2 + $0x2b0] sm:$0xff] %vm22, 0.0
    %110 = vst.msk [vmem:[#allocation2 + $0x2b8] sm:$0xff] %vm22, 0.0
    %111 = vst.msk [vmem:[#allocation2 + $0x2c0] sm:$0xff] %vm22, 0.0
    %112 = vst.msk [vmem:[#allocation2 + $0x2c8] sm:$0xff] %vm22, 0.0
    %113 = vst.msk [vmem:[#allocation2 + $0x2d0] sm:$0xff] %vm22, 0.0
    %114 = vst.msk [vmem:[#allocation2 + $0x2d8] sm:$0xff] %vm22, 0.0
    %115 = vst.msk [vmem:[#allocation2 + $0x2e0] sm:$0xff] %vm22, 0.0
    %116 = vst.msk [vmem:[#allocation2 + $0x2e8] sm:$0xff] %vm22, 0.0
    %117 = vst.msk [vmem:[#allocation2 + $0x2f0] sm:$0xff] %vm22, 0.0
    %118 = vst.msk [vmem:[#allocation2 + $0x2f8] sm:$0xff] %vm22, 0.0
    %119 = vst.msk [vmem:[#allocation2 + $0x300] sm:$0xff] %vm22, 0.0
    %120 = vst.msk [vmem:[#allocation2 + $0x308] sm:$0xff] %vm22, 0.0
    %121 = vst.msk [vmem:[#allocation2 + $0x310] sm:$0xff] %vm22, 0.0
    %122 = vst.msk [vmem:[#allocation2 + $0x318] sm:$0xff] %vm22, 0.0
    %123 = vst.msk [vmem:[#allocation2 + $0x320] sm:$0xff] %vm22, 0.0
    %124 = vst.msk [vmem:[#allocation2 + $0x328] sm:$0xff] %vm22, 0.0
    %125 = vst.msk [vmem:[#allocation2 + $0x330] sm:$0xff] %vm22, 0.0
    %126 = vst.msk [vmem:[#allocation2 + $0x338] sm:$0xff] %vm22, 0.0
    %127 = vst.msk [vmem:[#allocation2 + $0x340] sm:$0xff] %vm22, 0.0
    %128 = vst.msk [vmem:[#allocation2 + $0x348] sm:$0xff] %vm22, 0.0
    %129 = vst.msk [vmem:[#allocation2 + $0x350] sm:$0xff] %vm22, 0.0
    %130 = vst.msk [vmem:[#allocation2 + $0x358] sm:$0xff] %vm22, 0.0
    %131 = vst.msk [vmem:[#allocation2 + $0x360] sm:$0xff] %vm22, 0.0
    %132 = vst.msk [vmem:[#allocation2 + $0x368] sm:$0xff] %vm22, 0.0
    %133 = vst.msk [vmem:[#allocation2 + $0x370] sm:$0xff] %vm22, 0.0
    %134 = vst.msk [vmem:[#allocation2 + $0x378] sm:$0xff] %vm22, 0.0
    %135 = vst.msk [vmem:[#allocation2 + $0x380] sm:$0xff] %vm22, 0.0
    %136 = vst.msk [vmem:[#allocation2 + $0x388] sm:$0xff] %vm22, 0.0
    %137 = vst.msk [vmem:[#allocation2 + $0x390] sm:$0xff] %vm22, 0.0
    %138 = vst.msk [vmem:[#allocation2 + $0x398] sm:$0xff] %vm22, 0.0
    %139 = vst.msk [vmem:[#allocation2 + $0x3a0] sm:$0xff] %vm22, 0.0
    %140 = vst.msk [vmem:[#allocation2 + $0x3a8] sm:$0xff] %vm22, 0.0
    %141 = vst.msk [vmem:[#allocation2 + $0x3b0] sm:$0xff] %vm22, 0.0
    %142 = vst.msk [vmem:[#allocation2 + $0x3b8] sm:$0xff] %vm22, 0.0
    %143 = vst.msk [vmem:[#allocation2 + $0x3c0] sm:$0xff] %vm22, 0.0
    %144 = vst.msk [vmem:[#allocation2 + $0x3c8] sm:$0xff] %vm22, 0.0
    %145 = vst.msk [vmem:[#allocation2 + $0x3d0] sm:$0xff] %vm22, 0.0
    %146 = vst.msk [vmem:[#allocation2 + $0x3d8] sm:$0xff] %vm22, 0.0
    %147 = vst.msk [vmem:[#allocation2 + $0x3e0] sm:$0xff] %vm22, 0.0
    %148 = vst.msk [vmem:[#allocation2 + $0x3e8] sm:$0xff] %vm22, 0.0
    %149 = vst.msk [vmem:[#allocation2 + $0x3f0] sm:$0xff] %vm22, 0.0
    %150 = vst.msk [vmem:[#allocation2 + $0x3f8] sm:$0xff] %vm22, 0.0
    %151 = vst.msk [vmem:[#allocation2 + $0x400] sm:$0xff] %vm22, 0.0
    %152 = vst.msk [vmem:[#allocation2 + $0x408] sm:$0xff] %vm22, 0.0
    %153 = vst.msk [vmem:[#allocation2 + $0x410] sm:$0xff] %vm22, 0.0
    %154 = vst.msk [vmem:[#allocation2 + $0x418] sm:$0xff] %vm22, 0.0
    %155 = vst.msk [vmem:[#allocation2 + $0x420] sm:$0xff] %vm22, 0.0
    %156 = vst.msk [vmem:[#allocation2 + $0x428] sm:$0xff] %vm22, 0.0
    %157 = vst.msk [vmem:[#allocation2 + $0x430] sm:$0xff] %vm22, 0.0
    %158 = vst.msk [vmem:[#allocation2 + $0x438] sm:$0xff] %vm22, 0.0
    %159 = vst.msk [vmem:[#allocation2 + $0x440] sm:$0xff] %vm22, 0.0
    %160 = vst.msk [vmem:[#allocation2 + $0x448] sm:$0xff] %vm22, 0.0
    %161 = vst.msk [vmem:[#allocation2 + $0x450] sm:$0xff] %vm22, 0.0
    %162 = vst.msk [vmem:[#allocation2 + $0x458] sm:$0xff] %vm22, 0.0
    %163 = vst.msk [vmem:[#allocation2 + $0x460] sm:$0xff] %vm22, 0.0
    %164 = vst.msk [vmem:[#allocation2 + $0x468] sm:$0xff] %vm22, 0.0
    %165 = vst.msk [vmem:[#allocation2 + $0x470] sm:$0xff] %vm22, 0.0
    %166 = vst.msk [vmem:[#allocation2 + $0x478] sm:$0xff] %vm22, 0.0
    %167 = vst.msk [vmem:[#allocation2 + $0x480] sm:$0xff] %vm22, 0.0
    %168 = vst.msk [vmem:[#allocation2 + $0x488] sm:$0xff] %vm22, 0.0
    %169 = vst.msk [vmem:[#allocation2 + $0x490] sm:$0xff] %vm22, 0.0
    %170 = vst.msk [vmem:[#allocation2 + $0x498] sm:$0xff] %vm22, 0.0
    %171 = vst.msk [vmem:[#allocation2 + $0x4a0] sm:$0xff] %vm22, 0.0
    %172 = vst.msk [vmem:[#allocation2 + $0x4a8] sm:$0xff] %vm22, 0.0
    %173 = vst.msk [vmem:[#allocation2 + $0x4b0] sm:$0xff] %vm22, 0.0
    %174 = vst.msk [vmem:[#allocation2 + $0x4b8] sm:$0xff] %vm22, 0.0
    %175 = vst.msk [vmem:[#allocation2 + $0x4c0] sm:$0xff] %vm22, 0.0
    %176 = vst.msk [vmem:[#allocation2 + $0x4c8] sm:$0xff] %vm22, 0.0
    %177 = vst.msk [vmem:[#allocation2 + $0x4d0] sm:$0xff] %vm22, 0.0
    %178 = vst.msk [vmem:[#allocation2 + $0x4d8] sm:$0xff] %vm22, 0.0
    %179 = vst.msk [vmem:[#allocation2 + $0x4e0] sm:$0xff] %vm22, 0.0
    %180 = vst.msk [vmem:[#allocation2 + $0x4e8] sm:$0xff] %vm22, 0.0
    %181 = vst.msk [vmem:[#allocation2 + $0x4f0] sm:$0xff] %vm22, 0.0
    %182 = vst.msk [vmem:[#allocation2 + $0x4f8] sm:$0xff] %vm22, 0.0
    %183 = vst.msk [vmem:[#allocation2 + $0x500] sm:$0xff] %vm22, 0.0
    %184 = vst.msk [vmem:[#allocation2 + $0x508] sm:$0xff] %vm22, 0.0
    %185 = vst.msk [vmem:[#allocation2 + $0x510] sm:$0xff] %vm22, 0.0
    %186 = vst.msk [vmem:[#allocation2 + $0x518] sm:$0xff] %vm22, 0.0
    %187 = vst.msk [vmem:[#allocation2 + $0x520] sm:$0xff] %vm22, 0.0
    %188 = vst.msk [vmem:[#allocation2 + $0x528] sm:$0xff] %vm22, 0.0
    %189 = vst.msk [vmem:[#allocation2 + $0x530] sm:$0xff] %vm22, 0.0
    %190 = vst.msk [vmem:[#allocation2 + $0x538] sm:$0xff] %vm22, 0.0
    %191 = vst.msk [vmem:[#allocation2 + $0x540] sm:$0xff] %vm22, 0.0
    %192 = vst.msk [vmem:[#allocation2 + $0x548] sm:$0xff] %vm22, 0.0
    %193 = vst.msk [vmem:[#allocation2 + $0x550] sm:$0xff] %vm22, 0.0
    %194 = vst.msk [vmem:[#allocation2 + $0x558] sm:$0xff] %vm22, 0.0
    %195 = vst.msk [vmem:[#allocation2 + $0x560] sm:$0xff] %vm22, 0.0
    %196 = vst.msk [vmem:[#allocation2 + $0x568] sm:$0xff] %vm22, 0.0
    %197 = vst.msk [vmem:[#allocation2 + $0x570] sm:$0xff] %vm22, 0.0
    %198 = vst.msk [vmem:[#allocation2 + $0x578] sm:$0xff] %vm22, 0.0
    %199 = vst.msk [vmem:[#allocation2 + $0x580] sm:$0xff] %vm22, 0.0
    %200 = vst.msk [vmem:[#allocation2 + $0x588] sm:$0xff] %vm22, 0.0
    %201 = vst.msk [vmem:[#allocation2 + $0x590] sm:$0xff] %vm22, 0.0
    %202 = vst.msk [vmem:[#allocation2 + $0x598] sm:$0xff] %vm22, 0.0
    %203 = vst.msk [vmem:[#allocation2 + $0x5a0] sm:$0xff] %vm22, 0.0
    %204 = vst.msk [vmem:[#allocation2 + $0x5a8] sm:$0xff] %vm22, 0.0
    %205 = vst.msk [vmem:[#allocation2 + $0x5b0] sm:$0xff] %vm22, 0.0
    %206 = vst.msk [vmem:[#allocation2 + $0x5b8] sm:$0xff] %vm22, 0.0
    %207 = vst.msk [vmem:[#allocation2 + $0x5c0] sm:$0xff] %vm22, 0.0
    %208 = vst.msk [vmem:[#allocation2 + $0x5c8] sm:$0xff] %vm22, 0.0
    %209 = vst.msk [vmem:[#allocation2 + $0x5d0] sm:$0xff] %vm22, 0.0
    %210 = vst.msk [vmem:[#allocation2 + $0x5d8] sm:$0xff] %vm22, 0.0
    %211 = vst.msk [vmem:[#allocation2 + $0x5e0] sm:$0xff] %vm22, 0.0
    %212 = vst.msk [vmem:[#allocation2 + $0x5e8] sm:$0xff] %vm22, 0.0
    %213 = vst.msk [vmem:[#allocation2 + $0x5f0] sm:$0xff] %vm22, 0.0
    %214 = vst.msk [vmem:[#allocation2 + $0x5f8] sm:$0xff] %vm22, 0.0
    %215 = vst.msk [vmem:[#allocation2 + $0x600] sm:$0xff] %vm22, 0.0
    %216 = vst.msk [vmem:[#allocation2 + $0x608] sm:$0xff] %vm22, 0.0
    %217 = vst.msk [vmem:[#allocation2 + $0x610] sm:$0xff] %vm22, 0.0
    %218 = vst.msk [vmem:[#allocation2 + $0x618] sm:$0xff] %vm22, 0.0
    %219 = vst.msk [vmem:[#allocation2 + $0x620] sm:$0xff] %vm22, 0.0
    %220 = vst.msk [vmem:[#allocation2 + $0x628] sm:$0xff] %vm22, 0.0
    %221 = vst.msk [vmem:[#allocation2 + $0x630] sm:$0xff] %vm22, 0.0
    %222 = vst.msk [vmem:[#allocation2 + $0x638] sm:$0xff] %vm22, 0.0
    %223 = vst.msk [vmem:[#allocation2 + $0x640] sm:$0xff] %vm22, 0.0
    %224 = vst.msk [vmem:[#allocation2 + $0x648] sm:$0xff] %vm22, 0.0
    %225 = vst.msk [vmem:[#allocation2 + $0x650] sm:$0xff] %vm22, 0.0
    %226 = vst.msk [vmem:[#allocation2 + $0x658] sm:$0xff] %vm22, 0.0
    %227 = vst.msk [vmem:[#allocation2 + $0x660] sm:$0xff] %vm22, 0.0
    %228 = vst.msk [vmem:[#allocation2 + $0x668] sm:$0xff] %vm22, 0.0
    %229 = vst.msk [vmem:[#allocation2 + $0x670] sm:$0xff] %vm22, 0.0
    %230 = vst.msk [vmem:[#allocation2 + $0x678] sm:$0xff] %vm22, 0.0
    %231 = vst.msk [vmem:[#allocation2 + $0x680] sm:$0xff] %vm22, 0.0
    %232 = vst.msk [vmem:[#allocation2 + $0x688] sm:$0xff] %vm22, 0.0
    %233 = vst.msk [vmem:[#allocation2 + $0x690] sm:$0xff] %vm22, 0.0
    %234 = vst.msk [vmem:[#allocation2 + $0x698] sm:$0xff] %vm22, 0.0
    %235 = vst.msk [vmem:[#allocation2 + $0x6a0] sm:$0xff] %vm22, 0.0
    %236 = vst.msk [vmem:[#allocation2 + $0x6a8] sm:$0xff] %vm22, 0.0
    %237 = vst.msk [vmem:[#allocation2 + $0x6b0] sm:$0xff] %vm22, 0.0
    %238 = vst.msk [vmem:[#allocation2 + $0x6b8] sm:$0xff] %vm22, 0.0
    %239 = vst.msk [vmem:[#allocation2 + $0x6c0] sm:$0xff] %vm22, 0.0
    %240 = vst.msk [vmem:[#allocation2 + $0x6c8] sm:$0xff] %vm22, 0.0
    %241 = vst.msk [vmem:[#allocation2 + $0x6d0] sm:$0xff] %vm22, 0.0
    %242 = vst.msk [vmem:[#allocation2 + $0x6d8] sm:$0xff] %vm22, 0.0
    %243 = vst.msk [vmem:[#allocation2 + $0x6e0] sm:$0xff] %vm22, 0.0
    %244 = vst.msk [vmem:[#allocation2 + $0x6e8] sm:$0xff] %vm22, 0.0
    %245 = vst.msk [vmem:[#allocation2 + $0x6f0] sm:$0xff] %vm22, 0.0
    %246 = vst.msk [vmem:[#allocation2 + $0x6f8] sm:$0xff] %vm22, 0.0
    %247 = vst.msk [vmem:[#allocation2 + $0x700] sm:$0xff] %vm22, 0.0
    %248 = vst.msk [vmem:[#allocation2 + $0x708] sm:$0xff] %vm22, 0.0
    %249 = vst.msk [vmem:[#allocation2 + $0x710] sm:$0xff] %vm22, 0.0
    %250 = vst.msk [vmem:[#allocation2 + $0x718] sm:$0xff] %vm22, 0.0
    %251 = vst.msk [vmem:[#allocation2 + $0x720] sm:$0xff] %vm22, 0.0
    %252 = vst.msk [vmem:[#allocation2 + $0x728] sm:$0xff] %vm22, 0.0
    %253 = vst.msk [vmem:[#allocation2 + $0x730] sm:$0xff] %vm22, 0.0
    %254 = vst.msk [vmem:[#allocation2 + $0x738] sm:$0xff] %vm22, 0.0
    %255 = vst.msk [vmem:[#allocation2 + $0x740] sm:$0xff] %vm22, 0.0
    %256 = vst.msk [vmem:[#allocation2 + $0x748] sm:$0xff] %vm22, 0.0
    %257 = vst.msk [vmem:[#allocation2 + $0x750] sm:$0xff] %vm22, 0.0
    %258 = vst.msk [vmem:[#allocation2 + $0x758] sm:$0xff] %vm22, 0.0
    %259 = vst.msk [vmem:[#allocation2 + $0x760] sm:$0xff] %vm22, 0.0
    %260 = vst.msk [vmem:[#allocation2 + $0x768] sm:$0xff] %vm22, 0.0
    %261 = vst.msk [vmem:[#allocation2 + $0x770] sm:$0xff] %vm22, 0.0
    %262 = vst.msk [vmem:[#allocation2 + $0x778] sm:$0xff] %vm22, 0.0
    %263 = vst.msk [vmem:[#allocation2 + $0x780] sm:$0xff] %vm22, 0.0
    %264 = vst.msk [vmem:[#allocation2 + $0x788] sm:$0xff] %vm22, 0.0
    %265 = vst.msk [vmem:[#allocation2 + $0x790] sm:$0xff] %vm22, 0.0
    %266 = vst.msk [vmem:[#allocation2 + $0x798] sm:$0xff] %vm22, 0.0
    %267 = vst.msk [vmem:[#allocation2 + $0x7a0] sm:$0xff] %vm22, 0.0
    %268 = vst.msk [vmem:[#allocation2 + $0x7a8] sm:$0xff] %vm22, 0.0
    %269 = vst.msk [vmem:[#allocation2 + $0x7b0] sm:$0xff] %vm22, 0.0
    %270 = vst.msk [vmem:[#allocation2 + $0x7b8] sm:$0xff] %vm22, 0.0
    %271 = vst.msk [vmem:[#allocation2 + $0x7c0] sm:$0xff] %vm22, 0.0
    %272 = vst.msk [vmem:[#allocation2 + $0x7c8] sm:$0xff] %vm22, 0.0
    %273 = vst.msk [vmem:[#allocation2 + $0x7d0] sm:$0xff] %vm22, 0.0
    %274 = vst.msk [vmem:[#allocation2 + $0x7d8] sm:$0xff] %vm22, 0.0
    %275 = vst.msk [vmem:[#allocation2 + $0x7e0] sm:$0xff] %vm22, 0.0
    %276 = vst.msk [vmem:[#allocation2 + $0x7e8] sm:$0xff] %vm22, 0.0
    %277 = vst.msk [vmem:[#allocation2 + $0x7f0] sm:$0xff] %vm22, 0.0
    %278 = vst.msk [vmem:[#allocation2 + $0x7f8] sm:$0xff] %vm22, 0.0
  $region21: #{tpu_custom_call.1} parent=0 // pred_fallthru
    _
  %v279 = vld [vmem:[#allocation2] sm:$0xff]
  %v280 = vld [vmem:[#allocation2 + $0x8] sm:$0xff]
  %v281 = vld [vmem:[#allocation2 + $0x10] sm:$0xff]
  %v282 = vld [vmem:[#allocation2 + $0x18] sm:$0xff]
  %v283 = vld [vmem:[#allocation2 + $0x20] sm:$0xff]
  %v284 = vld [vmem:[#allocation2 + $0x28] sm:$0xff]
  %v285 = vld [vmem:[#allocation2 + $0x30] sm:$0xff]
  %v286 = vld [vmem:[#allocation2 + $0x38] sm:$0xff]
  %v287 = vld [vmem:[#allocation2 + $0x40] sm:$0xff]
  %v288 = vld [vmem:[#allocation2 + $0x48] sm:$0xff]
  %v289 = vld [vmem:[#allocation2 + $0x50] sm:$0xff]
  %v290 = vld [vmem:[#allocation2 + $0x58] sm:$0xff]
  %v291 = vld [vmem:[#allocation2 + $0x60] sm:$0xff]
  %v292 = vld [vmem:[#allocation2 + $0x68] sm:$0xff]
  %v293 = vld [vmem:[#allocation2 + $0x70] sm:$0xff]
  %v294 = vld [vmem:[#allocation2 + $0x78] sm:$0xff]
  %v295 = vld [vmem:[#allocation2 + $0x80] sm:$0xff]
  %v296 = vld [vmem:[#allocation2 + $0x88] sm:$0xff]
  %v297 = vld [vmem:[#allocation2 + $0x90] sm:$0xff]
  %v298 = vld [vmem:[#allocation2 + $0x98] sm:$0xff]
  %v299 = vld [vmem:[#allocation2 + $0xa0] sm:$0xff]
  %v300 = vld [vmem:[#allocation2 + $0xa8] sm:$0xff]
  %v301 = vld [vmem:[#allocation2 + $0xb0] sm:$0xff]
  %v302 = vld [vmem:[#allocation2 + $0xb8] sm:$0xff]
  %v303 = vld [vmem:[#allocation2 + $0xc0] sm:$0xff]
  %v304 = vld [vmem:[#allocation2 + $0xc8] sm:$0xff]
  %v305 = vld [vmem:[#allocation2 + $0xd0] sm:$0xff]
  %v306 = vld [vmem:[#allocation2 + $0xd8] sm:$0xff]
  %v307 = vld [vmem:[#allocation2 + $0xe0] sm:$0xff]
  %v308 = vld [vmem:[#allocation2 + $0xe8] sm:$0xff]
  %v309 = vld [vmem:[#allocation2 + $0xf0] sm:$0xff]
  %v310 = vld [vmem:[#allocation2 + $0xf8] sm:$0xff]
  %v311 = vld [vmem:[#allocation2 + $0x100] sm:$0xff]
  %v312 = vld [vmem:[#allocation2 + $0x108] sm:$0xff]
  %v313 = vld [vmem:[#allocation2 + $0x110] sm:$0xff]
  %v314 = vld [vmem:[#allocation2 + $0x118] sm:$0xff]
  %v315 = vld [vmem:[#allocation2 + $0x120] sm:$0xff]
  %v316 = vld [vmem:[#allocation2 + $0x128] sm:$0xff]
  %v317 = vld [vmem:[#allocation2 + $0x130] sm:$0xff]
  %v318 = vld [vmem:[#allocation2 + $0x138] sm:$0xff]
  %v319 = vld [vmem:[#allocation2 + $0x140] sm:$0xff]
  %v320 = vld [vmem:[#allocation2 + $0x148] sm:$0xff]
  %v321 = vld [vmem:[#allocation2 + $0x150] sm:$0xff]
  %v322 = vld [vmem:[#allocation2 + $0x158] sm:$0xff]
  %v323 = vld [vmem:[#allocation2 + $0x160] sm:$0xff]
  %v324 = vld [vmem:[#allocation2 + $0x168] sm:$0xff]
  %v325 = vld [vmem:[#allocation2 + $0x170] sm:$0xff]
  %v326 = vld [vmem:[#allocation2 + $0x178] sm:$0xff]
  %v327 = vld [vmem:[#allocation2 + $0x180] sm:$0xff]
  %v328 = vld [vmem:[#allocation2 + $0x188] sm:$0xff]
  %v329 = vld [vmem:[#allocation2 + $0x190] sm:$0xff]
  %v330 = vld [vmem:[#allocation2 + $0x198] sm:$0xff]
  %v331 = vld [vmem:[#allocation2 + $0x1a0] sm:$0xff]
  %v332 = vld [vmem:[#allocation2 + $0x1a8] sm:$0xff]
  %v333 = vld [vmem:[#allocation2 + $0x1b0] sm:$0xff]
  %v334 = vld [vmem:[#allocation2 + $0x1b8] sm:$0xff]
  %v335 = vld [vmem:[#allocation2 + $0x1c0] sm:$0xff]
  %v336 = vld [vmem:[#allocation2 + $0x1c8] sm:$0xff]
  %v337 = vld [vmem:[#allocation2 + $0x1d0] sm:$0xff]
  %v338 = vld [vmem:[#allocation2 + $0x1d8] sm:$0xff]
  %v339 = vld [vmem:[#allocation2 + $0x1e0] sm:$0xff]
  %v340 = vld [vmem:[#allocation2 + $0x1e8] sm:$0xff]
  %v341 = vld [vmem:[#allocation2 + $0x1f0] sm:$0xff]
  %v342 = vld [vmem:[#allocation2 + $0x1f8] sm:$0xff]
  %v343 = vld [vmem:[#allocation2 + $0x200] sm:$0xff]
  %v344 = vld [vmem:[#allocation2 + $0x208] sm:$0xff]
  %v345 = vld [vmem:[#allocation2 + $0x210] sm:$0xff]
  %v346 = vld [vmem:[#allocation2 + $0x218] sm:$0xff]
  %v347 = vld [vmem:[#allocation2 + $0x220] sm:$0xff]
  %v348 = vld [vmem:[#allocation2 + $0x228] sm:$0xff]
  %v349 = vld [vmem:[#allocation2 + $0x230] sm:$0xff]
  %v350 = vld [vmem:[#allocation2 + $0x238] sm:$0xff]
  %v351 = vld [vmem:[#allocation2 + $0x240] sm:$0xff]
  %v352 = vld [vmem:[#allocation2 + $0x248] sm:$0xff]
  %v353 = vld [vmem:[#allocation2 + $0x250] sm:$0xff]
  %v354 = vld [vmem:[#allocation2 + $0x258] sm:$0xff]
  %v355 = vld [vmem:[#allocation2 + $0x260] sm:$0xff]
  %v356 = vld [vmem:[#allocation2 + $0x268] sm:$0xff]
  %v357 = vld [vmem:[#allocation2 + $0x270] sm:$0xff]
  %v358 = vld [vmem:[#allocation2 + $0x278] sm:$0xff]
  %v359 = vld [vmem:[#allocation2 + $0x280] sm:$0xff]
  %v360 = vld [vmem:[#allocation2 + $0x288] sm:$0xff]
  %v361 = vld [vmem:[#allocation2 + $0x290] sm:$0xff]
  %v362 = vld [vmem:[#allocation2 + $0x298] sm:$0xff]
  %v363 = vld [vmem:[#allocation2 + $0x2a0] sm:$0xff]
  %v364 = vld [vmem:[#allocation2 + $0x2a8] sm:$0xff]
  %v365 = vld [vmem:[#allocation2 + $0x2b0] sm:$0xff]
  %v366 = vld [vmem:[#allocation2 + $0x2b8] sm:$0xff]
  %v367 = vld [vmem:[#allocation2 + $0x2c0] sm:$0xff]
  %v368 = vld [vmem:[#allocation2 + $0x2c8] sm:$0xff]
  %v369 = vld [vmem:[#allocation2 + $0x2d0] sm:$0xff]
  %v370 = vld [vmem:[#allocation2 + $0x2d8] sm:$0xff]
  %v371 = vld [vmem:[#allocation2 + $0x2e0] sm:$0xff]
  %v372 = vld [vmem:[#allocation2 + $0x2e8] sm:$0xff]
  %v373 = vld [vmem:[#allocation2 + $0x2f0] sm:$0xff]
  %v374 = vld [vmem:[#allocation2 + $0x2f8] sm:$0xff]
  %v375 = vld [vmem:[#allocation2 + $0x300] sm:$0xff]
  %v376 = vld [vmem:[#allocation2 + $0x308] sm:$0xff]
  %v377 = vld [vmem:[#allocation2 + $0x310] sm:$0xff]
  %v378 = vld [vmem:[#allocation2 + $0x318] sm:$0xff]
  %v379 = vld [vmem:[#allocation2 + $0x320] sm:$0xff]
  %v380 = vld [vmem:[#allocation2 + $0x328] sm:$0xff]
  %v381 = vld [vmem:[#allocation2 + $0x330] sm:$0xff]
  %v382 = vld [vmem:[#allocation2 + $0x338] sm:$0xff]
  %v383 = vld [vmem:[#allocation2 + $0x340] sm:$0xff]
  %v384 = vld [vmem:[#allocation2 + $0x348] sm:$0xff]
  %v385 = vld [vmem:[#allocation2 + $0x350] sm:$0xff]
  %v386 = vld [vmem:[#allocation2 + $0x358] sm:$0xff]
  %v387 = vld [vmem:[#allocation2 + $0x360] sm:$0xff]
  %v388 = vld [vmem:[#allocation2 + $0x368] sm:$0xff]
  %v389 = vld [vmem:[#allocation2 + $0x370] sm:$0xff]
  %v390 = vld [vmem:[#allocation2 + $0x378] sm:$0xff]
  %v391 = vld [vmem:[#allocation2 + $0x380] sm:$0xff]
  %v392 = vld [vmem:[#allocation2 + $0x388] sm:$0xff]
  %v393 = vld [vmem:[#allocation2 + $0x390] sm:$0xff]
  %v394 = vld [vmem:[#allocation2 + $0x398] sm:$0xff]
  %v395 = vld [vmem:[#allocation2 + $0x3a0] sm:$0xff]
  %v396 = vld [vmem:[#allocation2 + $0x3a8] sm:$0xff]
  %v397 = vld [vmem:[#allocation2 + $0x3b0] sm:$0xff]
  %v398 = vld [vmem:[#allocation2 + $0x3b8] sm:$0xff]
  %v399 = vld [vmem:[#allocation2 + $0x3c0] sm:$0xff]
  %v400 = vld [vmem:[#allocation2 + $0x3c8] sm:$0xff]
  %v401 = vld [vmem:[#allocation2 + $0x3d0] sm:$0xff]
  %v402 = vld [vmem:[#allocation2 + $0x3d8] sm:$0xff]
  %v403 = vld [vmem:[#allocation2 + $0x3e0] sm:$0xff]
  %v404 = vld [vmem:[#allocation2 + $0x3e8] sm:$0xff]
  %v405 = vld [vmem:[#allocation2 + $0x3f0] sm:$0xff]
  %v406 = vld [vmem:[#allocation2 + $0x3f8] sm:$0xff]
  %v407 = vld [vmem:[#allocation2 + $0x400] sm:$0xff]
  %v408 = vld [vmem:[#allocation2 + $0x408] sm:$0xff]
  %v409 = vld [vmem:[#allocation2 + $0x410] sm:$0xff]
  %v410 = vld [vmem:[#allocation2 + $0x418] sm:$0xff]
  %v411 = vld [vmem:[#allocation2 + $0x420] sm:$0xff]
  %v412 = vld [vmem:[#allocation2 + $0x428] sm:$0xff]
  %v413 = vld [vmem:[#allocation2 + $0x430] sm:$0xff]
  %v414 = vld [vmem:[#allocation2 + $0x438] sm:$0xff]
  %v415 = vld [vmem:[#allocation2 + $0x440] sm:$0xff]
  %v416 = vld [vmem:[#allocation2 + $0x448] sm:$0xff]
  %v417 = vld [vmem:[#allocation2 + $0x450] sm:$0xff]
  %v418 = vld [vmem:[#allocation2 + $0x458] sm:$0xff]
  %v419 = vld [vmem:[#allocation2 + $0x460] sm:$0xff]
  %v420 = vld [vmem:[#allocation2 + $0x468] sm:$0xff]
  %v421 = vld [vmem:[#allocation2 + $0x470] sm:$0xff]
  %v422 = vld [vmem:[#allocation2 + $0x478] sm:$0xff]
  %v423 = vld [vmem:[#allocation2 + $0x480] sm:$0xff]
  %v424 = vld [vmem:[#allocation2 + $0x488] sm:$0xff]
  %v425 = vld [vmem:[#allocation2 + $0x490] sm:$0xff]
  %v426 = vld [vmem:[#allocation2 + $0x498] sm:$0xff]
  %v427 = vld [vmem:[#allocation2 + $0x4a0] sm:$0xff]
  %v428 = vld [vmem:[#allocation2 + $0x4a8] sm:$0xff]
  %v429 = vld [vmem:[#allocation2 + $0x4b0] sm:$0xff]
  %v430 = vld [vmem:[#allocation2 + $0x4b8] sm:$0xff]
  %v431 = vld [vmem:[#allocation2 + $0x4c0] sm:$0xff]
  %v432 = vld [vmem:[#allocation2 + $0x4c8] sm:$0xff]
  %v433 = vld [vmem:[#allocation2 + $0x4d0] sm:$0xff]
  %v434 = vld [vmem:[#allocation2 + $0x4d8] sm:$0xff]
  %v435 = vld [vmem:[#allocation2 + $0x4e0] sm:$0xff]
  %v436 = vld [vmem:[#allocation2 + $0x4e8] sm:$0xff]
  %v437 = vld [vmem:[#allocation2 + $0x4f0] sm:$0xff]
  %v438 = vld [vmem:[#allocation2 + $0x4f8] sm:$0xff]
  %v439 = vld [vmem:[#allocation2 + $0x500] sm:$0xff]
  %v440 = vld [vmem:[#allocation2 + $0x508] sm:$0xff]
  %v441 = vld [vmem:[#allocation2 + $0x510] sm:$0xff]
  %v442 = vld [vmem:[#allocation2 + $0x518] sm:$0xff]
  %v443 = vld [vmem:[#allocation2 + $0x520] sm:$0xff]
  %v444 = vld [vmem:[#allocation2 + $0x528] sm:$0xff]
  %v445 = vld [vmem:[#allocation2 + $0x530] sm:$0xff]
  %v446 = vld [vmem:[#allocation2 + $0x538] sm:$0xff]
  %v447 = vld [vmem:[#allocation2 + $0x540] sm:$0xff]
  %v448 = vld [vmem:[#allocation2 + $0x548] sm:$0xff]
  %v449 = vld [vmem:[#allocation2 + $0x550] sm:$0xff]
  %v450 = vld [vmem:[#allocation2 + $0x558] sm:$0xff]
  %v451 = vld [vmem:[#allocation2 + $0x560] sm:$0xff]
  %v452 = vld [vmem:[#allocation2 + $0x568] sm:$0xff]
  %v453 = vld [vmem:[#allocation2 + $0x570] sm:$0xff]
  %v454 = vld [vmem:[#allocation2 + $0x578] sm:$0xff]
  %v455 = vld [vmem:[#allocation2 + $0x580] sm:$0xff]
  %v456 = vld [vmem:[#allocation2 + $0x588] sm:$0xff]
  %v457 = vld [vmem:[#allocation2 + $0x590] sm:$0xff]
  %v458 = vld [vmem:[#allocation2 + $0x598] sm:$0xff]
  %v459 = vld [vmem:[#allocation2 + $0x5a0] sm:$0xff]
  %v460 = vld [vmem:[#allocation2 + $0x5a8] sm:$0xff]
  %v461 = vld [vmem:[#allocation2 + $0x5b0] sm:$0xff]
  %v462 = vld [vmem:[#allocation2 + $0x5b8] sm:$0xff]
  %v463 = vld [vmem:[#allocation2 + $0x5c0] sm:$0xff]
  %v464 = vld [vmem:[#allocation2 + $0x5c8] sm:$0xff]
  %v465 = vld [vmem:[#allocation2 + $0x5d0] sm:$0xff]
  %v466 = vld [vmem:[#allocation2 + $0x5d8] sm:$0xff]
  %v467 = vld [vmem:[#allocation2 + $0x5e0] sm:$0xff]
  %v468 = vld [vmem:[#allocation2 + $0x5e8] sm:$0xff]
  %v469 = vld [vmem:[#allocation2 + $0x5f0] sm:$0xff]
  %v470 = vld [vmem:[#allocation2 + $0x5f8] sm:$0xff]
  %v471 = vld [vmem:[#allocation2 + $0x600] sm:$0xff]
  %v472 = vld [vmem:[#allocation2 + $0x608] sm:$0xff]
  %v473 = vld [vmem:[#allocation2 + $0x610] sm:$0xff]
  %v474 = vld [vmem:[#allocation2 + $0x618] sm:$0xff]
  %v475 = vld [vmem:[#allocation2 + $0x620] sm:$0xff]
  %v476 = vld [vmem:[#allocation2 + $0x628] sm:$0xff]
  %v477 = vld [vmem:[#allocation2 + $0x630] sm:$0xff]
  %v478 = vld [vmem:[#allocation2 + $0x638] sm:$0xff]
  %v479 = vld [vmem:[#allocation2 + $0x640] sm:$0xff]
  %v480 = vld [vmem:[#allocation2 + $0x648] sm:$0xff]
  %v481 = vld [vmem:[#allocation2 + $0x650] sm:$0xff]
  %v482 = vld [vmem:[#allocation2 + $0x658] sm:$0xff]
  %v483 = vld [vmem:[#allocation2 + $0x660] sm:$0xff]
  %v484 = vld [vmem:[#allocation2 + $0x668] sm:$0xff]
  %v485 = vld [vmem:[#allocation2 + $0x670] sm:$0xff]
  %v486 = vld [vmem:[#allocation2 + $0x678] sm:$0xff]
  %v487 = vld [vmem:[#allocation2 + $0x680] sm:$0xff]
  %v488 = vld [vmem:[#allocation2 + $0x688] sm:$0xff]
  %v489 = vld [vmem:[#allocation2 + $0x690] sm:$0xff]
  %v490 = vld [vmem:[#allocation2 + $0x698] sm:$0xff]
  %v491 = vld [vmem:[#allocation2 + $0x6a0] sm:$0xff]
  %v492 = vld [vmem:[#allocation2 + $0x6a8] sm:$0xff]
  %v493 = vld [vmem:[#allocation2 + $0x6b0] sm:$0xff]
  %v494 = vld [vmem:[#allocation2 + $0x6b8] sm:$0xff]
  %v495 = vld [vmem:[#allocation2 + $0x6c0] sm:$0xff]
  %v496 = vld [vmem:[#allocation2 + $0x6c8] sm:$0xff]
  %v497 = vld [vmem:[#allocation2 + $0x6d0] sm:$0xff]
  %v498 = vld [vmem:[#allocation2 + $0x6d8] sm:$0xff]
  %v499 = vld [vmem:[#allocation2 + $0x6e0] sm:$0xff]
  %v500 = vld [vmem:[#allocation2 + $0x6e8] sm:$0xff]
  %v501 = vld [vmem:[#allocation2 + $0x6f0] sm:$0xff]
  %v502 = vld [vmem:[#allocation2 + $0x6f8] sm:$0xff]
  %v503 = vld [vmem:[#allocation2 + $0x700] sm:$0xff]
  %v504 = vld [vmem:[#allocation2 + $0x708] sm:$0xff]
  %v505 = vld [vmem:[#allocation2 + $0x710] sm:$0xff]
  %v506 = vld [vmem:[#allocation2 + $0x718] sm:$0xff]
  %v507 = vld [vmem:[#allocation2 + $0x720] sm:$0xff]
  %v508 = vld [vmem:[#allocation2 + $0x728] sm:$0xff]
  %v509 = vld [vmem:[#allocation2 + $0x730] sm:$0xff]
  %v510 = vld [vmem:[#allocation2 + $0x738] sm:$0xff]
  %v511 = vld [vmem:[#allocation2 + $0x740] sm:$0xff]
  %v512 = vld [vmem:[#allocation2 + $0x748] sm:$0xff]
  %v513 = vld [vmem:[#allocation2 + $0x750] sm:$0xff]
  %v514 = vld [vmem:[#allocation2 + $0x758] sm:$0xff]
  %v515 = vld [vmem:[#allocation2 + $0x760] sm:$0xff]
  %v516 = vld [vmem:[#allocation2 + $0x768] sm:$0xff]
  %v517 = vld [vmem:[#allocation2 + $0x770] sm:$0xff]
  %v518 = vld [vmem:[#allocation2 + $0x778] sm:$0xff]
  %v519 = vld [vmem:[#allocation2 + $0x780] sm:$0xff]
  %v520 = vld [vmem:[#allocation2 + $0x788] sm:$0xff]
  %v521 = vld [vmem:[#allocation2 + $0x790] sm:$0xff]
  %v522 = vld [vmem:[#allocation2 + $0x798] sm:$0xff]
  %v523 = vld [vmem:[#allocation2 + $0x7a0] sm:$0xff]
  %v524 = vld [vmem:[#allocation2 + $0x7a8] sm:$0xff]
  %v525 = vld [vmem:[#allocation2 + $0x7b0] sm:$0xff]
  %v526 = vld [vmem:[#allocation2 + $0x7b8] sm:$0xff]
  %v527 = vld [vmem:[#allocation2 + $0x7c0] sm:$0xff]
  %v528 = vld [vmem:[#allocation2 + $0x7c8] sm:$0xff]
  %v529 = vld [vmem:[#allocation2 + $0x7d0] sm:$0xff]
  %v530 = vld [vmem:[#allocation2 + $0x7d8] sm:$0xff]
  %v531 = vld [vmem:[#allocation2 + $0x7e0] sm:$0xff]
  %v532 = vld [vmem:[#allocation2 + $0x7e8] sm:$0xff]
  %v533 = vld [vmem:[#allocation2 + $0x7f0] sm:$0xff]
  %v534 = vld [vmem:[#allocation2 + $0x7f8] sm:$0xff]
  %v535 = vld [vmem:[%s0] sm:$0xf]
  %v536 = vld [vmem:[%s0 + $0x4] sm:$0xf]
  %v537 = vld [vmem:[%s0 + $0x8] sm:$0xf]
  %v538 = vld [vmem:[%s0 + $0xc] sm:$0xf]
  %v539 = vld [vmem:[%s0 + $0x10] sm:$0xf]
  %v540 = vld [vmem:[%s0 + $0x14] sm:$0xf]
  %v541 = vld [vmem:[%s0 + $0x18] sm:$0xf]
  %v542 = vld [vmem:[%s0 + $0x1c] sm:$0xf]
  %v543 = vld [vmem:[%s0 + $0x20] sm:$0xf]
  %v544 = vld [vmem:[%s0 + $0x24] sm:$0xf]
  %v545 = vld [vmem:[%s0 + $0x28] sm:$0xf]
  %v546 = vld [vmem:[%s0 + $0x2c] sm:$0xf]
  %v547 = vld [vmem:[%s0 + $0x30] sm:$0xf]
  %v548 = vld [vmem:[%s0 + $0x34] sm:$0xf]
  %v549 = vld [vmem:[%s0 + $0x38] sm:$0xf]
  %v550 = vld [vmem:[%s0 + $0x3c] sm:$0xf]
  %v551 = vld [vmem:[%s0 + $0x40] sm:$0xf]
  %v552 = vld [vmem:[%s0 + $0x44] sm:$0xf]
  %v553 = vld [vmem:[%s0 + $0x48] sm:$0xf]
  %v554 = vld [vmem:[%s0 + $0x4c] sm:$0xf]
  %v555 = vld [vmem:[%s0 + $0x50] sm:$0xf]
  %v556 = vld [vmem:[%s0 + $0x54] sm:$0xf]
  %v557 = vld [vmem:[%s0 + $0x58] sm:$0xf]
  %v558 = vld [vmem:[%s0 + $0x5c] sm:$0xf]
  %v559 = vld [vmem:[%s0 + $0x60] sm:$0xf]
  %v560 = vld [vmem:[%s0 + $0x64] sm:$0xf]
  %v561 = vld [vmem:[%s0 + $0x68] sm:$0xf]
  %v562 = vld [vmem:[%s0 + $0x6c] sm:$0xf]
  %v563 = vld [vmem:[%s0 + $0x70] sm:$0xf]
  %v564 = vld [vmem:[%s0 + $0x74] sm:$0xf]
  %v565 = vld [vmem:[%s0 + $0x78] sm:$0xf]
  %v566 = vld [vmem:[%s0 + $0x7c] sm:$0xf]
  %v567 = vld [vmem:[%s0 + $0x80] sm:$0xf]
  %v568 = vld [vmem:[%s0 + $0x84] sm:$0xf]
  %v569 = vld [vmem:[%s0 + $0x88] sm:$0xf]
  %v570 = vld [vmem:[%s0 + $0x8c] sm:$0xf]
  %v571 = vld [vmem:[%s0 + $0x90] sm:$0xf]
  %v572 = vld [vmem:[%s0 + $0x94] sm:$0xf]
  %v573 = vld [vmem:[%s0 + $0x98] sm:$0xf]
  %v574 = vld [vmem:[%s0 + $0x9c] sm:$0xf]
  %v575 = vld [vmem:[%s0 + $0xa0] sm:$0xf]
  %v576 = vld [vmem:[%s0 + $0xa4] sm:$0xf]
  %v577 = vld [vmem:[%s0 + $0xa8] sm:$0xf]
  %v578 = vld [vmem:[%s0 + $0xac] sm:$0xf]
  %v579 = vld [vmem:[%s0 + $0xb0] sm:$0xf]
  %v580 = vld [vmem:[%s0 + $0xb4] sm:$0xf]
  %v581 = vld [vmem:[%s0 + $0xb8] sm:$0xf]
  %v582 = vld [vmem:[%s0 + $0xbc] sm:$0xf]
  %v583 = vld [vmem:[%s0 + $0xc0] sm:$0xf]
  %v584 = vld [vmem:[%s0 + $0xc4] sm:$0xf]
  %v585 = vld [vmem:[%s0 + $0xc8] sm:$0xf]
  %v586 = vld [vmem:[%s0 + $0xcc] sm:$0xf]
  %v587 = vld [vmem:[%s0 + $0xd0] sm:$0xf]
  %v588 = vld [vmem:[%s0 + $0xd4] sm:$0xf]
  %v589 = vld [vmem:[%s0 + $0xd8] sm:$0xf]
  %v590 = vld [vmem:[%s0 + $0xdc] sm:$0xf]
  %v591 = vld [vmem:[%s0 + $0xe0] sm:$0xf]
  %v592 = vld [vmem:[%s0 + $0xe4] sm:$0xf]
  %v593 = vld [vmem:[%s0 + $0xe8] sm:$0xf]
  %v594 = vld [vmem:[%s0 + $0xec] sm:$0xf]
  %v595 = vld [vmem:[%s0 + $0xf0] sm:$0xf]
  %v596 = vld [vmem:[%s0 + $0xf4] sm:$0xf]
  %v597 = vld [vmem:[%s0 + $0xf8] sm:$0xf]
  %v598 = vld [vmem:[%s0 + $0xfc] sm:$0xf]
  %v599 = vld [vmem:[%s0 + $0x100] sm:$0xf]
  %v600 = vld [vmem:[%s0 + $0x104] sm:$0xf]
  %v601 = vld [vmem:[%s0 + $0x108] sm:$0xf]
  %v602 = vld [vmem:[%s0 + $0x10c] sm:$0xf]
  %v603 = vld [vmem:[%s0 + $0x110] sm:$0xf]
  %v604 = vld [vmem:[%s0 + $0x114] sm:$0xf]
  %v605 = vld [vmem:[%s0 + $0x118] sm:$0xf]
  %v606 = vld [vmem:[%s0 + $0x11c] sm:$0xf]
  %v607 = vld [vmem:[%s0 + $0x120] sm:$0xf]
  %v608 = vld [vmem:[%s0 + $0x124] sm:$0xf]
  %v609 = vld [vmem:[%s0 + $0x128] sm:$0xf]
  %v610 = vld [vmem:[%s0 + $0x12c] sm:$0xf]
  %v611 = vld [vmem:[%s0 + $0x130] sm:$0xf]
  %v612 = vld [vmem:[%s0 + $0x134] sm:$0xf]
  %v613 = vld [vmem:[%s0 + $0x138] sm:$0xf]
  %v614 = vld [vmem:[%s0 + $0x13c] sm:$0xf]
  %v615 = vld [vmem:[%s0 + $0x140] sm:$0xf]
  %v616 = vld [vmem:[%s0 + $0x144] sm:$0xf]
  %v617 = vld [vmem:[%s0 + $0x148] sm:$0xf]
  %v618 = vld [vmem:[%s0 + $0x14c] sm:$0xf]
  %v619 = vld [vmem:[%s0 + $0x150] sm:$0xf]
  %v620 = vld [vmem:[%s0 + $0x154] sm:$0xf]
  %v621 = vld [vmem:[%s0 + $0x158] sm:$0xf]
  %v622 = vld [vmem:[%s0 + $0x15c] sm:$0xf]
  %v623 = vld [vmem:[%s0 + $0x160] sm:$0xf]
  %v624 = vld [vmem:[%s0 + $0x164] sm:$0xf]
  %v625 = vld [vmem:[%s0 + $0x168] sm:$0xf]
  %v626 = vld [vmem:[%s0 + $0x16c] sm:$0xf]
  %v627 = vld [vmem:[%s0 + $0x170] sm:$0xf]
  %v628 = vld [vmem:[%s0 + $0x174] sm:$0xf]
  %v629 = vld [vmem:[%s0 + $0x178] sm:$0xf]
  %v630 = vld [vmem:[%s0 + $0x17c] sm:$0xf]
  %v631 = vld [vmem:[%s0 + $0x180] sm:$0xf]
  %v632 = vld [vmem:[%s0 + $0x184] sm:$0xf]
  %v633 = vld [vmem:[%s0 + $0x188] sm:$0xf]
  %v634 = vld [vmem:[%s0 + $0x18c] sm:$0xf]
  %v635 = vld [vmem:[%s0 + $0x190] sm:$0xf]
  %v636 = vld [vmem:[%s0 + $0x194] sm:$0xf]
  %v637 = vld [vmem:[%s0 + $0x198] sm:$0xf]
  %v638 = vld [vmem:[%s0 + $0x19c] sm:$0xf]
  %v639 = vld [vmem:[%s0 + $0x1a0] sm:$0xf]
  %v640 = vld [vmem:[%s0 + $0x1a4] sm:$0xf]
  %v641 = vld [vmem:[%s0 + $0x1a8] sm:$0xf]
  %v642 = vld [vmem:[%s0 + $0x1ac] sm:$0xf]
  %v643 = vld [vmem:[%s0 + $0x1b0] sm:$0xf]
  %v644 = vld [vmem:[%s0 + $0x1b4] sm:$0xf]
  %v645 = vld [vmem:[%s0 + $0x1b8] sm:$0xf]
  %v646 = vld [vmem:[%s0 + $0x1bc] sm:$0xf]
  %v647 = vld [vmem:[%s0 + $0x1c0] sm:$0xf]
  %v648 = vld [vmem:[%s0 + $0x1c4] sm:$0xf]
  %v649 = vld [vmem:[%s0 + $0x1c8] sm:$0xf]
  %v650 = vld [vmem:[%s0 + $0x1cc] sm:$0xf]
  %v651 = vld [vmem:[%s0 + $0x1d0] sm:$0xf]
  %v652 = vld [vmem:[%s0 + $0x1d4] sm:$0xf]
  %v653 = vld [vmem:[%s0 + $0x1d8] sm:$0xf]
  %v654 = vld [vmem:[%s0 + $0x1dc] sm:$0xf]
  %v655 = vld [vmem:[%s0 + $0x1e0] sm:$0xf]
  %v656 = vld [vmem:[%s0 + $0x1e4] sm:$0xf]
  %v657 = vld [vmem:[%s0 + $0x1e8] sm:$0xf]
  %v658 = vld [vmem:[%s0 + $0x1ec] sm:$0xf]
  %v659 = vld [vmem:[%s0 + $0x1f0] sm:$0xf]
  %v660 = vld [vmem:[%s0 + $0x1f4] sm:$0xf]
  %v661 = vld [vmem:[%s0 + $0x1f8] sm:$0xf]
  %v662 = vld [vmem:[%s0 + $0x1fc] sm:$0xf]
  %v663 = vld [vmem:[%s0 + $0x200] sm:$0xf]
  %v664 = vld [vmem:[%s0 + $0x204] sm:$0xf]
  %v665 = vld [vmem:[%s0 + $0x208] sm:$0xf]
  %v666 = vld [vmem:[%s0 + $0x20c] sm:$0xf]
  %v667 = vld [vmem:[%s0 + $0x210] sm:$0xf]
  %v668 = vld [vmem:[%s0 + $0x214] sm:$0xf]
  %v669 = vld [vmem:[%s0 + $0x218] sm:$0xf]
  %v670 = vld [vmem:[%s0 + $0x21c] sm:$0xf]
  %v671 = vld [vmem:[%s0 + $0x220] sm:$0xf]
  %v672 = vld [vmem:[%s0 + $0x224] sm:$0xf]
  %v673 = vld [vmem:[%s0 + $0x228] sm:$0xf]
  %v674 = vld [vmem:[%s0 + $0x22c] sm:$0xf]
  %v675 = vld [vmem:[%s0 + $0x230] sm:$0xf]
  %v676 = vld [vmem:[%s0 + $0x234] sm:$0xf]
  %v677 = vld [vmem:[%s0 + $0x238] sm:$0xf]
  %v678 = vld [vmem:[%s0 + $0x23c] sm:$0xf]
  %v679 = vld [vmem:[%s0 + $0x240] sm:$0xf]
  %v680 = vld [vmem:[%s0 + $0x244] sm:$0xf]
  %v681 = vld [vmem:[%s0 + $0x248] sm:$0xf]
  %v682 = vld [vmem:[%s0 + $0x24c] sm:$0xf]
  %v683 = vld [vmem:[%s0 + $0x250] sm:$0xf]
  %v684 = vld [vmem:[%s0 + $0x254] sm:$0xf]
  %v685 = vld [vmem:[%s0 + $0x258] sm:$0xf]
  %v686 = vld [vmem:[%s0 + $0x25c] sm:$0xf]
  %v687 = vld [vmem:[%s0 + $0x260] sm:$0xf]
  %v688 = vld [vmem:[%s0 + $0x264] sm:$0xf]
  %v689 = vld [vmem:[%s0 + $0x268] sm:$0xf]
  %v690 = vld [vmem:[%s0 + $0x26c] sm:$0xf]
  %v691 = vld [vmem:[%s0 + $0x270] sm:$0xf]
  %v692 = vld [vmem:[%s0 + $0x274] sm:$0xf]
  %v693 = vld [vmem:[%s0 + $0x278] sm:$0xf]
  %v694 = vld [vmem:[%s0 + $0x27c] sm:$0xf]
  %v695 = vld [vmem:[%s0 + $0x280] sm:$0xf]
  %v696 = vld [vmem:[%s0 + $0x284] sm:$0xf]
  %v697 = vld [vmem:[%s0 + $0x288] sm:$0xf]
  %v698 = vld [vmem:[%s0 + $0x28c] sm:$0xf]
  %v699 = vld [vmem:[%s0 + $0x290] sm:$0xf]
  %v700 = vld [vmem:[%s0 + $0x294] sm:$0xf]
  %v701 = vld [vmem:[%s0 + $0x298] sm:$0xf]
  %v702 = vld [vmem:[%s0 + $0x29c] sm:$0xf]
  %v703 = vld [vmem:[%s0 + $0x2a0] sm:$0xf]
  %v704 = vld [vmem:[%s0 + $0x2a4] sm:$0xf]
  %v705 = vld [vmem:[%s0 + $0x2a8] sm:$0xf]
  %v706 = vld [vmem:[%s0 + $0x2ac] sm:$0xf]
  %v707 = vld [vmem:[%s0 + $0x2b0] sm:$0xf]
  %v708 = vld [vmem:[%s0 + $0x2b4] sm:$0xf]
  %v709 = vld [vmem:[%s0 + $0x2b8] sm:$0xf]
  %v710 = vld [vmem:[%s0 + $0x2bc] sm:$0xf]
  %v711 = vld [vmem:[%s0 + $0x2c0] sm:$0xf]
  %v712 = vld [vmem:[%s0 + $0x2c4] sm:$0xf]
  %v713 = vld [vmem:[%s0 + $0x2c8] sm:$0xf]
  %v714 = vld [vmem:[%s0 + $0x2cc] sm:$0xf]
  %v715 = vld [vmem:[%s0 + $0x2d0] sm:$0xf]
  %v716 = vld [vmem:[%s0 + $0x2d4] sm:$0xf]
  %v717 = vld [vmem:[%s0 + $0x2d8] sm:$0xf]
  %v718 = vld [vmem:[%s0 + $0x2dc] sm:$0xf]
  %v719 = vld [vmem:[%s0 + $0x2e0] sm:$0xf]
  %v720 = vld [vmem:[%s0 + $0x2e4] sm:$0xf]
  %v721 = vld [vmem:[%s0 + $0x2e8] sm:$0xf]
  %v722 = vld [vmem:[%s0 + $0x2ec] sm:$0xf]
  %v723 = vld [vmem:[%s0 + $0x2f0] sm:$0xf]
  %v724 = vld [vmem:[%s0 + $0x2f4] sm:$0xf]
  %v725 = vld [vmem:[%s0 + $0x2f8] sm:$0xf]
  %v726 = vld [vmem:[%s0 + $0x2fc] sm:$0xf]
  %v727 = vld [vmem:[%s0 + $0x300] sm:$0xf]
  %v728 = vld [vmem:[%s0 + $0x304] sm:$0xf]
  %v729 = vld [vmem:[%s0 + $0x308] sm:$0xf]
  %v730 = vld [vmem:[%s0 + $0x30c] sm:$0xf]
  %v731 = vld [vmem:[%s0 + $0x310] sm:$0xf]
  %v732 = vld [vmem:[%s0 + $0x314] sm:$0xf]
  %v733 = vld [vmem:[%s0 + $0x318] sm:$0xf]
  %v734 = vld [vmem:[%s0 + $0x31c] sm:$0xf]
  %v735 = vld [vmem:[%s0 + $0x320] sm:$0xf]
  %v736 = vld [vmem:[%s0 + $0x324] sm:$0xf]
  %v737 = vld [vmem:[%s0 + $0x328] sm:$0xf]
  %v738 = vld [vmem:[%s0 + $0x32c] sm:$0xf]
  %v739 = vld [vmem:[%s0 + $0x330] sm:$0xf]
  %v740 = vld [vmem:[%s0 + $0x334] sm:$0xf]
  %v741 = vld [vmem:[%s0 + $0x338] sm:$0xf]
  %v742 = vld [vmem:[%s0 + $0x33c] sm:$0xf]
  %v743 = vld [vmem:[%s0 + $0x340] sm:$0xf]
  %v744 = vld [vmem:[%s0 + $0x344] sm:$0xf]
  %v745 = vld [vmem:[%s0 + $0x348] sm:$0xf]
  %v746 = vld [vmem:[%s0 + $0x34c] sm:$0xf]
  %v747 = vld [vmem:[%s0 + $0x350] sm:$0xf]
  %v748 = vld [vmem:[%s0 + $0x354] sm:$0xf]
  %v749 = vld [vmem:[%s0 + $0x358] sm:$0xf]
  %v750 = vld [vmem:[%s0 + $0x35c] sm:$0xf]
  %v751 = vld [vmem:[%s0 + $0x360] sm:$0xf]
  %v752 = vld [vmem:[%s0 + $0x364] sm:$0xf]
  %v753 = vld [vmem:[%s0 + $0x368] sm:$0xf]
  %v754 = vld [vmem:[%s0 + $0x36c] sm:$0xf]
  %v755 = vld [vmem:[%s0 + $0x370] sm:$0xf]
  %v756 = vld [vmem:[%s0 + $0x374] sm:$0xf]
  %v757 = vld [vmem:[%s0 + $0x378] sm:$0xf]
  %v758 = vld [vmem:[%s0 + $0x37c] sm:$0xf]
  %v759 = vld [vmem:[%s0 + $0x380] sm:$0xf]
  %v760 = vld [vmem:[%s0 + $0x384] sm:$0xf]
  %v761 = vld [vmem:[%s0 + $0x388] sm:$0xf]
  %v762 = vld [vmem:[%s0 + $0x38c] sm:$0xf]
  %v763 = vld [vmem:[%s0 + $0x390] sm:$0xf]
  %v764 = vld [vmem:[%s0 + $0x394] sm:$0xf]
  %v765 = vld [vmem:[%s0 + $0x398] sm:$0xf]
  %v766 = vld [vmem:[%s0 + $0x39c] sm:$0xf]
  %v767 = vld [vmem:[%s0 + $0x3a0] sm:$0xf]
  %v768 = vld [vmem:[%s0 + $0x3a4] sm:$0xf]
  %v769 = vld [vmem:[%s0 + $0x3a8] sm:$0xf]
  %v770 = vld [vmem:[%s0 + $0x3ac] sm:$0xf]
  %v771 = vld [vmem:[%s0 + $0x3b0] sm:$0xf]
  %v772 = vld [vmem:[%s0 + $0x3b4] sm:$0xf]
  %v773 = vld [vmem:[%s0 + $0x3b8] sm:$0xf]
  %v774 = vld [vmem:[%s0 + $0x3bc] sm:$0xf]
  %v775 = vld [vmem:[%s0 + $0x3c0] sm:$0xf]
  %v776 = vld [vmem:[%s0 + $0x3c4] sm:$0xf]
  %v777 = vld [vmem:[%s0 + $0x3c8] sm:$0xf]
  %v778 = vld [vmem:[%s0 + $0x3cc] sm:$0xf]
  %v779 = vld [vmem:[%s0 + $0x3d0] sm:$0xf]
  %v780 = vld [vmem:[%s0 + $0x3d4] sm:$0xf]
  %v781 = vld [vmem:[%s0 + $0x3d8] sm:$0xf]
  %v782 = vld [vmem:[%s0 + $0x3dc] sm:$0xf]
  %v783 = vld [vmem:[%s0 + $0x3e0] sm:$0xf]
  %v784 = vld [vmem:[%s0 + $0x3e4] sm:$0xf]
  %v785 = vld [vmem:[%s0 + $0x3e8] sm:$0xf]
  %v786 = vld [vmem:[%s0 + $0x3ec] sm:$0xf]
  %v787 = vld [vmem:[%s0 + $0x3f0] sm:$0xf]
  %v788 = vld [vmem:[%s0 + $0x3f4] sm:$0xf]
  %v789 = vld [vmem:[%s0 + $0x3f8] sm:$0xf]
  %v790 = vld [vmem:[%s0 + $0x3fc] sm:$0xf]
  %v791 = vld [vmem:[%s1] sm:$0x3]
  %v792 = vld [vmem:[%s1 + $0x2] sm:$0x3]
  %v793 = vld [vmem:[%s1 + $0x4] sm:$0x3]
  %v794 = vld [vmem:[%s1 + $0x6] sm:$0x1]
  %v795 = vunpack.c.l.s8.bf16 %v791
  %v796 = vunpack.c.l.s8.bf16 %v792
  %v797 = vunpack.c.l.s8.bf16 %v793
  %v798 = vunpack.c.l.s8.bf16 %v794
  %v1055 = vunpack.c.l.b16 %v535
  %v1056 = vunpack.c.l.b16 %v536
  %v1057 = vunpack.c.l.b16 %v537
  %v1058 = vunpack.c.l.b16 %v538
  %v1059 = vunpack.c.l.b16 %v539
  %v1060 = vunpack.c.l.b16 %v540
  %v1061 = vunpack.c.l.b16 %v541
  %v1062 = vunpack.c.l.b16 %v542
  %v1063 = vunpack.c.l.b16 %v543
  %v1064 = vunpack.c.l.b16 %v544
  %v1065 = vunpack.c.l.b16 %v545
  %v1066 = vunpack.c.l.b16 %v546
  %v1067 = vunpack.c.l.b16 %v547
  %v1068 = vunpack.c.l.b16 %v548
  %v1069 = vunpack.c.l.b16 %v549
  %v1070 = vunpack.c.l.b16 %v550
  %v1071 = vunpack.c.l.b16 %v551
  %v1072 = vunpack.c.l.b16 %v552
  %v1073 = vunpack.c.l.b16 %v553
  %v1074 = vunpack.c.l.b16 %v554
  %v1075 = vunpack.c.l.b16 %v555
  %v1076 = vunpack.c.l.b16 %v556
  %v1077 = vunpack.c.l.b16 %v557
  %v1078 = vunpack.c.l.b16 %v558
  %v1079 = vunpack.c.l.b16 %v559
  %v1080 = vunpack.c.l.b16 %v560
  %v1081 = vunpack.c.l.b16 %v561
  %v1082 = vunpack.c.l.b16 %v562
  %v1083 = vunpack.c.l.b16 %v563
  %v1084 = vunpack.c.l.b16 %v564
  %v1085 = vunpack.c.l.b16 %v565
  %v1086 = vunpack.c.l.b16 %v566
  %v1087 = vunpack.c.l.b16 %v567
  %v1088 = vunpack.c.l.b16 %v568
  %v1089 = vunpack.c.l.b16 %v569
  %v1090 = vunpack.c.l.b16 %v570
  %v1091 = vunpack.c.l.b16 %v571
  %v1092 = vunpack.c.l.b16 %v572
  %v1093 = vunpack.c.l.b16 %v573
  %v1094 = vunpack.c.l.b16 %v574
  %v1095 = vunpack.c.l.b16 %v575
  %v1096 = vunpack.c.l.b16 %v576
  %v1097 = vunpack.c.l.b16 %v577
  %v1098 = vunpack.c.l.b16 %v578
  %v1099 = vunpack.c.l.b16 %v579
  %v1100 = vunpack.c.l.b16 %v580
  %v1101 = vunpack.c.l.b16 %v581
  %v1102 = vunpack.c.l.b16 %v582
  %v1103 = vunpack.c.l.b16 %v583
  %v1104 = vunpack.c.l.b16 %v584
  %v1105 = vunpack.c.l.b16 %v585
  %v1106 = vunpack.c.l.b16 %v586
  %v1107 = vunpack.c.l.b16 %v587
  %v1108 = vunpack.c.l.b16 %v588
  %v1109 = vunpack.c.l.b16 %v589
  %v1110 = vunpack.c.l.b16 %v590
  %v1111 = vunpack.c.l.b16 %v591
  %v1112 = vunpack.c.l.b16 %v592
  %v1113 = vunpack.c.l.b16 %v593
  %v1114 = vunpack.c.l.b16 %v594
  %v1115 = vunpack.c.l.b16 %v595
  %v1116 = vunpack.c.l.b16 %v596
  %v1117 = vunpack.c.l.b16 %v597
  %v1118 = vunpack.c.l.b16 %v598
  %v1119 = vunpack.c.l.b16 %v599
  %v1120 = vunpack.c.l.b16 %v600
  %v1121 = vunpack.c.l.b16 %v601
  %v1122 = vunpack.c.l.b16 %v602
  %v1123 = vunpack.c.l.b16 %v603
  %v1124 = vunpack.c.l.b16 %v604
  %v1125 = vunpack.c.l.b16 %v605
  %v1126 = vunpack.c.l.b16 %v606
  %v1127 = vunpack.c.l.b16 %v607
  %v1128 = vunpack.c.l.b16 %v608
  %v1129 = vunpack.c.l.b16 %v609
  %v1130 = vunpack.c.l.b16 %v610
  %v1131 = vunpack.c.l.b16 %v611
  %v1132 = vunpack.c.l.b16 %v612
  %v1133 = vunpack.c.l.b16 %v613
  %v1134 = vunpack.c.l.b16 %v614
  %v1135 = vunpack.c.l.b16 %v615
  %v1136 = vunpack.c.l.b16 %v616
  %v1137 = vunpack.c.l.b16 %v617
  %v1138 = vunpack.c.l.b16 %v618
  %v1139 = vunpack.c.l.b16 %v619
  %v1140 = vunpack.c.l.b16 %v620
  %v1141 = vunpack.c.l.b16 %v621
  %v1142 = vunpack.c.l.b16 %v622
  %v1143 = vunpack.c.l.b16 %v623
  %v1144 = vunpack.c.l.b16 %v624
  %v1145 = vunpack.c.l.b16 %v625
  %v1146 = vunpack.c.l.b16 %v626
  %v1147 = vunpack.c.l.b16 %v627
  %v1148 = vunpack.c.l.b16 %v628
  %v1149 = vunpack.c.l.b16 %v629
  %v1150 = vunpack.c.l.b16 %v630
  %v1151 = vunpack.c.l.b16 %v631
  %v1152 = vunpack.c.l.b16 %v632
  %v1153 = vunpack.c.l.b16 %v633
  %v1154 = vunpack.c.l.b16 %v634
  %v1155 = vunpack.c.l.b16 %v635
  %v1156 = vunpack.c.l.b16 %v636
  %v1157 = vunpack.c.l.b16 %v637
  %v1158 = vunpack.c.l.b16 %v638
  %v1159 = vunpack.c.l.b16 %v639
  %v1160 = vunpack.c.l.b16 %v640
  %v1161 = vunpack.c.l.b16 %v641
  %v1162 = vunpack.c.l.b16 %v642
  %v1163 = vunpack.c.l.b16 %v643
  %v1164 = vunpack.c.l.b16 %v644
  %v1165 = vunpack.c.l.b16 %v645
  %v1166 = vunpack.c.l.b16 %v646
  %v1167 = vunpack.c.l.b16 %v647
  %v1168 = vunpack.c.l.b16 %v648
  %v1169 = vunpack.c.l.b16 %v649
  %v1170 = vunpack.c.l.b16 %v650
  %v1171 = vunpack.c.l.b16 %v651
  %v1172 = vunpack.c.l.b16 %v652
  %v1173 = vunpack.c.l.b16 %v653
  %v1174 = vunpack.c.l.b16 %v654
  %v1175 = vunpack.c.l.b16 %v655
  %v1176 = vunpack.c.l.b16 %v656
  %v1177 = vunpack.c.l.b16 %v657
  %v1178 = vunpack.c.l.b16 %v658
  %v1179 = vunpack.c.l.b16 %v659
  %v1180 = vunpack.c.l.b16 %v660
  %v1181 = vunpack.c.l.b16 %v661
  %v1182 = vunpack.c.l.b16 %v662
  %v1183 = vunpack.c.l.b16 %v663
  %v1184 = vunpack.c.l.b16 %v664
  %v1185 = vunpack.c.l.b16 %v665
  %v1186 = vunpack.c.l.b16 %v666
  %v1187 = vunpack.c.l.b16 %v667
  %v1188 = vunpack.c.l.b16 %v668
  %v1189 = vunpack.c.l.b16 %v669
  %v1190 = vunpack.c.l.b16 %v670
  %v1191 = vunpack.c.l.b16 %v671
  %v1192 = vunpack.c.l.b16 %v672
  %v1193 = vunpack.c.l.b16 %v673
  %v1194 = vunpack.c.l.b16 %v674
  %v1195 = vunpack.c.l.b16 %v675
  %v1196 = vunpack.c.l.b16 %v676
  %v1197 = vunpack.c.l.b16 %v677
  %v1198 = vunpack.c.l.b16 %v678
  %v1199 = vunpack.c.l.b16 %v679
  %v1200 = vunpack.c.l.b16 %v680
  %v1201 = vunpack.c.l.b16 %v681
  %v1202 = vunpack.c.l.b16 %v682
  %v1203 = vunpack.c.l.b16 %v683
  %v1204 = vunpack.c.l.b16 %v684
  %v1205 = vunpack.c.l.b16 %v685
  %v1206 = vunpack.c.l.b16 %v686
  %v1207 = vunpack.c.l.b16 %v687
  %v1208 = vunpack.c.l.b16 %v688
  %v1209 = vunpack.c.l.b16 %v689
  %v1210 = vunpack.c.l.b16 %v690
  %v1211 = vunpack.c.l.b16 %v691
  %v1212 = vunpack.c.l.b16 %v692
  %v1213 = vunpack.c.l.b16 %v693
  %v1214 = vunpack.c.l.b16 %v694
  %v1215 = vunpack.c.l.b16 %v695
  %v1216 = vunpack.c.l.b16 %v696
  %v1217 = vunpack.c.l.b16 %v697
  %v1218 = vunpack.c.l.b16 %v698
  %v1219 = vunpack.c.l.b16 %v699
  %v1220 = vunpack.c.l.b16 %v700
  %v1221 = vunpack.c.l.b16 %v701
  %v1222 = vunpack.c.l.b16 %v702
  %v1223 = vunpack.c.l.b16 %v703
  %v1224 = vunpack.c.l.b16 %v704
  %v1225 = vunpack.c.l.b16 %v705
  %v1226 = vunpack.c.l.b16 %v706
  %v1227 = vunpack.c.l.b16 %v707
  %v1228 = vunpack.c.l.b16 %v708
  %v1229 = vunpack.c.l.b16 %v709
  %v1230 = vunpack.c.l.b16 %v710
  %v1231 = vunpack.c.l.b16 %v711
  %v1232 = vunpack.c.l.b16 %v712
  %v1233 = vunpack.c.l.b16 %v713
  %v1234 = vunpack.c.l.b16 %v714
  %v1235 = vunpack.c.l.b16 %v715
  %v1236 = vunpack.c.l.b16 %v716
  %v1237 = vunpack.c.l.b16 %v717
  %v1238 = vunpack.c.l.b16 %v718
  %v1239 = vunpack.c.l.b16 %v719
  %v1240 = vunpack.c.l.b16 %v720
  %v1241 = vunpack.c.l.b16 %v721
  %v1242 = vunpack.c.l.b16 %v722
  %v1243 = vunpack.c.l.b16 %v723
  %v1244 = vunpack.c.l.b16 %v724
  %v1245 = vunpack.c.l.b16 %v725
  %v1246 = vunpack.c.l.b16 %v726
  %v1247 = vunpack.c.l.b16 %v727
  %v1248 = vunpack.c.l.b16 %v728
  %v1249 = vunpack.c.l.b16 %v729
  %v1250 = vunpack.c.l.b16 %v730
  %v1251 = vunpack.c.l.b16 %v731
  %v1252 = vunpack.c.l.b16 %v732
  %v1253 = vunpack.c.l.b16 %v733
  %v1254 = vunpack.c.l.b16 %v734
  %v1255 = vunpack.c.l.b16 %v735
  %v1256 = vunpack.c.l.b16 %v736
  %v1257 = vunpack.c.l.b16 %v737
  %v1258 = vunpack.c.l.b16 %v738
  %v1259 = vunpack.c.l.b16 %v739
  %v1260 = vunpack.c.l.b16 %v740
  %v1261 = vunpack.c.l.b16 %v741
  %v1262 = vunpack.c.l.b16 %v742
  %v1263 = vunpack.c.l.b16 %v743
  %v1264 = vunpack.c.l.b16 %v744
  %v1265 = vunpack.c.l.b16 %v745
  %v1266 = vunpack.c.l.b16 %v746
  %v1267 = vunpack.c.l.b16 %v747
  %v1268 = vunpack.c.l.b16 %v748
  %v1269 = vunpack.c.l.b16 %v749
  %v1270 = vunpack.c.l.b16 %v750
  %v1271 = vunpack.c.l.b16 %v751
  %v1272 = vunpack.c.l.b16 %v752
  %v1273 = vunpack.c.l.b16 %v753
  %v1274 = vunpack.c.l.b16 %v754
  %v1275 = vunpack.c.l.b16 %v755
  %v1276 = vunpack.c.l.b16 %v756
  %v1277 = vunpack.c.l.b16 %v757
  %v1278 = vunpack.c.l.b16 %v758
  %v1279 = vunpack.c.l.b16 %v759
  %v1280 = vunpack.c.l.b16 %v760
  %v1281 = vunpack.c.l.b16 %v761
  %v1282 = vunpack.c.l.b16 %v762
  %v1283 = vunpack.c.l.b16 %v763
  %v1284 = vunpack.c.l.b16 %v764
  %v1285 = vunpack.c.l.b16 %v765
  %v1286 = vunpack.c.l.b16 %v766
  %v1287 = vunpack.c.l.b16 %v767
  %v1288 = vunpack.c.l.b16 %v768
  %v1289 = vunpack.c.l.b16 %v769
  %v1290 = vunpack.c.l.b16 %v770
  %v1291 = vunpack.c.l.b16 %v771
  %v1292 = vunpack.c.l.b16 %v772
  %v1293 = vunpack.c.l.b16 %v773
  %v1294 = vunpack.c.l.b16 %v774
  %v1295 = vunpack.c.l.b16 %v775
  %v1296 = vunpack.c.l.b16 %v776
  %v1297 = vunpack.c.l.b16 %v777
  %v1298 = vunpack.c.l.b16 %v778
  %v1299 = vunpack.c.l.b16 %v779
  %v1300 = vunpack.c.l.b16 %v780
  %v1301 = vunpack.c.l.b16 %v781
  %v1302 = vunpack.c.l.b16 %v782
  %v1303 = vunpack.c.l.b16 %v783
  %v1304 = vunpack.c.l.b16 %v784
  %v1305 = vunpack.c.l.b16 %v785
  %v1306 = vunpack.c.l.b16 %v786
  %v1307 = vunpack.c.l.b16 %v787
  %v1308 = vunpack.c.l.b16 %v788
  %v1309 = vunpack.c.l.b16 %v789
  %v1310 = vunpack.c.l.b16 %v790
  %v1311 = vpack.c.b16 %v1056, %v1055
  %v1312 = vpack.c.b16 %v1058, %v1057
  %v1313 = vpack.c.b16 %v1060, %v1059
  %v1314 = vpack.c.b16 %v1062, %v1061
  %v1315 = vpack.c.b16 %v1064, %v1063
  %v1316 = vpack.c.b16 %v1066, %v1065
  %v1317 = vpack.c.b16 %v1068, %v1067
  %v1318 = vpack.c.b16 %v1070, %v1069
  %v1319 = vpack.c.b16 %v1072, %v1071
  %v1320 = vpack.c.b16 %v1074, %v1073
  %v1321 = vpack.c.b16 %v1076, %v1075
  %v1322 = vpack.c.b16 %v1078, %v1077
  %v1323 = vpack.c.b16 %v1080, %v1079
  %v1324 = vpack.c.b16 %v1082, %v1081
  %v1325 = vpack.c.b16 %v1084, %v1083
  %v1326 = vpack.c.b16 %v1086, %v1085
  %v1327 = vpack.c.b16 %v1088, %v1087
  %v1328 = vpack.c.b16 %v1090, %v1089
  %v1329 = vpack.c.b16 %v1092, %v1091
  %v1330 = vpack.c.b16 %v1094, %v1093
  %v1331 = vpack.c.b16 %v1096, %v1095
  %v1332 = vpack.c.b16 %v1098, %v1097
  %v1333 = vpack.c.b16 %v1100, %v1099
  %v1334 = vpack.c.b16 %v1102, %v1101
  %v1335 = vpack.c.b16 %v1104, %v1103
  %v1336 = vpack.c.b16 %v1106, %v1105
  %v1337 = vpack.c.b16 %v1108, %v1107
  %v1338 = vpack.c.b16 %v1110, %v1109
  %v1339 = vpack.c.b16 %v1112, %v1111
  %v1340 = vpack.c.b16 %v1114, %v1113
  %v1341 = vpack.c.b16 %v1116, %v1115
  %v1342 = vpack.c.b16 %v1118, %v1117
  %v1343 = vpack.c.b16 %v1120, %v1119
  %v1344 = vpack.c.b16 %v1122, %v1121
  %v1345 = vpack.c.b16 %v1124, %v1123
  %v1346 = vpack.c.b16 %v1126, %v1125
  %v1347 = vpack.c.b16 %v1128, %v1127
  %v1348 = vpack.c.b16 %v1130, %v1129
  %v1349 = vpack.c.b16 %v1132, %v1131
  %v1350 = vpack.c.b16 %v1134, %v1133
  %v1351 = vpack.c.b16 %v1136, %v1135
  %v1352 = vpack.c.b16 %v1138, %v1137
  %v1353 = vpack.c.b16 %v1140, %v1139
  %v1354 = vpack.c.b16 %v1142, %v1141
  %v1355 = vpack.c.b16 %v1144, %v1143
  %v1356 = vpack.c.b16 %v1146, %v1145
  %v1357 = vpack.c.b16 %v1148, %v1147
  %v1358 = vpack.c.b16 %v1150, %v1149
  %v1359 = vpack.c.b16 %v1152, %v1151
  %v1360 = vpack.c.b16 %v1154, %v1153
  %v1361 = vpack.c.b16 %v1156, %v1155
  %v1362 = vpack.c.b16 %v1158, %v1157
  %v1363 = vpack.c.b16 %v1160, %v1159
  %v1364 = vpack.c.b16 %v1162, %v1161
  %v1365 = vpack.c.b16 %v1164, %v1163
  %v1366 = vpack.c.b16 %v1166, %v1165
  %v1367 = vpack.c.b16 %v1168, %v1167
  %v1368 = vpack.c.b16 %v1170, %v1169
  %v1369 = vpack.c.b16 %v1172, %v1171
  %v1370 = vpack.c.b16 %v1174, %v1173
  %v1371 = vpack.c.b16 %v1176, %v1175
  %v1372 = vpack.c.b16 %v1178, %v1177
  %v1373 = vpack.c.b16 %v1180, %v1179
  %v1374 = vpack.c.b16 %v1182, %v1181
  %v1375 = vpack.c.b16 %v1184, %v1183
  %v1376 = vpack.c.b16 %v1186, %v1185
  %v1377 = vpack.c.b16 %v1188, %v1187
  %v1378 = vpack.c.b16 %v1190, %v1189
  %v1379 = vpack.c.b16 %v1192, %v1191
  %v1380 = vpack.c.b16 %v1194, %v1193
  %v1381 = vpack.c.b16 %v1196, %v1195
  %v1382 = vpack.c.b16 %v1198, %v1197
  %v1383 = vpack.c.b16 %v1200, %v1199
  %v1384 = vpack.c.b16 %v1202, %v1201
  %v1385 = vpack.c.b16 %v1204, %v1203
  %v1386 = vpack.c.b16 %v1206, %v1205
  %v1387 = vpack.c.b16 %v1208, %v1207
  %v1388 = vpack.c.b16 %v1210, %v1209
  %v1389 = vpack.c.b16 %v1212, %v1211
  %v1390 = vpack.c.b16 %v1214, %v1213
  %v1391 = vpack.c.b16 %v1216, %v1215
  %v1392 = vpack.c.b16 %v1218, %v1217
  %v1393 = vpack.c.b16 %v1220, %v1219
  %v1394 = vpack.c.b16 %v1222, %v1221
  %v1395 = vpack.c.b16 %v1224, %v1223
  %v1396 = vpack.c.b16 %v1226, %v1225
  %v1397 = vpack.c.b16 %v1228, %v1227
  %v1398 = vpack.c.b16 %v1230, %v1229
  %v1399 = vpack.c.b16 %v1232, %v1231
  %v1400 = vpack.c.b16 %v1234, %v1233
  %v1401 = vpack.c.b16 %v1236, %v1235
  %v1402 = vpack.c.b16 %v1238, %v1237
  %v1403 = vpack.c.b16 %v1240, %v1239
  %v1404 = vpack.c.b16 %v1242, %v1241
  %v1405 = vpack.c.b16 %v1244, %v1243
  %v1406 = vpack.c.b16 %v1246, %v1245
  %v1407 = vpack.c.b16 %v1248, %v1247
  %v1408 = vpack.c.b16 %v1250, %v1249
  %v1409 = vpack.c.b16 %v1252, %v1251
  %v1410 = vpack.c.b16 %v1254, %v1253
  %v1411 = vpack.c.b16 %v1256, %v1255
  %v1412 = vpack.c.b16 %v1258, %v1257
  %v1413 = vpack.c.b16 %v1260, %v1259
  %v1414 = vpack.c.b16 %v1262, %v1261
  %v1415 = vpack.c.b16 %v1264, %v1263
  %v1416 = vpack.c.b16 %v1266, %v1265
  %v1417 = vpack.c.b16 %v1268, %v1267
  %v1418 = vpack.c.b16 %v1270, %v1269
  %v1419 = vpack.c.b16 %v1272, %v1271
  %v1420 = vpack.c.b16 %v1274, %v1273
  %v1421 = vpack.c.b16 %v1276, %v1275
  %v1422 = vpack.c.b16 %v1278, %v1277
  %v1423 = vpack.c.b16 %v1280, %v1279
  %v1424 = vpack.c.b16 %v1282, %v1281
  %v1425 = vpack.c.b16 %v1284, %v1283
  %v1426 = vpack.c.b16 %v1286, %v1285
  %v1427 = vpack.c.b16 %v1288, %v1287
  %v1428 = vpack.c.b16 %v1290, %v1289
  %v1429 = vpack.c.b16 %v1292, %v1291
  %v1430 = vpack.c.b16 %v1294, %v1293
  %v1431 = vpack.c.b16 %v1296, %v1295
  %v1432 = vpack.c.b16 %v1298, %v1297
  %v1433 = vpack.c.b16 %v1300, %v1299
  %v1434 = vpack.c.b16 %v1302, %v1301
  %v1435 = vpack.c.b16 %v1304, %v1303
  %v1436 = vpack.c.b16 %v1306, %v1305
  %v1437 = vpack.c.b16 %v1308, %v1307
  %v1438 = vpack.c.b16 %v1310, %v1309
  %v1443 = vunpack.c.l.b16 %v795
  %v1444 = vunpack.c.l.b16 %v796
  %v1445 = vunpack.c.l.b16 %v797
  %v1446 = vunpack.c.l.b16 %v798
  %v1447 = vpack.c.b16 %v1444, %v1443
  %v1448 = vpack.c.b16 %v1446, %v1445
  %vm1450 = vcmask 220160
  %v1452 = vsel %vm1450, %v1311, 0
  %v1455 = vsel %vm1450, %v1312, 0
  %v1458 = vsel %vm1450, %v1313, 0
  %v1461 = vsel %vm1450, %v1314, 0
  %v1464 = vsel %vm1450, %v1315, 0
  %v1467 = vsel %vm1450, %v1316, 0
  %v1470 = vsel %vm1450, %v1317, 0
  %v1473 = vsel %vm1450, %v1318, 0
  %v1476 = vsel %vm1450, %v1319, 0
  %v1479 = vsel %vm1450, %v1320, 0
  %v1482 = vsel %vm1450, %v1321, 0
  %v1485 = vsel %vm1450, %v1322, 0
  %v1488 = vsel %vm1450, %v1323, 0
  %v1491 = vsel %vm1450, %v1324, 0
  %v1494 = vsel %vm1450, %v1325, 0
  %v1497 = vsel %vm1450, %v1326, 0
  %v1500 = vsel %vm1450, %v1327, 0
  %v1503 = vsel %vm1450, %v1328, 0
  %v1506 = vsel %vm1450, %v1329, 0
  %v1509 = vsel %vm1450, %v1330, 0
  %v1512 = vsel %vm1450, %v1331, 0
  %v1515 = vsel %vm1450, %v1332, 0
  %v1518 = vsel %vm1450, %v1333, 0
  %v1521 = vsel %vm1450, %v1334, 0
  %v1524 = vsel %vm1450, %v1335, 0
  %v1527 = vsel %vm1450, %v1336, 0
  %v1530 = vsel %vm1450, %v1337, 0
  %v1533 = vsel %vm1450, %v1338, 0
  %v1536 = vsel %vm1450, %v1339, 0
  %v1539 = vsel %vm1450, %v1340, 0
  %v1542 = vsel %vm1450, %v1341, 0
  %v1545 = vsel %vm1450, %v1342, 0
  %v1548 = vsel %vm1450, %v1343, 0
  %v1551 = vsel %vm1450, %v1344, 0
  %v1554 = vsel %vm1450, %v1345, 0
  %v1557 = vsel %vm1450, %v1346, 0
  %v1560 = vsel %vm1450, %v1347, 0
  %v1563 = vsel %vm1450, %v1348, 0
  %v1566 = vsel %vm1450, %v1349, 0
  %v1569 = vsel %vm1450, %v1350, 0
  %v1572 = vsel %vm1450, %v1351, 0
  %v1575 = vsel %vm1450, %v1352, 0
  %v1578 = vsel %vm1450, %v1353, 0
  %v1581 = vsel %vm1450, %v1354, 0
  %v1584 = vsel %vm1450, %v1355, 0
  %v1587 = vsel %vm1450, %v1356, 0
  %v1590 = vsel %vm1450, %v1357, 0
  %v1593 = vsel %vm1450, %v1358, 0
  %v1596 = vsel %vm1450, %v1359, 0
  %v1599 = vsel %vm1450, %v1360, 0
  %v1602 = vsel %vm1450, %v1361, 0
  %v1605 = vsel %vm1450, %v1362, 0
  %v1608 = vsel %vm1450, %v1363, 0
  %v1611 = vsel %vm1450, %v1364, 0
  %v1614 = vsel %vm1450, %v1365, 0
  %v1617 = vsel %vm1450, %v1366, 0
  %v1620 = vsel %vm1450, %v1367, 0
  %v1623 = vsel %vm1450, %v1368, 0
  %v1626 = vsel %vm1450, %v1369, 0
  %v1629 = vsel %vm1450, %v1370, 0
  %v1632 = vsel %vm1450, %v1371, 0
  %v1635 = vsel %vm1450, %v1372, 0
  %v1638 = vsel %vm1450, %v1373, 0
  %v1641 = vsel %vm1450, %v1374, 0
  %v1644 = vsel %vm1450, %v1375, 0
  %v1647 = vsel %vm1450, %v1376, 0
  %v1650 = vsel %vm1450, %v1377, 0
  %v1653 = vsel %vm1450, %v1378, 0
  %v1656 = vsel %vm1450, %v1379, 0
  %v1659 = vsel %vm1450, %v1380, 0
  %v1662 = vsel %vm1450, %v1381, 0
  %v1665 = vsel %vm1450, %v1382, 0
  %v1668 = vsel %vm1450, %v1383, 0
  %v1671 = vsel %vm1450, %v1384, 0
  %v1674 = vsel %vm1450, %v1385, 0
  %v1677 = vsel %vm1450, %v1386, 0
  %v1680 = vsel %vm1450, %v1387, 0
  %v1683 = vsel %vm1450, %v1388, 0
  %v1686 = vsel %vm1450, %v1389, 0
  %v1689 = vsel %vm1450, %v1390, 0
  %v1692 = vsel %vm1450, %v1391, 0
  %v1695 = vsel %vm1450, %v1392, 0
  %v1698 = vsel %vm1450, %v1393, 0
  %v1701 = vsel %vm1450, %v1394, 0
  %v1704 = vsel %vm1450, %v1395, 0
  %v1707 = vsel %vm1450, %v1396, 0
  %v1710 = vsel %vm1450, %v1397, 0
  %v1713 = vsel %vm1450, %v1398, 0
  %v1716 = vsel %vm1450, %v1399, 0
  %v1719 = vsel %vm1450, %v1400, 0
  %v1722 = vsel %vm1450, %v1401, 0
  %v1725 = vsel %vm1450, %v1402, 0
  %v1728 = vsel %vm1450, %v1403, 0
  %v1731 = vsel %vm1450, %v1404, 0
  %v1734 = vsel %vm1450, %v1405, 0
  %v1737 = vsel %vm1450, %v1406, 0
  %v1740 = vsel %vm1450, %v1407, 0
  %v1743 = vsel %vm1450, %v1408, 0
  %v1746 = vsel %vm1450, %v1409, 0
  %v1749 = vsel %vm1450, %v1410, 0
  %v1752 = vsel %vm1450, %v1411, 0
  %v1755 = vsel %vm1450, %v1412, 0
  %v1758 = vsel %vm1450, %v1413, 0
  %v1761 = vsel %vm1450, %v1414, 0
  %v1764 = vsel %vm1450, %v1415, 0
  %v1767 = vsel %vm1450, %v1416, 0
  %v1770 = vsel %vm1450, %v1417, 0
  %v1773 = vsel %vm1450, %v1418, 0
  %v1776 = vsel %vm1450, %v1419, 0
  %v1779 = vsel %vm1450, %v1420, 0
  %v1782 = vsel %vm1450, %v1421, 0
  %v1785 = vsel %vm1450, %v1422, 0
  %v1788 = vsel %vm1450, %v1423, 0
  %v1791 = vsel %vm1450, %v1424, 0
  %v1794 = vsel %vm1450, %v1425, 0
  %v1797 = vsel %vm1450, %v1426, 0
  %v1800 = vsel %vm1450, %v1427, 0
  %v1803 = vsel %vm1450, %v1428, 0
  %v1806 = vsel %vm1450, %v1429, 0
  %v1809 = vsel %vm1450, %v1430, 0
  %v1812 = vsel %vm1450, %v1431, 0
  %v1815 = vsel %vm1450, %v1432, 0
  %v1818 = vsel %vm1450, %v1433, 0
  %v1821 = vsel %vm1450, %v1434, 0
  %v1824 = vsel %vm1450, %v1435, 0
  %v1827 = vsel %vm1450, %v1436, 0
  %v1830 = vsel %vm1450, %v1437, 0
  %v1833 = vsel %vm1450, %v1438, 0
  %vm1835 = vcmask 1044480
  %vm1836 = vcmask 1045504
  %v1837 = vsel %vm1835, 4294967295, 65535
  %v1838 = vsel %vm1836, %v1837, 0
  %v1840 = vand.u32 %v1448, %v1838
  %1842 = vmatprep.subr.bf16.mxu0 0
  %1843 = vmatpush1.bf16.msra.mxu0 %v1447
  %1844 = vmatprep.subr.bf16.mxu0 0
  %1845 = vmatpush1.bf16.msra.mxu0 %v1840
  %1846 = vmatprep.subr.bf16.mxu0 0
  %1847 = vmatpush1.bf16.msra.mxu0 0
  %1848 = vmatprep.subr.bf16.mxu0 0
  %1849 = vmatpush1.bf16.msra.mxu0 0
  %1850 = vmatprep.subr.bf16.mxu0 0
  %1851 = vmatpush1.bf16.msra.mxu0 0
  %1852 = vmatprep.subr.bf16.mxu0 0
  %1853 = vmatpush1.bf16.msra.mxu0 0
  %1854 = vmatprep.subr.bf16.mxu0 0
  %1855 = vmatpush1.bf16.msra.mxu0 0
  %1856 = vmatprep.subr.bf16.mxu0 0
  %1857 = vmatpush1.bf16.msra.mxu0 0
  %1858 = vmatprep.subr.bf16.mxu0 0
  %1859 = vmatpush1.bf16.msra.mxu0 0
  %1860 = vmatprep.subr.bf16.mxu0 0
  %1861 = vmatpush1.bf16.msra.mxu0 0
  %1862 = vmatprep.subr.bf16.mxu0 0
  %1863 = vmatpush1.bf16.msra.mxu0 0
  %1864 = vmatprep.subr.bf16.mxu0 0
  %1865 = vmatpush1.bf16.msra.mxu0 0
  %1866 = vmatprep.subr.bf16.mxu0 0
  %1867 = vmatpush1.bf16.msra.mxu0 0
  %1868 = vmatprep.subr.bf16.mxu0 0
  %1869 = vmatpush1.bf16.msra.mxu0 0
  %1870 = vmatprep.subr.bf16.mxu0 0
  %1871 = vmatpush1.bf16.msra.mxu0 0
  %1872 = vmatprep.subr.bf16.mxu0 0
  %1873 = vmatpush1.bf16.msra.mxu0 0
  %1874 = vmatprep.mubr.bf16.mxu0 0
  %1875 = vmatmul.mubr.bf16.gmra.mrb[0].mxu0 %v1452
  %v1876 = vpop.f32.mrb[0].mxu0
  %v1877 = vadd.f32 0.0, %v1876
  %v1878 = vpop.f32.mrb[0].mxu0
  %v1879 = vpop.f32.mrb[0].mxu0
  %v1880 = vadd.f32 0.0, %v1879
  %v1881 = vpop.f32.mrb[0].mxu0
  %1882 = vmatprep.mubr.bf16.mxu0 0
  %1883 = vmatmul.mubr.bf16.gmra.mrb[0].mxu0 %v1455
  %v1884 = vpop.f32.mrb[0].mxu0
  %v1885 = vadd.f32 0.0, %v1884
  %v1886 = vpop.f32.mrb[0].mxu0
  %v1887 = vpop.f32.mrb[0].mxu0
  %v1888 = vadd.f32 0.0, %v1887
  %v1889 = vpop.f32.mrb[0].mxu0
  %1890 = vmatprep.mubr.bf16.mxu0 0
  %1891 = vmatmul.mubr.bf16.gmra.mrb[0].mxu0 %v1458
  %v1892 = vpop.f32.mrb[0].mxu0
  %v1893 = vadd.f32 0.0, %v1892
  %v1894 = vpop.f32.mrb[0].mxu0
  %v1895 = vpop.f32.mrb[0].mxu0
  %v1896 = vadd.f32 0.0, %v1895
  %v1897 = vpop.f32.mrb[0].mxu0
  %1898 = vmatprep.mubr.bf16.mxu0 0
  %1899 = vmatmul.mubr.bf16.gmra.mrb[0].mxu0 %v1461
  %v1900 = vpop.f32.mrb[0].mxu0
  %v1901 = vadd.f32 0.0, %v1900
  %v1902 = vpop.f32.mrb[0].mxu0
  %v1903 = vpop.f32.mrb[0].mxu0
  %v1904 = vadd.f32 0.0, %v1903
  %v1905 = vpop.f32.mrb[0].mxu0
  %1906 = vmatprep.mubr.bf16.mxu0 0
  %1907 = vmatmul.mubr.bf16.gmra.mrb[0].mxu0 %v1464
  %v1908 = vpop.f32.mrb[0].mxu0
  %v1909 = vadd.f32 0.0, %v1908
  %v1910 = vpop.f32.mrb[0].mxu0
  %v1911 = vpop.f32.mrb[0].mxu0
  %v1912 = vadd.f32 0.0, %v1911
  %v1913 = vpop.f32.mrb[0].mxu0
  %1914 = vmatprep.mubr.bf16.mxu0 0
  %1915 = vmatmul.mubr.bf16.gmra.mrb[0].mxu0 %v1467
  %v1916 = vpop.f32.mrb[0].mxu0
  %v1917 = vadd.f32 0.0, %v1916
  %v1918 = vpop.f32.mrb[0].mxu0
  %v1919 = vpop.f32.mrb[0].mxu0
  %v1920 = vadd.f32 0.0, %v1919
  %v1921 = vpop.f32.mrb[0].mxu0
  %1922 = vmatprep.mubr.bf16.mxu0 0
  %1923 = vmatmul.mubr.bf16.gmra.mrb[0].mxu0 %v1470
  %v1924 = vpop.f32.mrb[0].mxu0
  %v1925 = vadd.f32 0.0, %v1924
  %v1926 = vpop.f32.mrb[0].mxu0
  %v1927 = vpop.f32.mrb[0].mxu0
  %v1928 = vadd.f32 0.0, %v1927
  %v1929 = vpop.f32.mrb[0].mxu0
  %1930 = vmatprep.mubr.bf16.mxu0 0
  %1931 = vmatmul.mubr.bf16.gmra.mrb[0].mxu0 %v1473
  %v1932 = vpop.f32.mrb[0].mxu0
  %v1933 = vadd.f32 0.0, %v1932
  %v1934 = vpop.f32.mrb[0].mxu0
  %v1935 = vpop.f32.mrb[0].mxu0
  %v1936 = vadd.f32 0.0, %v1935
  %v1937 = vpop.f32.mrb[0].mxu0
  %1938 = vmatprep.mubr.bf16.mxu0 0
  %1939 = vmatmul.mubr.bf16.gmra.mrb[0].mxu0 %v1476
  %v1940 = vpop.f32.mrb[0].mxu0
  %v1941 = vadd.f32 0.0, %v1940
  %v1942 = vpop.f32.mrb[0].mxu0
  %v1943 = vpop.f32.mrb[0].mxu0
  %v1944 = vadd.f32 0.0, %v1943
  %v1945 = vpop.f32.mrb[0].mxu0
  %1946 = vmatprep.mubr.bf16.mxu0 0
  %1947 = vmatmul.mubr.bf16.gmra.mrb[0].mxu0 %v1479
  %v1948 = vpop.f32.mrb[0].mxu0
  %v1949 = vadd.f32 0.0, %v1948
  %v1950 = vpop.f32.mrb[0].mxu0
  %v1951 = vpop.f32.mrb[0].mxu0
  %v1952 = vadd.f32 0.0, %v1951
  %v1953 = vpop.f32.mrb[0].mxu0
  %1954 = vmatprep.mubr.bf16.mxu0 0
  %1955 = vmatmul.mubr.bf16.gmra.mrb[0].mxu0 %v1482
  %v1956 = vpop.f32.mrb[0].mxu0
  %v1957 = vadd.f32 0.0, %v1956
  %v1958 = vpop.f32.mrb[0].mxu0
  %v1959 = vpop.f32.mrb[0].mxu0
  %v1960 = vadd.f32 0.0, %v1959
  %v1961 = vpop.f32.mrb[0].mxu0
  %1962 = vmatprep.mubr.bf16.mxu0 0
  %1963 = vmatmul.mubr.bf16.gmra.mrb[0].mxu0 %v1485
  %v1964 = vpop.f32.mrb[0].mxu0
  %v1965 = vadd.f32 0.0, %v1964
  %v1966 = vpop.f32.mrb[0].mxu0
  %v1967 = vpop.f32.mrb[0].mxu0
  %v1968 = vadd.f32 0.0, %v1967
  %v1969 = vpop.f32.mrb[0].mxu0
  %1970 = vmatprep.mubr.bf16.mxu0 0
  %1971 = vmatmul.mubr.bf16.gmra.mrb[0].mxu0 %v1488
  %v1972 = vpop.f32.mrb[0].mxu0
  %v1973 = vadd.f32 0.0, %v1972
  %v1974 = vpop.f32.mrb[0].mxu0
  %v1975 = vpop.f32.mrb[0].mxu0
  %v1976 = vadd.f32 0.0, %v1975
  %v1977 = vpop.f32.mrb[0].mxu0
  %1978 = vmatprep.mubr.bf16.mxu0 0
  %1979 = vmatmul.mubr.bf16.gmra.mrb[0].mxu0 %v1491
  %v1980 = vpop.f32.mrb[0].mxu0
  %v1981 = vadd.f32 0.0, %v1980
  %v1982 = vpop.f32.mrb[0].mxu0
  %v1983 = vpop.f32.mrb[0].mxu0
  %v1984 = vadd.f32 0.0, %v1983
  %v1985 = vpop.f32.mrb[0].mxu0
  %1986 = vmatprep.mubr.bf16.mxu0 0
  %1987 = vmatmul.mubr.bf16.gmra.mrb[0].mxu0 %v1494
  %v1988 = vpop.f32.mrb[0].mxu0
  %v1989 = vadd.f32 0.0, %v1988
  %v1990 = vpop.f32.mrb[0].mxu0
  %v1991 = vpop.f32.mrb[0].mxu0
  %v1992 = vadd.f32 0.0, %v1991
  %v1993 = vpop.f32.mrb[0].mxu0
  %1994 = vmatprep.mubr.bf16.mxu0 0
  %1995 = vmatmul.mubr.bf16.gmra.mrb[0].mxu0 %v1497
  %v1996 = vpop.f32.mrb[0].mxu0
  %v1997 = vadd.f32 0.0, %v1996
  %v1998 = vpop.f32.mrb[0].mxu0
  %v1999 = vpop.f32.mrb[0].mxu0
  %v2000 = vadd.f32 0.0, %v1999
  %v2001 = vpop.f32.mrb[0].mxu0
  %2002 = vmatprep.mubr.bf16.mxu0 0
  %2003 = vmatmul.mubr.bf16.gmra.mrb[0].mxu0 %v1500
  %v2004 = vpop.f32.mrb[0].mxu0
  %v2005 = vadd.f32 0.0, %v2004
  %v2006 = vpop.f32.mrb[0].mxu0
  %v2007 = vpop.f32.mrb[0].mxu0
  %v2008 = vadd.f32 0.0, %v2007
  %v2009 = vpop.f32.mrb[0].mxu0
  %2010 = vmatprep.mubr.bf16.mxu0 0
  %2011 = vmatmul.mubr.bf16.gmra.mrb[0].mxu0 %v1503
  %v2012 = vpop.f32.mrb[0].mxu0
  %v2013 = vadd.f32 0.0, %v2012
  %v2014 = vpop.f32.mrb[0].mxu0
  %v2015 = vpop.f32.mrb[0].mxu0
  %v2016 = vadd.f32 0.0, %v2015
  %v2017 = vpop.f32.mrb[0].mxu0
  %2018 = vmatprep.mubr.bf16.mxu0 0
  %2019 = vmatmul.mubr.bf16.gmra.mrb[0].mxu0 %v1506
  %v2020 = vpop.f32.mrb[0].mxu0
  %v2021 = vadd.f32 0.0, %v2020
  %v2022 = vpop.f32.mrb[0].mxu0
  %v2023 = vpop.f32.mrb[0].mxu0
  %v2024 = vadd.f32 0.0, %v2023
  %v2025 = vpop.f32.mrb[0].mxu0
  %2026 = vmatprep.mubr.bf16.mxu0 0
  %2027 = vmatmul.mubr.bf16.gmra.mrb[0].mxu0 %v1509
  %v2028 = vpop.f32.mrb[0].mxu0
  %v2029 = vadd.f32 0.0, %v2028
  %v2030 = vpop.f32.mrb[0].mxu0
  %v2031 = vpop.f32.mrb[0].mxu0
  %v2032 = vadd.f32 0.0, %v2031
  %v2033 = vpop.f32.mrb[0].mxu0
  %2034 = vmatprep.mubr.bf16.mxu0 0
  %2035 = vmatmul.mubr.bf16.gmra.mrb[0].mxu0 %v1512
  %v2036 = vpop.f32.mrb[0].mxu0
  %v2037 = vadd.f32 0.0, %v2036
  %v2038 = vpop.f32.mrb[0].mxu0
  %v2039 = vpop.f32.mrb[0].mxu0
  %v2040 = vadd.f32 0.0, %v2039
  %v2041 = vpop.f32.mrb[0].mxu0
  %2042 = vmatprep.mubr.bf16.mxu0 0
  %2043 = vmatmul.mubr.bf16.gmra.mrb[0].mxu0 %v1515
  %v2044 = vpop.f32.mrb[0].mxu0
  %v2045 = vadd.f32 0.0, %v2044
  %v2046 = vpop.f32.mrb[0].mxu0
  %v2047 = vpop.f32.mrb[0].mxu0
  %v2048 = vadd.f32 0.0, %v2047
  %v2049 = vpop.f32.mrb[0].mxu0
  %2050 = vmatprep.mubr.bf16.mxu0 0
  %2051 = vmatmul.mubr.bf16.gmra.mrb[0].mxu0 %v1518
  %v2052 = vpop.f32.mrb[0].mxu0
  %v2053 = vadd.f32 0.0, %v2052
  %v2054 = vpop.f32.mrb[0].mxu0
  %v2055 = vpop.f32.mrb[0].mxu0
  %v2056 = vadd.f32 0.0, %v2055
  %v2057 = vpop.f32.mrb[0].mxu0
  %2058 = vmatprep.mubr.bf16.mxu0 0
  %2059 = vmatmul.mubr.bf16.gmra.mrb[0].mxu0 %v1521
  %v2060 = vpop.f32.mrb[0].mxu0
  %v2061 = vadd.f32 0.0, %v2060
  %v2062 = vpop.f32.mrb[0].mxu0
  %v2063 = vpop.f32.mrb[0].mxu0
  %v2064 = vadd.f32 0.0, %v2063
  %v2065 = vpop.f32.mrb[0].mxu0
  %2066 = vmatprep.mubr.bf16.mxu0 0
  %2067 = vmatmul.mubr.bf16.gmra.mrb[0].mxu0 %v1524
  %v2068 = vpop.f32.mrb[0].mxu0
  %v2069 = vadd.f32 0.0, %v2068
  %v2070 = vpop.f32.mrb[0].mxu0
  %v2071 = vpop.f32.mrb[0].mxu0
  %v2072 = vadd.f32 0.0, %v2071
  %v2073 = vpop.f32.mrb[0].mxu0
  %2074 = vmatprep.mubr.bf16.mxu0 0
  %2075 = vmatmul.mubr.bf16.gmra.mrb[0].mxu0 %v1527
  %v2076 = vpop.f32.mrb[0].mxu0
  %v2077 = vadd.f32 0.0, %v2076
  %v2078 = vpop.f32.mrb[0].mxu0
  %v2079 = vpop.f32.mrb[0].mxu0
  %v2080 = vadd.f32 0.0, %v2079
  %v2081 = vpop.f32.mrb[0].mxu0
  %2082 = vmatprep.mubr.bf16.mxu0 0
  %2083 = vmatmul.mubr.bf16.gmra.mrb[0].mxu0 %v1530
  %v2084 = vpop.f32.mrb[0].mxu0
  %v2085 = vadd.f32 0.0, %v2084
  %v2086 = vpop.f32.mrb[0].mxu0
  %v2087 = vpop.f32.mrb[0].mxu0
  %v2088 = vadd.f32 0.0, %v2087
  %v2089 = vpop.f32.mrb[0].mxu0
  %2090 = vmatprep.mubr.bf16.mxu0 0
  %2091 = vmatmul.mubr.bf16.gmra.mrb[0].mxu0 %v1533
  %v2092 = vpop.f32.mrb[0].mxu0
  %v2093 = vadd.f32 0.0, %v2092
  %v2094 = vpop.f32.mrb[0].mxu0
  %v2095 = vpop.f32.mrb[0].mxu0
  %v2096 = vadd.f32 0.0, %v2095
  %v2097 = vpop.f32.mrb[0].mxu0
  %2098 = vmatprep.mubr.bf16.mxu0 0
  %2099 = vmatmul.mubr.bf16.gmra.mrb[0].mxu0 %v1536
  %v2100 = vpop.f32.mrb[0].mxu0
  %v2101 = vadd.f32 0.0, %v2100
  %v2102 = vpop.f32.mrb[0].mxu0
  %v2103 = vpop.f32.mrb[0].mxu0
  %v2104 = vadd.f32 0.0, %v2103
  %v2105 = vpop.f32.mrb[0].mxu0
  %2106 = vmatprep.mubr.bf16.mxu0 0
  %2107 = vmatmul.mubr.bf16.gmra.mrb[0].mxu0 %v1539
  %v2108 = vpop.f32.mrb[0].mxu0
  %v2109 = vadd.f32 0.0, %v2108
  %v2110 = vpop.f32.mrb[0].mxu0
  %v2111 = vpop.f32.mrb[0].mxu0
  %v2112 = vadd.f32 0.0, %v2111
  %v2113 = vpop.f32.mrb[0].mxu0
  %2114 = vmatprep.mubr.bf16.mxu0 0
  %2115 = vmatmul.mubr.bf16.gmra.mrb[0].mxu0 %v1542
  %v2116 = vpop.f32.mrb[0].mxu0
  %v2117 = vadd.f32 0.0, %v2116
  %v2118 = vpop.f32.mrb[0].mxu0
  %v2119 = vpop.f32.mrb[0].mxu0
  %v2120 = vadd.f32 0.0, %v2119
  %v2121 = vpop.f32.mrb[0].mxu0
  %2122 = vmatprep.mubr.bf16.mxu0 0
  %2123 = vmatmul.mubr.bf16.gmra.mrb[0].mxu0 %v1545
  %v2124 = vpop.f32.mrb[0].mxu0
  %v2125 = vadd.f32 0.0, %v2124
  %v2126 = vpop.f32.mrb[0].mxu0
  %v2127 = vpop.f32.mrb[0].mxu0
  %v2128 = vadd.f32 0.0, %v2127
  %v2129 = vpop.f32.mrb[0].mxu0
  %2130 = vmatprep.mubr.bf16.mxu0 0
  %2131 = vmatmul.mubr.bf16.gmra.mrb[0].mxu0 %v1548
  %v2132 = vpop.f32.mrb[0].mxu0
  %v2133 = vadd.f32 0.0, %v2132
  %v2134 = vpop.f32.mrb[0].mxu0
  %v2135 = vpop.f32.mrb[0].mxu0
  %v2136 = vadd.f32 0.0, %v2135
  %v2137 = vpop.f32.mrb[0].mxu0
  %2138 = vmatprep.mubr.bf16.mxu0 0
  %2139 = vmatmul.mubr.bf16.gmra.mrb[0].mxu0 %v1551
  %v2140 = vpop.f32.mrb[0].mxu0
  %v2141 = vadd.f32 0.0, %v2140
  %v2142 = vpop.f32.mrb[0].mxu0
  %v2143 = vpop.f32.mrb[0].mxu0
  %v2144 = vadd.f32 0.0, %v2143
  %v2145 = vpop.f32.mrb[0].mxu0
  %2146 = vmatprep.mubr.bf16.mxu0 0
  %2147 = vmatmul.mubr.bf16.gmra.mrb[0].mxu0 %v1554
  %v2148 = vpop.f32.mrb[0].mxu0
  %v2149 = vadd.f32 0.0, %v2148
  %v2150 = vpop.f32.mrb[0].mxu0
  %v2151 = vpop.f32.mrb[0].mxu0
  %v2152 = vadd.f32 0.0, %v2151
  %v2153 = vpop.f32.mrb[0].mxu0
  %2154 = vmatprep.mubr.bf16.mxu0 0
  %2155 = vmatmul.mubr.bf16.gmra.mrb[0].mxu0 %v1557
  %v2156 = vpop.f32.mrb[0].mxu0
  %v2157 = vadd.f32 0.0, %v2156
  %v2158 = vpop.f32.mrb[0].mxu0
  %v2159 = vpop.f32.mrb[0].mxu0
  %v2160 = vadd.f32 0.0, %v2159
  %v2161 = vpop.f32.mrb[0].mxu0
  %2162 = vmatprep.mubr.bf16.mxu0 0
  %2163 = vmatmul.mubr.bf16.gmra.mrb[0].mxu0 %v1560
  %v2164 = vpop.f32.mrb[0].mxu0
  %v2165 = vadd.f32 0.0, %v2164
  %v2166 = vpop.f32.mrb[0].mxu0
  %v2167 = vpop.f32.mrb[0].mxu0
  %v2168 = vadd.f32 0.0, %v2167
  %v2169 = vpop.f32.mrb[0].mxu0
  %2170 = vmatprep.mubr.bf16.mxu0 0
  %2171 = vmatmul.mubr.bf16.gmra.mrb[0].mxu0 %v1563
  %v2172 = vpop.f32.mrb[0].mxu0
  %v2173 = vadd.f32 0.0, %v2172
  %v2174 = vpop.f32.mrb[0].mxu0
  %v2175 = vpop.f32.mrb[0].mxu0
  %v2176 = vadd.f32 0.0, %v2175
  %v2177 = vpop.f32.mrb[0].mxu0
  %2178 = vmatprep.mubr.bf16.mxu0 0
  %2179 = vmatmul.mubr.bf16.gmra.mrb[0].mxu0 %v1566
  %v2180 = vpop.f32.mrb[0].mxu0
  %v2181 = vadd.f32 0.0, %v2180
  %v2182 = vpop.f32.mrb[0].mxu0
  %v2183 = vpop.f32.mrb[0].mxu0
  %v2184 = vadd.f32 0.0, %v2183
  %v2185 = vpop.f32.mrb[0].mxu0
  %2186 = vmatprep.mubr.bf16.mxu0 0
  %2187 = vmatmul.mubr.bf16.gmra.mrb[0].mxu0 %v1569
  %v2188 = vpop.f32.mrb[0].mxu0
  %v2189 = vadd.f32 0.0, %v2188
  %v2190 = vpop.f32.mrb[0].mxu0
  %v2191 = vpop.f32.mrb[0].mxu0
  %v2192 = vadd.f32 0.0, %v2191
  %v2193 = vpop.f32.mrb[0].mxu0
  %2194 = vmatprep.mubr.bf16.mxu0 0
  %2195 = vmatmul.mubr.bf16.gmra.mrb[0].mxu0 %v1572
  %v2196 = vpop.f32.mrb[0].mxu0
  %v2197 = vadd.f32 0.0, %v2196
  %v2198 = vpop.f32.mrb[0].mxu0
  %v2199 = vpop.f32.mrb[0].mxu0
  %v2200 = vadd.f32 0.0, %v2199
  %v2201 = vpop.f32.mrb[0].mxu0
  %2202 = vmatprep.mubr.bf16.mxu0 0
  %2203 = vmatmul.mubr.bf16.gmra.mrb[0].mxu0 %v1575
  %v2204 = vpop.f32.mrb[0].mxu0
  %v2205 = vadd.f32 0.0, %v2204
  %v2206 = vpop.f32.mrb[0].mxu0
  %v2207 = vpop.f32.mrb[0].mxu0
  %v2208 = vadd.f32 0.0, %v2207
  %v2209 = vpop.f32.mrb[0].mxu0
  %2210 = vmatprep.mubr.bf16.mxu0 0
  %2211 = vmatmul.mubr.bf16.gmra.mrb[0].mxu0 %v1578
  %v2212 = vpop.f32.mrb[0].mxu0
  %v2213 = vadd.f32 0.0, %v2212
  %v2214 = vpop.f32.mrb[0].mxu0
  %v2215 = vpop.f32.mrb[0].mxu0
  %v2216 = vadd.f32 0.0, %v2215
  %v2217 = vpop.f32.mrb[0].mxu0
  %2218 = vmatprep.mubr.bf16.mxu0 0
  %2219 = vmatmul.mubr.bf16.gmra.mrb[0].mxu0 %v1581
  %v2220 = vpop.f32.mrb[0].mxu0
  %v2221 = vadd.f32 0.0, %v2220
  %v2222 = vpop.f32.mrb[0].mxu0
  %v2223 = vpop.f32.mrb[0].mxu0
  %v2224 = vadd.f32 0.0, %v2223
  %v2225 = vpop.f32.mrb[0].mxu0
  %2226 = vmatprep.mubr.bf16.mxu0 0
  %2227 = vmatmul.mubr.bf16.gmra.mrb[0].mxu0 %v1584
  %v2228 = vpop.f32.mrb[0].mxu0
  %v2229 = vadd.f32 0.0, %v2228
  %v2230 = vpop.f32.mrb[0].mxu0
  %v2231 = vpop.f32.mrb[0].mxu0
  %v2232 = vadd.f32 0.0, %v2231
  %v2233 = vpop.f32.mrb[0].mxu0
  %2234 = vmatprep.mubr.bf16.mxu0 0
  %2235 = vmatmul.mubr.bf16.gmra.mrb[0].mxu0 %v1587
  %v2236 = vpop.f32.mrb[0].mxu0
  %v2237 = vadd.f32 0.0, %v2236
  %v2238 = vpop.f32.mrb[0].mxu0
  %v2239 = vpop.f32.mrb[0].mxu0
  %v2240 = vadd.f32 0.0, %v2239
  %v2241 = vpop.f32.mrb[0].mxu0
  %2242 = vmatprep.mubr.bf16.mxu0 0
  %2243 = vmatmul.mubr.bf16.gmra.mrb[0].mxu0 %v1590
  %v2244 = vpop.f32.mrb[0].mxu0
  %v2245 = vadd.f32 0.0, %v2244
  %v2246 = vpop.f32.mrb[0].mxu0
  %v2247 = vpop.f32.mrb[0].mxu0
  %v2248 = vadd.f32 0.0, %v2247
  %v2249 = vpop.f32.mrb[0].mxu0
  %2250 = vmatprep.mubr.bf16.mxu0 0
  %2251 = vmatmul.mubr.bf16.gmra.mrb[0].mxu0 %v1593
  %v2252 = vpop.f32.mrb[0].mxu0
  %v2253 = vadd.f32 0.0, %v2252
  %v2254 = vpop.f32.mrb[0].mxu0
  %v2255 = vpop.f32.mrb[0].mxu0
  %v2256 = vadd.f32 0.0, %v2255
  %v2257 = vpop.f32.mrb[0].mxu0
  %2258 = vmatprep.mubr.bf16.mxu0 0
  %2259 = vmatmul.mubr.bf16.gmra.mrb[0].mxu0 %v1596
  %v2260 = vpop.f32.mrb[0].mxu0
  %v2261 = vadd.f32 0.0, %v2260
  %v2262 = vpop.f32.mrb[0].mxu0
  %v2263 = vpop.f32.mrb[0].mxu0
  %v2264 = vadd.f32 0.0, %v2263
  %v2265 = vpop.f32.mrb[0].mxu0
  %2266 = vmatprep.mubr.bf16.mxu0 0
  %2267 = vmatmul.mubr.bf16.gmra.mrb[0].mxu0 %v1599
  %v2268 = vpop.f32.mrb[0].mxu0
  %v2269 = vadd.f32 0.0, %v2268
  %v2270 = vpop.f32.mrb[0].mxu0
  %v2271 = vpop.f32.mrb[0].mxu0
  %v2272 = vadd.f32 0.0, %v2271
  %v2273 = vpop.f32.mrb[0].mxu0
  %2274 = vmatprep.mubr.bf16.mxu0 0
  %2275 = vmatmul.mubr.bf16.gmra.mrb[0].mxu0 %v1602
  %v2276 = vpop.f32.mrb[0].mxu0
  %v2277 = vadd.f32 0.0, %v2276
  %v2278 = vpop.f32.mrb[0].mxu0
  %v2279 = vpop.f32.mrb[0].mxu0
  %v2280 = vadd.f32 0.0, %v2279
  %v2281 = vpop.f32.mrb[0].mxu0
  %2282 = vmatprep.mubr.bf16.mxu0 0
  %2283 = vmatmul.mubr.bf16.gmra.mrb[0].mxu0 %v1605
  %v2284 = vpop.f32.mrb[0].mxu0
  %v2285 = vadd.f32 0.0, %v2284
  %v2286 = vpop.f32.mrb[0].mxu0
  %v2287 = vpop.f32.mrb[0].mxu0
  %v2288 = vadd.f32 0.0, %v2287
  %v2289 = vpop.f32.mrb[0].mxu0
  %2290 = vmatprep.mubr.bf16.mxu0 0
  %2291 = vmatmul.mubr.bf16.gmra.mrb[0].mxu0 %v1608
  %v2292 = vpop.f32.mrb[0].mxu0
  %v2293 = vadd.f32 0.0, %v2292
  %v2294 = vpop.f32.mrb[0].mxu0
  %v2295 = vpop.f32.mrb[0].mxu0
  %v2296 = vadd.f32 0.0, %v2295
  %v2297 = vpop.f32.mrb[0].mxu0
  %2298 = vmatprep.mubr.bf16.mxu0 0
  %2299 = vmatmul.mubr.bf16.gmra.mrb[0].mxu0 %v1611
  %v2300 = vpop.f32.mrb[0].mxu0
  %v2301 = vadd.f32 0.0, %v2300
  %v2302 = vpop.f32.mrb[0].mxu0
  %v2303 = vpop.f32.mrb[0].mxu0
  %v2304 = vadd.f32 0.0, %v2303
  %v2305 = vpop.f32.mrb[0].mxu0
  %2306 = vmatprep.mubr.bf16.mxu0 0
  %2307 = vmatmul.mubr.bf16.gmra.mrb[0].mxu0 %v1614
  %v2308 = vpop.f32.mrb[0].mxu0
  %v2309 = vadd.f32 0.0, %v2308
  %v2310 = vpop.f32.mrb[0].mxu0
  %v2311 = vpop.f32.mrb[0].mxu0
  %v2312 = vadd.f32 0.0, %v2311
  %v2313 = vpop.f32.mrb[0].mxu0
  %2314 = vmatprep.mubr.bf16.mxu0 0
  %2315 = vmatmul.mubr.bf16.gmra.mrb[0].mxu0 %v1617
  %v2316 = vpop.f32.mrb[0].mxu0
  %v2317 = vadd.f32 0.0, %v2316
  %v2318 = vpop.f32.mrb[0].mxu0
  %v2319 = vpop.f32.mrb[0].mxu0
  %v2320 = vadd.f32 0.0, %v2319
  %v2321 = vpop.f32.mrb[0].mxu0
  %2322 = vmatprep.mubr.bf16.mxu0 0
  %2323 = vmatmul.mubr.bf16.gmra.mrb[0].mxu0 %v1620
  %v2324 = vpop.f32.mrb[0].mxu0
  %v2325 = vadd.f32 0.0, %v2324
  %v2326 = vpop.f32.mrb[0].mxu0
  %v2327 = vpop.f32.mrb[0].mxu0
  %v2328 = vadd.f32 0.0, %v2327
  %v2329 = vpop.f32.mrb[0].mxu0
  %2330 = vmatprep.mubr.bf16.mxu0 0
  %2331 = vmatmul.mubr.bf16.gmra.mrb[0].mxu0 %v1623
  %v2332 = vpop.f32.mrb[0].mxu0
  %v2333 = vadd.f32 0.0, %v2332
  %v2334 = vpop.f32.mrb[0].mxu0
  %v2335 = vpop.f32.mrb[0].mxu0
  %v2336 = vadd.f32 0.0, %v2335
  %v2337 = vpop.f32.mrb[0].mxu0
  %2338 = vmatprep.mubr.bf16.mxu0 0
  %2339 = vmatmul.mubr.bf16.gmra.mrb[0].mxu0 %v1626
  %v2340 = vpop.f32.mrb[0].mxu0
  %v2341 = vadd.f32 0.0, %v2340
  %v2342 = vpop.f32.mrb[0].mxu0
  %v2343 = vpop.f32.mrb[0].mxu0
  %v2344 = vadd.f32 0.0, %v2343
  %v2345 = vpop.f32.mrb[0].mxu0
  %2346 = vmatprep.mubr.bf16.mxu0 0
  %2347 = vmatmul.mubr.bf16.gmra.mrb[0].mxu0 %v1629
  %v2348 = vpop.f32.mrb[0].mxu0
  %v2349 = vadd.f32 0.0, %v2348
  %v2350 = vpop.f32.mrb[0].mxu0
  %v2351 = vpop.f32.mrb[0].mxu0
  %v2352 = vadd.f32 0.0, %v2351
  %v2353 = vpop.f32.mrb[0].mxu0
  %2354 = vmatprep.mubr.bf16.mxu0 0
  %2355 = vmatmul.mubr.bf16.gmra.mrb[0].mxu0 %v1632
  %v2356 = vpop.f32.mrb[0].mxu0
  %v2357 = vadd.f32 0.0, %v2356
  %v2358 = vpop.f32.mrb[0].mxu0
  %v2359 = vpop.f32.mrb[0].mxu0
  %v2360 = vadd.f32 0.0, %v2359
  %v2361 = vpop.f32.mrb[0].mxu0
  %2362 = vmatprep.mubr.bf16.mxu0 0
  %2363 = vmatmul.mubr.bf16.gmra.mrb[0].mxu0 %v1635
  %v2364 = vpop.f32.mrb[0].mxu0
  %v2365 = vadd.f32 0.0, %v2364
  %v2366 = vpop.f32.mrb[0].mxu0
  %v2367 = vpop.f32.mrb[0].mxu0
  %v2368 = vadd.f32 0.0, %v2367
  %v2369 = vpop.f32.mrb[0].mxu0
  %2370 = vmatprep.mubr.bf16.mxu0 0
  %2371 = vmatmul.mubr.bf16.gmra.mrb[0].mxu0 %v1638
  %v2372 = vpop.f32.mrb[0].mxu0
  %v2373 = vadd.f32 0.0, %v2372
  %v2374 = vpop.f32.mrb[0].mxu0
  %v2375 = vpop.f32.mrb[0].mxu0
  %v2376 = vadd.f32 0.0, %v2375
  %v2377 = vpop.f32.mrb[0].mxu0
  %2378 = vmatprep.mubr.bf16.mxu0 0
  %2379 = vmatmul.mubr.bf16.gmra.mrb[0].mxu0 %v1641
  %v2380 = vpop.f32.mrb[0].mxu0
  %v2381 = vadd.f32 0.0, %v2380
  %v2382 = vpop.f32.mrb[0].mxu0
  %v2383 = vpop.f32.mrb[0].mxu0
  %v2384 = vadd.f32 0.0, %v2383
  %v2385 = vpop.f32.mrb[0].mxu0
  %2386 = vmatprep.mubr.bf16.mxu0 0
  %2387 = vmatmul.mubr.bf16.gmra.mrb[0].mxu0 %v1644
  %v2388 = vpop.f32.mrb[0].mxu0
  %v2389 = vadd.f32 0.0, %v2388
  %v2390 = vpop.f32.mrb[0].mxu0
  %v2391 = vpop.f32.mrb[0].mxu0
  %v2392 = vadd.f32 0.0, %v2391
  %v2393 = vpop.f32.mrb[0].mxu0
  %2394 = vmatprep.mubr.bf16.mxu0 0
  %2395 = vmatmul.mubr.bf16.gmra.mrb[0].mxu0 %v1647
  %v2396 = vpop.f32.mrb[0].mxu0
  %v2397 = vadd.f32 0.0, %v2396
  %v2398 = vpop.f32.mrb[0].mxu0
  %v2399 = vpop.f32.mrb[0].mxu0
  %v2400 = vadd.f32 0.0, %v2399
  %v2401 = vpop.f32.mrb[0].mxu0
  %2402 = vmatprep.mubr.bf16.mxu0 0
  %2403 = vmatmul.mubr.bf16.gmra.mrb[0].mxu0 %v1650
  %v2404 = vpop.f32.mrb[0].mxu0
  %v2405 = vadd.f32 0.0, %v2404
  %v2406 = vpop.f32.mrb[0].mxu0
  %v2407 = vpop.f32.mrb[0].mxu0
  %v2408 = vadd.f32 0.0, %v2407
  %v2409 = vpop.f32.mrb[0].mxu0
  %2410 = vmatprep.mubr.bf16.mxu0 0
  %2411 = vmatmul.mubr.bf16.gmra.mrb[0].mxu0 %v1653
  %v2412 = vpop.f32.mrb[0].mxu0
  %v2413 = vadd.f32 0.0, %v2412
  %v2414 = vpop.f32.mrb[0].mxu0
  %v2415 = vpop.f32.mrb[0].mxu0
  %v2416 = vadd.f32 0.0, %v2415
  %v2417 = vpop.f32.mrb[0].mxu0
  %2418 = vmatprep.mubr.bf16.mxu0 0
  %2419 = vmatmul.mubr.bf16.gmra.mrb[0].mxu0 %v1656
  %v2420 = vpop.f32.mrb[0].mxu0
  %v2421 = vadd.f32 0.0, %v2420
  %v2422 = vpop.f32.mrb[0].mxu0
  %v2423 = vpop.f32.mrb[0].mxu0
  %v2424 = vadd.f32 0.0, %v2423
  %v2425 = vpop.f32.mrb[0].mxu0
  %2426 = vmatprep.mubr.bf16.mxu0 0
  %2427 = vmatmul.mubr.bf16.gmra.mrb[0].mxu0 %v1659
  %v2428 = vpop.f32.mrb[0].mxu0
  %v2429 = vadd.f32 0.0, %v2428
  %v2430 = vpop.f32.mrb[0].mxu0
  %v2431 = vpop.f32.mrb[0].mxu0
  %v2432 = vadd.f32 0.0, %v2431
  %v2433 = vpop.f32.mrb[0].mxu0
  %2434 = vmatprep.mubr.bf16.mxu0 0
  %2435 = vmatmul.mubr.bf16.gmra.mrb[0].mxu0 %v1662
  %v2436 = vpop.f32.mrb[0].mxu0
  %v2437 = vadd.f32 0.0, %v2436
  %v2438 = vpop.f32.mrb[0].mxu0
  %v2439 = vpop.f32.mrb[0].mxu0
  %v2440 = vadd.f32 0.0, %v2439
  %v2441 = vpop.f32.mrb[0].mxu0
  %2442 = vmatprep.mubr.bf16.mxu0 0
  %2443 = vmatmul.mubr.bf16.gmra.mrb[0].mxu0 %v1665
  %v2444 = vpop.f32.mrb[0].mxu0
  %v2445 = vadd.f32 0.0, %v2444
  %v2446 = vpop.f32.mrb[0].mxu0
  %v2447 = vpop.f32.mrb[0].mxu0
  %v2448 = vadd.f32 0.0, %v2447
  %v2449 = vpop.f32.mrb[0].mxu0
  %2450 = vmatprep.mubr.bf16.mxu0 0
  %2451 = vmatmul.mubr.bf16.gmra.mrb[0].mxu0 %v1668
  %v2452 = vpop.f32.mrb[0].mxu0
  %v2453 = vadd.f32 0.0, %v2452
  %v2454 = vpop.f32.mrb[0].mxu0
  %v2455 = vpop.f32.mrb[0].mxu0
  %v2456 = vadd.f32 0.0, %v2455
  %v2457 = vpop.f32.mrb[0].mxu0
  %2458 = vmatprep.mubr.bf16.mxu0 0
  %2459 = vmatmul.mubr.bf16.gmra.mrb[0].mxu0 %v1671
  %v2460 = vpop.f32.mrb[0].mxu0
  %v2461 = vadd.f32 0.0, %v2460
  %v2462 = vpop.f32.mrb[0].mxu0
  %v2463 = vpop.f32.mrb[0].mxu0
  %v2464 = vadd.f32 0.0, %v2463
  %v2465 = vpop.f32.mrb[0].mxu0
  %2466 = vmatprep.mubr.bf16.mxu0 0
  %2467 = vmatmul.mubr.bf16.gmra.mrb[0].mxu0 %v1674
  %v2468 = vpop.f32.mrb[0].mxu0
  %v2469 = vadd.f32 0.0, %v2468
  %v2470 = vpop.f32.mrb[0].mxu0
  %v2471 = vpop.f32.mrb[0].mxu0
  %v2472 = vadd.f32 0.0, %v2471
  %v2473 = vpop.f32.mrb[0].mxu0
  %2474 = vmatprep.mubr.bf16.mxu0 0
  %2475 = vmatmul.mubr.bf16.gmra.mrb[0].mxu0 %v1677
  %v2476 = vpop.f32.mrb[0].mxu0
  %v2477 = vadd.f32 0.0, %v2476
  %v2478 = vpop.f32.mrb[0].mxu0
  %v2479 = vpop.f32.mrb[0].mxu0
  %v2480 = vadd.f32 0.0, %v2479
  %v2481 = vpop.f32.mrb[0].mxu0
  %2482 = vmatprep.mubr.bf16.mxu0 0
  %2483 = vmatmul.mubr.bf16.gmra.mrb[0].mxu0 %v1680
  %v2484 = vpop.f32.mrb[0].mxu0
  %v2485 = vadd.f32 0.0, %v2484
  %v2486 = vpop.f32.mrb[0].mxu0
  %v2487 = vpop.f32.mrb[0].mxu0
  %v2488 = vadd.f32 0.0, %v2487
  %v2489 = vpop.f32.mrb[0].mxu0
  %2490 = vmatprep.mubr.bf16.mxu0 0
  %2491 = vmatmul.mubr.bf16.gmra.mrb[0].mxu0 %v1683
  %v2492 = vpop.f32.mrb[0].mxu0
  %v2493 = vadd.f32 0.0, %v2492
  %v2494 = vpop.f32.mrb[0].mxu0
  %v2495 = vpop.f32.mrb[0].mxu0
  %v2496 = vadd.f32 0.0, %v2495
  %v2497 = vpop.f32.mrb[0].mxu0
  %2498 = vmatprep.mubr.bf16.mxu0 0
  %2499 = vmatmul.mubr.bf16.gmra.mrb[0].mxu0 %v1686
  %v2500 = vpop.f32.mrb[0].mxu0
  %v2501 = vadd.f32 0.0, %v2500
  %v2502 = vpop.f32.mrb[0].mxu0
  %v2503 = vpop.f32.mrb[0].mxu0
  %v2504 = vadd.f32 0.0, %v2503
  %v2505 = vpop.f32.mrb[0].mxu0
  %2506 = vmatprep.mubr.bf16.mxu0 0
  %2507 = vmatmul.mubr.bf16.gmra.mrb[0].mxu0 %v1689
  %v2508 = vpop.f32.mrb[0].mxu0
  %v2509 = vadd.f32 0.0, %v2508
  %v2510 = vpop.f32.mrb[0].mxu0
  %v2511 = vpop.f32.mrb[0].mxu0
  %v2512 = vadd.f32 0.0, %v2511
  %v2513 = vpop.f32.mrb[0].mxu0
  %2514 = vmatprep.mubr.bf16.mxu0 0
  %2515 = vmatmul.mubr.bf16.gmra.mrb[0].mxu0 %v1692
  %v2516 = vpop.f32.mrb[0].mxu0
  %v2517 = vadd.f32 0.0, %v2516
  %v2518 = vpop.f32.mrb[0].mxu0
  %v2519 = vpop.f32.mrb[0].mxu0
  %v2520 = vadd.f32 0.0, %v2519
  %v2521 = vpop.f32.mrb[0].mxu0
  %2522 = vmatprep.mubr.bf16.mxu0 0
  %2523 = vmatmul.mubr.bf16.gmra.mrb[0].mxu0 %v1695
  %v2524 = vpop.f32.mrb[0].mxu0
  %v2525 = vadd.f32 0.0, %v2524
  %v2526 = vpop.f32.mrb[0].mxu0
  %v2527 = vpop.f32.mrb[0].mxu0
  %v2528 = vadd.f32 0.0, %v2527
  %v2529 = vpop.f32.mrb[0].mxu0
  %2530 = vmatprep.mubr.bf16.mxu0 0
  %2531 = vmatmul.mubr.bf16.gmra.mrb[0].mxu0 %v1698
  %v2532 = vpop.f32.mrb[0].mxu0
  %v2533 = vadd.f32 0.0, %v2532
  %v2534 = vpop.f32.mrb[0].mxu0
  %v2535 = vpop.f32.mrb[0].mxu0
  %v2536 = vadd.f32 0.0, %v2535
  %v2537 = vpop.f32.mrb[0].mxu0
  %2538 = vmatprep.mubr.bf16.mxu0 0
  %2539 = vmatmul.mubr.bf16.gmra.mrb[0].mxu0 %v1701
  %v2540 = vpop.f32.mrb[0].mxu0
  %v2541 = vadd.f32 0.0, %v2540
  %v2542 = vpop.f32.mrb[0].mxu0
  %v2543 = vpop.f32.mrb[0].mxu0
  %v2544 = vadd.f32 0.0, %v2543
  %v2545 = vpop.f32.mrb[0].mxu0
  %2546 = vmatprep.mubr.bf16.mxu0 0
  %2547 = vmatmul.mubr.bf16.gmra.mrb[0].mxu0 %v1704
  %v2548 = vpop.f32.mrb[0].mxu0
  %v2549 = vadd.f32 0.0, %v2548
  %v2550 = vpop.f32.mrb[0].mxu0
  %v2551 = vpop.f32.mrb[0].mxu0
  %v2552 = vadd.f32 0.0, %v2551
  %v2553 = vpop.f32.mrb[0].mxu0
  %2554 = vmatprep.mubr.bf16.mxu0 0
  %2555 = vmatmul.mubr.bf16.gmra.mrb[0].mxu0 %v1707
  %v2556 = vpop.f32.mrb[0].mxu0
  %v2557 = vadd.f32 0.0, %v2556
  %v2558 = vpop.f32.mrb[0].mxu0
  %v2559 = vpop.f32.mrb[0].mxu0
  %v2560 = vadd.f32 0.0, %v2559
  %v2561 = vpop.f32.mrb[0].mxu0
  %2562 = vmatprep.mubr.bf16.mxu0 0
  %2563 = vmatmul.mubr.bf16.gmra.mrb[0].mxu0 %v1710
  %v2564 = vpop.f32.mrb[0].mxu0
  %v2565 = vadd.f32 0.0, %v2564
  %v2566 = vpop.f32.mrb[0].mxu0
  %v2567 = vpop.f32.mrb[0].mxu0
  %v2568 = vadd.f32 0.0, %v2567
  %v2569 = vpop.f32.mrb[0].mxu0
  %2570 = vmatprep.mubr.bf16.mxu0 0
  %2571 = vmatmul.mubr.bf16.gmra.mrb[0].mxu0 %v1713
  %v2572 = vpop.f32.mrb[0].mxu0
  %v2573 = vadd.f32 0.0, %v2572
  %v2574 = vpop.f32.mrb[0].mxu0
  %v2575 = vpop.f32.mrb[0].mxu0
  %v2576 = vadd.f32 0.0, %v2575
  %v2577 = vpop.f32.mrb[0].mxu0
  %2578 = vmatprep.mubr.bf16.mxu0 0
  %2579 = vmatmul.mubr.bf16.gmra.mrb[0].mxu0 %v1716
  %v2580 = vpop.f32.mrb[0].mxu0
  %v2581 = vadd.f32 0.0, %v2580
  %v2582 = vpop.f32.mrb[0].mxu0
  %v2583 = vpop.f32.mrb[0].mxu0
  %v2584 = vadd.f32 0.0, %v2583
  %v2585 = vpop.f32.mrb[0].mxu0
  %2586 = vmatprep.mubr.bf16.mxu0 0
  %2587 = vmatmul.mubr.bf16.gmra.mrb[0].mxu0 %v1719
  %v2588 = vpop.f32.mrb[0].mxu0
  %v2589 = vadd.f32 0.0, %v2588
  %v2590 = vpop.f32.mrb[0].mxu0
  %v2591 = vpop.f32.mrb[0].mxu0
  %v2592 = vadd.f32 0.0, %v2591
  %v2593 = vpop.f32.mrb[0].mxu0
  %2594 = vmatprep.mubr.bf16.mxu0 0
  %2595 = vmatmul.mubr.bf16.gmra.mrb[0].mxu0 %v1722
  %v2596 = vpop.f32.mrb[0].mxu0
  %v2597 = vadd.f32 0.0, %v2596
  %v2598 = vpop.f32.mrb[0].mxu0
  %v2599 = vpop.f32.mrb[0].mxu0
  %v2600 = vadd.f32 0.0, %v2599
  %v2601 = vpop.f32.mrb[0].mxu0
  %2602 = vmatprep.mubr.bf16.mxu0 0
  %2603 = vmatmul.mubr.bf16.gmra.mrb[0].mxu0 %v1725
  %v2604 = vpop.f32.mrb[0].mxu0
  %v2605 = vadd.f32 0.0, %v2604
  %v2606 = vpop.f32.mrb[0].mxu0
  %v2607 = vpop.f32.mrb[0].mxu0
  %v2608 = vadd.f32 0.0, %v2607
  %v2609 = vpop.f32.mrb[0].mxu0
  %2610 = vmatprep.mubr.bf16.mxu0 0
  %2611 = vmatmul.mubr.bf16.gmra.mrb[0].mxu0 %v1728
  %v2612 = vpop.f32.mrb[0].mxu0
  %v2613 = vadd.f32 0.0, %v2612
  %v2614 = vpop.f32.mrb[0].mxu0
  %v2615 = vpop.f32.mrb[0].mxu0
  %v2616 = vadd.f32 0.0, %v2615
  %v2617 = vpop.f32.mrb[0].mxu0
  %2618 = vmatprep.mubr.bf16.mxu0 0
  %2619 = vmatmul.mubr.bf16.gmra.mrb[0].mxu0 %v1731
  %v2620 = vpop.f32.mrb[0].mxu0
  %v2621 = vadd.f32 0.0, %v2620
  %v2622 = vpop.f32.mrb[0].mxu0
  %v2623 = vpop.f32.mrb[0].mxu0
  %v2624 = vadd.f32 0.0, %v2623
  %v2625 = vpop.f32.mrb[0].mxu0
  %2626 = vmatprep.mubr.bf16.mxu0 0
  %2627 = vmatmul.mubr.bf16.gmra.mrb[0].mxu0 %v1734
  %v2628 = vpop.f32.mrb[0].mxu0
  %v2629 = vadd.f32 0.0, %v2628
  %v2630 = vpop.f32.mrb[0].mxu0
  %v2631 = vpop.f32.mrb[0].mxu0
  %v2632 = vadd.f32 0.0, %v2631
  %v2633 = vpop.f32.mrb[0].mxu0
  %2634 = vmatprep.mubr.bf16.mxu0 0
  %2635 = vmatmul.mubr.bf16.gmra.mrb[0].mxu0 %v1737
  %v2636 = vpop.f32.mrb[0].mxu0
  %v2637 = vadd.f32 0.0, %v2636
  %v2638 = vpop.f32.mrb[0].mxu0
  %v2639 = vpop.f32.mrb[0].mxu0
  %v2640 = vadd.f32 0.0, %v2639
  %v2641 = vpop.f32.mrb[0].mxu0
  %2642 = vmatprep.mubr.bf16.mxu0 0
  %2643 = vmatmul.mubr.bf16.gmra.mrb[0].mxu0 %v1740
  %v2644 = vpop.f32.mrb[0].mxu0
  %v2645 = vadd.f32 0.0, %v2644
  %v2646 = vpop.f32.mrb[0].mxu0
  %v2647 = vpop.f32.mrb[0].mxu0
  %v2648 = vadd.f32 0.0, %v2647
  %v2649 = vpop.f32.mrb[0].mxu0
  %2650 = vmatprep.mubr.bf16.mxu0 0
  %2651 = vmatmul.mubr.bf16.gmra.mrb[0].mxu0 %v1743
  %v2652 = vpop.f32.mrb[0].mxu0
  %v2653 = vadd.f32 0.0, %v2652
  %v2654 = vpop.f32.mrb[0].mxu0
  %v2655 = vpop.f32.mrb[0].mxu0
  %v2656 = vadd.f32 0.0, %v2655
  %v2657 = vpop.f32.mrb[0].mxu0
  %2658 = vmatprep.mubr.bf16.mxu0 0
  %2659 = vmatmul.mubr.bf16.gmra.mrb[0].mxu0 %v1746
  %v2660 = vpop.f32.mrb[0].mxu0
  %v2661 = vadd.f32 0.0, %v2660
  %v2662 = vpop.f32.mrb[0].mxu0
  %v2663 = vpop.f32.mrb[0].mxu0
  %v2664 = vadd.f32 0.0, %v2663
  %v2665 = vpop.f32.mrb[0].mxu0
  %2666 = vmatprep.mubr.bf16.mxu0 0
  %2667 = vmatmul.mubr.bf16.gmra.mrb[0].mxu0 %v1749
  %v2668 = vpop.f32.mrb[0].mxu0
  %v2669 = vadd.f32 0.0, %v2668
  %v2670 = vpop.f32.mrb[0].mxu0
  %v2671 = vpop.f32.mrb[0].mxu0
  %v2672 = vadd.f32 0.0, %v2671
  %v2673 = vpop.f32.mrb[0].mxu0
  %2674 = vmatprep.mubr.bf16.mxu0 0
  %2675 = vmatmul.mubr.bf16.gmra.mrb[0].mxu0 %v1752
  %v2676 = vpop.f32.mrb[0].mxu0
  %v2677 = vadd.f32 0.0, %v2676
  %v2678 = vpop.f32.mrb[0].mxu0
  %v2679 = vpop.f32.mrb[0].mxu0
  %v2680 = vadd.f32 0.0, %v2679
  %v2681 = vpop.f32.mrb[0].mxu0
  %2682 = vmatprep.mubr.bf16.mxu0 0
  %2683 = vmatmul.mubr.bf16.gmra.mrb[0].mxu0 %v1755
  %v2684 = vpop.f32.mrb[0].mxu0
  %v2685 = vadd.f32 0.0, %v2684
  %v2686 = vpop.f32.mrb[0].mxu0
  %v2687 = vpop.f32.mrb[0].mxu0
  %v2688 = vadd.f32 0.0, %v2687
  %v2689 = vpop.f32.mrb[0].mxu0
  %2690 = vmatprep.mubr.bf16.mxu0 0
  %2691 = vmatmul.mubr.bf16.gmra.mrb[0].mxu0 %v1758
  %v2692 = vpop.f32.mrb[0].mxu0
  %v2693 = vadd.f32 0.0, %v2692
  %v2694 = vpop.f32.mrb[0].mxu0
  %v2695 = vpop.f32.mrb[0].mxu0
  %v2696 = vadd.f32 0.0, %v2695
  %v2697 = vpop.f32.mrb[0].mxu0
  %2698 = vmatprep.mubr.bf16.mxu0 0
  %2699 = vmatmul.mubr.bf16.gmra.mrb[0].mxu0 %v1761
  %v2700 = vpop.f32.mrb[0].mxu0
  %v2701 = vadd.f32 0.0, %v2700
  %v2702 = vpop.f32.mrb[0].mxu0
  %v2703 = vpop.f32.mrb[0].mxu0
  %v2704 = vadd.f32 0.0, %v2703
  %v2705 = vpop.f32.mrb[0].mxu0
  %2706 = vmatprep.mubr.bf16.mxu0 0
  %2707 = vmatmul.mubr.bf16.gmra.mrb[0].mxu0 %v1764
  %v2708 = vpop.f32.mrb[0].mxu0
  %v2709 = vadd.f32 0.0, %v2708
  %v2710 = vpop.f32.mrb[0].mxu0
  %v2711 = vpop.f32.mrb[0].mxu0
  %v2712 = vadd.f32 0.0, %v2711
  %v2713 = vpop.f32.mrb[0].mxu0
  %2714 = vmatprep.mubr.bf16.mxu0 0
  %2715 = vmatmul.mubr.bf16.gmra.mrb[0].mxu0 %v1767
  %v2716 = vpop.f32.mrb[0].mxu0
  %v2717 = vadd.f32 0.0, %v2716
  %v2718 = vpop.f32.mrb[0].mxu0
  %v2719 = vpop.f32.mrb[0].mxu0
  %v2720 = vadd.f32 0.0, %v2719
  %v2721 = vpop.f32.mrb[0].mxu0
  %2722 = vmatprep.mubr.bf16.mxu0 0
  %2723 = vmatmul.mubr.bf16.gmra.mrb[0].mxu0 %v1770
  %v2724 = vpop.f32.mrb[0].mxu0
  %v2725 = vadd.f32 0.0, %v2724
  %v2726 = vpop.f32.mrb[0].mxu0
  %v2727 = vpop.f32.mrb[0].mxu0
  %v2728 = vadd.f32 0.0, %v2727
  %v2729 = vpop.f32.mrb[0].mxu0
  %2730 = vmatprep.mubr.bf16.mxu0 0
  %2731 = vmatmul.mubr.bf16.gmra.mrb[0].mxu0 %v1773
  %v2732 = vpop.f32.mrb[0].mxu0
  %v2733 = vadd.f32 0.0, %v2732
  %v2734 = vpop.f32.mrb[0].mxu0
  %v2735 = vpop.f32.mrb[0].mxu0
  %v2736 = vadd.f32 0.0, %v2735
  %v2737 = vpop.f32.mrb[0].mxu0
  %2738 = vmatprep.mubr.bf16.mxu0 0
  %2739 = vmatmul.mubr.bf16.gmra.mrb[0].mxu0 %v1776
  %v2740 = vpop.f32.mrb[0].mxu0
  %v2741 = vadd.f32 0.0, %v2740
  %v2742 = vpop.f32.mrb[0].mxu0
  %v2743 = vpop.f32.mrb[0].mxu0
  %v2744 = vadd.f32 0.0, %v2743
  %v2745 = vpop.f32.mrb[0].mxu0
  %2746 = vmatprep.mubr.bf16.mxu0 0
  %2747 = vmatmul.mubr.bf16.gmra.mrb[0].mxu0 %v1779
  %v2748 = vpop.f32.mrb[0].mxu0
  %v2749 = vadd.f32 0.0, %v2748
  %v2750 = vpop.f32.mrb[0].mxu0
  %v2751 = vpop.f32.mrb[0].mxu0
  %v2752 = vadd.f32 0.0, %v2751
  %v2753 = vpop.f32.mrb[0].mxu0
  %2754 = vmatprep.mubr.bf16.mxu0 0
  %2755 = vmatmul.mubr.bf16.gmra.mrb[0].mxu0 %v1782
  %v2756 = vpop.f32.mrb[0].mxu0
  %v2757 = vadd.f32 0.0, %v2756
  %v2758 = vpop.f32.mrb[0].mxu0
  %v2759 = vpop.f32.mrb[0].mxu0
  %v2760 = vadd.f32 0.0, %v2759
  %v2761 = vpop.f32.mrb[0].mxu0
  %2762 = vmatprep.mubr.bf16.mxu0 0
  %2763 = vmatmul.mubr.bf16.gmra.mrb[0].mxu0 %v1785
  %v2764 = vpop.f32.mrb[0].mxu0
  %v2765 = vadd.f32 0.0, %v2764
  %v2766 = vpop.f32.mrb[0].mxu0
  %v2767 = vpop.f32.mrb[0].mxu0
  %v2768 = vadd.f32 0.0, %v2767
  %v2769 = vpop.f32.mrb[0].mxu0
  %2770 = vmatprep.mubr.bf16.mxu0 0
  %2771 = vmatmul.mubr.bf16.gmra.mrb[0].mxu0 %v1788
  %v2772 = vpop.f32.mrb[0].mxu0
  %v2773 = vadd.f32 0.0, %v2772
  %v2774 = vpop.f32.mrb[0].mxu0
  %v2775 = vpop.f32.mrb[0].mxu0
  %v2776 = vadd.f32 0.0, %v2775
  %v2777 = vpop.f32.mrb[0].mxu0
  %2778 = vmatprep.mubr.bf16.mxu0 0
  %2779 = vmatmul.mubr.bf16.gmra.mrb[0].mxu0 %v1791
  %v2780 = vpop.f32.mrb[0].mxu0
  %v2781 = vadd.f32 0.0, %v2780
  %v2782 = vpop.f32.mrb[0].mxu0
  %v2783 = vpop.f32.mrb[0].mxu0
  %v2784 = vadd.f32 0.0, %v2783
  %v2785 = vpop.f32.mrb[0].mxu0
  %2786 = vmatprep.mubr.bf16.mxu0 0
  %2787 = vmatmul.mubr.bf16.gmra.mrb[0].mxu0 %v1794
  %v2788 = vpop.f32.mrb[0].mxu0
  %v2789 = vadd.f32 0.0, %v2788
  %v2790 = vpop.f32.mrb[0].mxu0
  %v2791 = vpop.f32.mrb[0].mxu0
  %v2792 = vadd.f32 0.0, %v2791
  %v2793 = vpop.f32.mrb[0].mxu0
  %2794 = vmatprep.mubr.bf16.mxu0 0
  %2795 = vmatmul.mubr.bf16.gmra.mrb[0].mxu0 %v1797
  %v2796 = vpop.f32.mrb[0].mxu0
  %v2797 = vadd.f32 0.0, %v2796
  %v2798 = vpop.f32.mrb[0].mxu0
  %v2799 = vpop.f32.mrb[0].mxu0
  %v2800 = vadd.f32 0.0, %v2799
  %v2801 = vpop.f32.mrb[0].mxu0
  %2802 = vmatprep.mubr.bf16.mxu0 0
  %2803 = vmatmul.mubr.bf16.gmra.mrb[0].mxu0 %v1800
  %v2804 = vpop.f32.mrb[0].mxu0
  %v2805 = vadd.f32 0.0, %v2804
  %v2806 = vpop.f32.mrb[0].mxu0
  %v2807 = vpop.f32.mrb[0].mxu0
  %v2808 = vadd.f32 0.0, %v2807
  %v2809 = vpop.f32.mrb[0].mxu0
  %2810 = vmatprep.mubr.bf16.mxu0 0
  %2811 = vmatmul.mubr.bf16.gmra.mrb[0].mxu0 %v1803
  %v2812 = vpop.f32.mrb[0].mxu0
  %v2813 = vadd.f32 0.0, %v2812
  %v2814 = vpop.f32.mrb[0].mxu0
  %v2815 = vpop.f32.mrb[0].mxu0
  %v2816 = vadd.f32 0.0, %v2815
  %v2817 = vpop.f32.mrb[0].mxu0
  %2818 = vmatprep.mubr.bf16.mxu0 0
  %2819 = vmatmul.mubr.bf16.gmra.mrb[0].mxu0 %v1806
  %v2820 = vpop.f32.mrb[0].mxu0
  %v2821 = vadd.f32 0.0, %v2820
  %v2822 = vpop.f32.mrb[0].mxu0
  %v2823 = vpop.f32.mrb[0].mxu0
  %v2824 = vadd.f32 0.0, %v2823
  %v2825 = vpop.f32.mrb[0].mxu0
  %2826 = vmatprep.mubr.bf16.mxu0 0
  %2827 = vmatmul.mubr.bf16.gmra.mrb[0].mxu0 %v1809
  %v2828 = vpop.f32.mrb[0].mxu0
  %v2829 = vadd.f32 0.0, %v2828
  %v2830 = vpop.f32.mrb[0].mxu0
  %v2831 = vpop.f32.mrb[0].mxu0
  %v2832 = vadd.f32 0.0, %v2831
  %v2833 = vpop.f32.mrb[0].mxu0
  %2834 = vmatprep.mubr.bf16.mxu0 0
  %2835 = vmatmul.mubr.bf16.gmra.mrb[0].mxu0 %v1812
  %v2836 = vpop.f32.mrb[0].mxu0
  %v2837 = vadd.f32 0.0, %v2836
  %v2838 = vpop.f32.mrb[0].mxu0
  %v2839 = vpop.f32.mrb[0].mxu0
  %v2840 = vadd.f32 0.0, %v2839
  %v2841 = vpop.f32.mrb[0].mxu0
  %2842 = vmatprep.mubr.bf16.mxu0 0
  %2843 = vmatmul.mubr.bf16.gmra.mrb[0].mxu0 %v1815
  %v2844 = vpop.f32.mrb[0].mxu0
  %v2845 = vadd.f32 0.0, %v2844
  %v2846 = vpop.f32.mrb[0].mxu0
  %v2847 = vpop.f32.mrb[0].mxu0
  %v2848 = vadd.f32 0.0, %v2847
  %v2849 = vpop.f32.mrb[0].mxu0
  %2850 = vmatprep.mubr.bf16.mxu0 0
  %2851 = vmatmul.mubr.bf16.gmra.mrb[0].mxu0 %v1818
  %v2852 = vpop.f32.mrb[0].mxu0
  %v2853 = vadd.f32 0.0, %v2852
  %v2854 = vpop.f32.mrb[0].mxu0
  %v2855 = vpop.f32.mrb[0].mxu0
  %v2856 = vadd.f32 0.0, %v2855
  %v2857 = vpop.f32.mrb[0].mxu0
  %2858 = vmatprep.mubr.bf16.mxu0 0
  %2859 = vmatmul.mubr.bf16.gmra.mrb[0].mxu0 %v1821
  %v2860 = vpop.f32.mrb[0].mxu0
  %v2861 = vadd.f32 0.0, %v2860
  %v2862 = vpop.f32.mrb[0].mxu0
  %v2863 = vpop.f32.mrb[0].mxu0
  %v2864 = vadd.f32 0.0, %v2863
  %v2865 = vpop.f32.mrb[0].mxu0
  %2866 = vmatprep.mubr.bf16.mxu0 0
  %2867 = vmatmul.mubr.bf16.gmra.mrb[0].mxu0 %v1824
  %v2868 = vpop.f32.mrb[0].mxu0
  %v2869 = vadd.f32 0.0, %v2868
  %v2870 = vpop.f32.mrb[0].mxu0
  %v2871 = vpop.f32.mrb[0].mxu0
  %v2872 = vadd.f32 0.0, %v2871
  %v2873 = vpop.f32.mrb[0].mxu0
  %2874 = vmatprep.mubr.bf16.mxu0 0
  %2875 = vmatmul.mubr.bf16.gmra.mrb[0].mxu0 %v1827
  %v2876 = vpop.f32.mrb[0].mxu0
  %v2877 = vadd.f32 0.0, %v2876
  %v2878 = vpop.f32.mrb[0].mxu0
  %v2879 = vpop.f32.mrb[0].mxu0
  %v2880 = vadd.f32 0.0, %v2879
  %v2881 = vpop.f32.mrb[0].mxu0
  %2882 = vmatprep.mubr.bf16.mxu0 0
  %2883 = vmatmul.mubr.bf16.gmra.mrb[0].mxu0 %v1830
  %v2884 = vpop.f32.mrb[0].mxu0
  %v2885 = vadd.f32 0.0, %v2884
  %v2886 = vpop.f32.mrb[0].mxu0
  %v2887 = vpop.f32.mrb[0].mxu0
  %v2888 = vadd.f32 0.0, %v2887
  %v2889 = vpop.f32.mrb[0].mxu0
  %2890 = vmatprep.mubr.bf16.mxu0 0
  %2891 = vmatmul.mubr.bf16.gmra.mrb[0].mxu0 %v1833
  %v2892 = vpop.f32.mrb[0].mxu0
  %v2893 = vadd.f32 0.0, %v2892
  %v2894 = vpop.f32.mrb[0].mxu0
  %v2895 = vpop.f32.mrb[0].mxu0
  %v2896 = vadd.f32 0.0, %v2895
  %v2897 = vpop.f32.mrb[0].mxu0
  %2898 = vdwg.mxu0
  %v2899 = vadd.f32 %v279, %v1877
  %v2900 = vadd.f32 %v280, %v1880
  %v2901 = vadd.f32 %v281, %v1885
  %v2902 = vadd.f32 %v282, %v1888
  %v2903 = vadd.f32 %v283, %v1893
  %v2904 = vadd.f32 %v284, %v1896
  %v2905 = vadd.f32 %v285, %v1901
  %v2906 = vadd.f32 %v286, %v1904
  %v2907 = vadd.f32 %v287, %v1909
  %v2908 = vadd.f32 %v288, %v1912
  %v2909 = vadd.f32 %v289, %v1917
  %v2910 = vadd.f32 %v290, %v1920
  %v2911 = vadd.f32 %v291, %v1925
  %v2912 = vadd.f32 %v292, %v1928
  %v2913 = vadd.f32 %v293, %v1933
  %v2914 = vadd.f32 %v294, %v1936
  %v2915 = vadd.f32 %v295, %v1941
  %v2916 = vadd.f32 %v296, %v1944
  %v2917 = vadd.f32 %v297, %v1949
  %v2918 = vadd.f32 %v298, %v1952
  %v2919 = vadd.f32 %v299, %v1957
  %v2920 = vadd.f32 %v300, %v1960
  %v2921 = vadd.f32 %v301, %v1965
  %v2922 = vadd.f32 %v302, %v1968
  %v2923 = vadd.f32 %v303, %v1973
  %v2924 = vadd.f32 %v304, %v1976
  %v2925 = vadd.f32 %v305, %v1981
  %v2926 = vadd.f32 %v306, %v1984
  %v2927 = vadd.f32 %v307, %v1989
  %v2928 = vadd.f32 %v308, %v1992
  %v2929 = vadd.f32 %v309, %v1997
  %v2930 = vadd.f32 %v310, %v2000
  %v2931 = vadd.f32 %v311, %v2005
  %v2932 = vadd.f32 %v312, %v2008
  %v2933 = vadd.f32 %v313, %v2013
  %v2934 = vadd.f32 %v314, %v2016
  %v2935 = vadd.f32 %v315, %v2021
  %v2936 = vadd.f32 %v316, %v2024
  %v2937 = vadd.f32 %v317, %v2029
  %v2938 = vadd.f32 %v318, %v2032
  %v2939 = vadd.f32 %v319, %v2037
  %v2940 = vadd.f32 %v320, %v2040
  %v2941 = vadd.f32 %v321, %v2045
  %v2942 = vadd.f32 %v322, %v2048
  %v2943 = vadd.f32 %v323, %v2053
  %v2944 = vadd.f32 %v324, %v2056
  %v2945 = vadd.f32 %v325, %v2061
  %v2946 = vadd.f32 %v326, %v2064
  %v2947 = vadd.f32 %v327, %v2069
  %v2948 = vadd.f32 %v328, %v2072
  %v2949 = vadd.f32 %v329, %v2077
  %v2950 = vadd.f32 %v330, %v2080
  %v2951 = vadd.f32 %v331, %v2085
  %v2952 = vadd.f32 %v332, %v2088
  %v2953 = vadd.f32 %v333, %v2093
  %v2954 = vadd.f32 %v334, %v2096
  %v2955 = vadd.f32 %v335, %v2101
  %v2956 = vadd.f32 %v336, %v2104
  %v2957 = vadd.f32 %v337, %v2109
  %v2958 = vadd.f32 %v338, %v2112
  %v2959 = vadd.f32 %v339, %v2117
  %v2960 = vadd.f32 %v340, %v2120
  %v2961 = vadd.f32 %v341, %v2125
  %v2962 = vadd.f32 %v342, %v2128
  %v2963 = vadd.f32 %v343, %v2133
  %v2964 = vadd.f32 %v344, %v2136
  %v2965 = vadd.f32 %v345, %v2141
  %v2966 = vadd.f32 %v346, %v2144
  %v2967 = vadd.f32 %v347, %v2149
  %v2968 = vadd.f32 %v348, %v2152
  %v2969 = vadd.f32 %v349, %v2157
  %v2970 = vadd.f32 %v350, %v2160
  %v2971 = vadd.f32 %v351, %v2165
  %v2972 = vadd.f32 %v352, %v2168
  %v2973 = vadd.f32 %v353, %v2173
  %v2974 = vadd.f32 %v354, %v2176
  %v2975 = vadd.f32 %v355, %v2181
  %v2976 = vadd.f32 %v356, %v2184
  %v2977 = vadd.f32 %v357, %v2189
  %v2978 = vadd.f32 %v358, %v2192
  %v2979 = vadd.f32 %v359, %v2197
  %v2980 = vadd.f32 %v360, %v2200
  %v2981 = vadd.f32 %v361, %v2205
  %v2982 = vadd.f32 %v362, %v2208
  %v2983 = vadd.f32 %v363, %v2213
  %v2984 = vadd.f32 %v364, %v2216
  %v2985 = vadd.f32 %v365, %v2221
  %v2986 = vadd.f32 %v366, %v2224
  %v2987 = vadd.f32 %v367, %v2229
  %v2988 = vadd.f32 %v368, %v2232
  %v2989 = vadd.f32 %v369, %v2237
  %v2990 = vadd.f32 %v370, %v2240
  %v2991 = vadd.f32 %v371, %v2245
  %v2992 = vadd.f32 %v372, %v2248
  %v2993 = vadd.f32 %v373, %v2253
  %v2994 = vadd.f32 %v374, %v2256
  %v2995 = vadd.f32 %v375, %v2261
  %v2996 = vadd.f32 %v376, %v2264
  %v2997 = vadd.f32 %v377, %v2269
  %v2998 = vadd.f32 %v378, %v2272
  %v2999 = vadd.f32 %v379, %v2277
  %v3000 = vadd.f32 %v380, %v2280
  %v3001 = vadd.f32 %v381, %v2285
  %v3002 = vadd.f32 %v382, %v2288
  %v3003 = vadd.f32 %v383, %v2293
  %v3004 = vadd.f32 %v384, %v2296
  %v3005 = vadd.f32 %v385, %v2301
  %v3006 = vadd.f32 %v386, %v2304
  %v3007 = vadd.f32 %v387, %v2309
  %v3008 = vadd.f32 %v388, %v2312
  %v3009 = vadd.f32 %v389, %v2317
  %v3010 = vadd.f32 %v390, %v2320
  %v3011 = vadd.f32 %v391, %v2325
  %v3012 = vadd.f32 %v392, %v2328
  %v3013 = vadd.f32 %v393, %v2333
  %v3014 = vadd.f32 %v394, %v2336
  %v3015 = vadd.f32 %v395, %v2341
  %v3016 = vadd.f32 %v396, %v2344
  %v3017 = vadd.f32 %v397, %v2349
  %v3018 = vadd.f32 %v398, %v2352
  %v3019 = vadd.f32 %v399, %v2357
  %v3020 = vadd.f32 %v400, %v2360
  %v3021 = vadd.f32 %v401, %v2365
  %v3022 = vadd.f32 %v402, %v2368
  %v3023 = vadd.f32 %v403, %v2373
  %v3024 = vadd.f32 %v404, %v2376
  %v3025 = vadd.f32 %v405, %v2381
  %v3026 = vadd.f32 %v406, %v2384
  %v3027 = vadd.f32 %v407, %v2389
  %v3028 = vadd.f32 %v408, %v2392
  %v3029 = vadd.f32 %v409, %v2397
  %v3030 = vadd.f32 %v410, %v2400
  %v3031 = vadd.f32 %v411, %v2405
  %v3032 = vadd.f32 %v412, %v2408
  %v3033 = vadd.f32 %v413, %v2413
  %v3034 = vadd.f32 %v414, %v2416
  %v3035 = vadd.f32 %v415, %v2421
  %v3036 = vadd.f32 %v416, %v2424
  %v3037 = vadd.f32 %v417, %v2429
  %v3038 = vadd.f32 %v418, %v2432
  %v3039 = vadd.f32 %v419, %v2437
  %v3040 = vadd.f32 %v420, %v2440
  %v3041 = vadd.f32 %v421, %v2445
  %v3042 = vadd.f32 %v422, %v2448
  %v3043 = vadd.f32 %v423, %v2453
  %v3044 = vadd.f32 %v424, %v2456
  %v3045 = vadd.f32 %v425, %v2461
  %v3046 = vadd.f32 %v426, %v2464
  %v3047 = vadd.f32 %v427, %v2469
  %v3048 = vadd.f32 %v428, %v2472
  %v3049 = vadd.f32 %v429, %v2477
  %v3050 = vadd.f32 %v430, %v2480
  %v3051 = vadd.f32 %v431, %v2485
  %v3052 = vadd.f32 %v432, %v2488
  %v3053 = vadd.f32 %v433, %v2493
  %v3054 = vadd.f32 %v434, %v2496
  %v3055 = vadd.f32 %v435, %v2501
  %v3056 = vadd.f32 %v436, %v2504
  %v3057 = vadd.f32 %v437, %v2509
  %v3058 = vadd.f32 %v438, %v2512
  %v3059 = vadd.f32 %v439, %v2517
  %v3060 = vadd.f32 %v440, %v2520
  %v3061 = vadd.f32 %v441, %v2525
  %v3062 = vadd.f32 %v442, %v2528
  %v3063 = vadd.f32 %v443, %v2533
  %v3064 = vadd.f32 %v444, %v2536
  %v3065 = vadd.f32 %v445, %v2541
  %v3066 = vadd.f32 %v446, %v2544
  %v3067 = vadd.f32 %v447, %v2549
  %v3068 = vadd.f32 %v448, %v2552
  %v3069 = vadd.f32 %v449, %v2557
  %v3070 = vadd.f32 %v450, %v2560
  %v3071 = vadd.f32 %v451, %v2565
  %v3072 = vadd.f32 %v452, %v2568
  %v3073 = vadd.f32 %v453, %v2573
  %v3074 = vadd.f32 %v454, %v2576
  %v3075 = vadd.f32 %v455, %v2581
  %v3076 = vadd.f32 %v456, %v2584
  %v3077 = vadd.f32 %v457, %v2589
  %v3078 = vadd.f32 %v458, %v2592
  %v3079 = vadd.f32 %v459, %v2597
  %v3080 = vadd.f32 %v460, %v2600
  %v3081 = vadd.f32 %v461, %v2605
  %v3082 = vadd.f32 %v462, %v2608
  %v3083 = vadd.f32 %v463, %v2613
  %v3084 = vadd.f32 %v464, %v2616
  %v3085 = vadd.f32 %v465, %v2621
  %v3086 = vadd.f32 %v466, %v2624
  %v3087 = vadd.f32 %v467, %v2629
  %v3088 = vadd.f32 %v468, %v2632
  %v3089 = vadd.f32 %v469, %v2637
  %v3090 = vadd.f32 %v470, %v2640
  %v3091 = vadd.f32 %v471, %v2645
  %v3092 = vadd.f32 %v472, %v2648
  %v3093 = vadd.f32 %v473, %v2653
  %v3094 = vadd.f32 %v474, %v2656
  %v3095 = vadd.f32 %v475, %v2661
  %v3096 = vadd.f32 %v476, %v2664
  %v3097 = vadd.f32 %v477, %v2669
  %v3098 = vadd.f32 %v478, %v2672
  %v3099 = vadd.f32 %v479, %v2677
  %v3100 = vadd.f32 %v480, %v2680
  %v3101 = vadd.f32 %v481, %v2685
  %v3102 = vadd.f32 %v482, %v2688
  %v3103 = vadd.f32 %v483, %v2693
  %v3104 = vadd.f32 %v484, %v2696
  %v3105 = vadd.f32 %v485, %v2701
  %v3106 = vadd.f32 %v486, %v2704
  %v3107 = vadd.f32 %v487, %v2709
  %v3108 = vadd.f32 %v488, %v2712
  %v3109 = vadd.f32 %v489, %v2717
  %v3110 = vadd.f32 %v490, %v2720
  %v3111 = vadd.f32 %v491, %v2725
  %v3112 = vadd.f32 %v492, %v2728
  %v3113 = vadd.f32 %v493, %v2733
  %v3114 = vadd.f32 %v494, %v2736
  %v3115 = vadd.f32 %v495, %v2741
  %v3116 = vadd.f32 %v496, %v2744
  %v3117 = vadd.f32 %v497, %v2749
  %v3118 = vadd.f32 %v498, %v2752
  %v3119 = vadd.f32 %v499, %v2757
  %v3120 = vadd.f32 %v500, %v2760
  %v3121 = vadd.f32 %v501, %v2765
  %v3122 = vadd.f32 %v502, %v2768
  %v3123 = vadd.f32 %v503, %v2773
  %v3124 = vadd.f32 %v504, %v2776
  %v3125 = vadd.f32 %v505, %v2781
  %v3126 = vadd.f32 %v506, %v2784
  %v3127 = vadd.f32 %v507, %v2789
  %v3128 = vadd.f32 %v508, %v2792
  %v3129 = vadd.f32 %v509, %v2797
  %v3130 = vadd.f32 %v510, %v2800
  %v3131 = vadd.f32 %v511, %v2805
  %v3132 = vadd.f32 %v512, %v2808
  %v3133 = vadd.f32 %v513, %v2813
  %v3134 = vadd.f32 %v514, %v2816
  %v3135 = vadd.f32 %v515, %v2821
  %v3136 = vadd.f32 %v516, %v2824
  %v3137 = vadd.f32 %v517, %v2829
  %v3138 = vadd.f32 %v518, %v2832
  %v3139 = vadd.f32 %v519, %v2837
  %v3140 = vadd.f32 %v520, %v2840
  %v3141 = vadd.f32 %v521, %v2845
  %v3142 = vadd.f32 %v522, %v2848
  %v3143 = vadd.f32 %v523, %v2853
  %v3144 = vadd.f32 %v524, %v2856
  %v3145 = vadd.f32 %v525, %v2861
  %v3146 = vadd.f32 %v526, %v2864
  %v3147 = vadd.f32 %v527, %v2869
  %v3148 = vadd.f32 %v528, %v2872
  %v3149 = vadd.f32 %v529, %v2877
  %v3150 = vadd.f32 %v530, %v2880
  %v3151 = vadd.f32 %v531, %v2885
  %v3152 = vadd.f32 %v532, %v2888
  %v3153 = vadd.f32 %v533, %v2893
  %v3154 = vadd.f32 %v534, %v2896
  %vm3155 = vcmask 523264
  %3156 = vst.msk [vmem:[#allocation2] sm:$0xff] %vm3155, %v2899
  %3157 = vst.msk [vmem:[#allocation2 + $0x8] sm:$0xff] %vm3155, %v2900
  %3158 = vst.msk [vmem:[#allocation2 + $0x10] sm:$0xff] %vm3155, %v2901
  %3159 = vst.msk [vmem:[#allocation2 + $0x18] sm:$0xff] %vm3155, %v2902
  %3160 = vst.msk [vmem:[#allocation2 + $0x20] sm:$0xff] %vm3155, %v2903
  %3161 = vst.msk [vmem:[#allocation2 + $0x28] sm:$0xff] %vm3155, %v2904
  %3162 = vst.msk [vmem:[#allocation2 + $0x30] sm:$0xff] %vm3155, %v2905
  %3163 = vst.msk [vmem:[#allocation2 + $0x38] sm:$0xff] %vm3155, %v2906
  %3164 = vst.msk [vmem:[#allocation2 + $0x40] sm:$0xff] %vm3155, %v2907
  %3165 = vst.msk [vmem:[#allocation2 + $0x48] sm:$0xff] %vm3155, %v2908
  %3166 = vst.msk [vmem:[#allocation2 + $0x50] sm:$0xff] %vm3155, %v2909
  %3167 = vst.msk [vmem:[#allocation2 + $0x58] sm:$0xff] %vm3155, %v2910
  %3168 = vst.msk [vmem:[#allocation2 + $0x60] sm:$0xff] %vm3155, %v2911
  %3169 = vst.msk [vmem:[#allocation2 + $0x68] sm:$0xff] %vm3155, %v2912
  %3170 = vst.msk [vmem:[#allocation2 + $0x70] sm:$0xff] %vm3155, %v2913
  %3171 = vst.msk [vmem:[#allocation2 + $0x78] sm:$0xff] %vm3155, %v2914
  %3172 = vst.msk [vmem:[#allocation2 + $0x80] sm:$0xff] %vm3155, %v2915
  %3173 = vst.msk [vmem:[#allocation2 + $0x88] sm:$0xff] %vm3155, %v2916
  %3174 = vst.msk [vmem:[#allocation2 + $0x90] sm:$0xff] %vm3155, %v2917
  %3175 = vst.msk [vmem:[#allocation2 + $0x98] sm:$0xff] %vm3155, %v2918
  %3176 = vst.msk [vmem:[#allocation2 + $0xa0] sm:$0xff] %vm3155, %v2919
  %3177 = vst.msk [vmem:[#allocation2 + $0xa8] sm:$0xff] %vm3155, %v2920
  %3178 = vst.msk [vmem:[#allocation2 + $0xb0] sm:$0xff] %vm3155, %v2921
  %3179 = vst.msk [vmem:[#allocation2 + $0xb8] sm:$0xff] %vm3155, %v2922
  %3180 = vst.msk [vmem:[#allocation2 + $0xc0] sm:$0xff] %vm3155, %v2923
  %3181 = vst.msk [vmem:[#allocation2 + $0xc8] sm:$0xff] %vm3155, %v2924
  %3182 = vst.msk [vmem:[#allocation2 + $0xd0] sm:$0xff] %vm3155, %v2925
  %3183 = vst.msk [vmem:[#allocation2 + $0xd8] sm:$0xff] %vm3155, %v2926
  %3184 = vst.msk [vmem:[#allocation2 + $0xe0] sm:$0xff] %vm3155, %v2927
  %3185 = vst.msk [vmem:[#allocation2 + $0xe8] sm:$0xff] %vm3155, %v2928
  %3186 = vst.msk [vmem:[#allocation2 + $0xf0] sm:$0xff] %vm3155, %v2929
  %3187 = vst.msk [vmem:[#allocation2 + $0xf8] sm:$0xff] %vm3155, %v2930
  %3188 = vst.msk [vmem:[#allocation2 + $0x100] sm:$0xff] %vm3155, %v2931
  %3189 = vst.msk [vmem:[#allocation2 + $0x108] sm:$0xff] %vm3155, %v2932
  %3190 = vst.msk [vmem:[#allocation2 + $0x110] sm:$0xff] %vm3155, %v2933
  %3191 = vst.msk [vmem:[#allocation2 + $0x118] sm:$0xff] %vm3155, %v2934
  %3192 = vst.msk [vmem:[#allocation2 + $0x120] sm:$0xff] %vm3155, %v2935
  %3193 = vst.msk [vmem:[#allocation2 + $0x128] sm:$0xff] %vm3155, %v2936
  %3194 = vst.msk [vmem:[#allocation2 + $0x130] sm:$0xff] %vm3155, %v2937
  %3195 = vst.msk [vmem:[#allocation2 + $0x138] sm:$0xff] %vm3155, %v2938
  %3196 = vst.msk [vmem:[#allocation2 + $0x140] sm:$0xff] %vm3155, %v2939
  %3197 = vst.msk [vmem:[#allocation2 + $0x148] sm:$0xff] %vm3155, %v2940
  %3198 = vst.msk [vmem:[#allocation2 + $0x150] sm:$0xff] %vm3155, %v2941
  %3199 = vst.msk [vmem:[#allocation2 + $0x158] sm:$0xff] %vm3155, %v2942
  %3200 = vst.msk [vmem:[#allocation2 + $0x160] sm:$0xff] %vm3155, %v2943
  %3201 = vst.msk [vmem:[#allocation2 + $0x168] sm:$0xff] %vm3155, %v2944
  %3202 = vst.msk [vmem:[#allocation2 + $0x170] sm:$0xff] %vm3155, %v2945
  %3203 = vst.msk [vmem:[#allocation2 + $0x178] sm:$0xff] %vm3155, %v2946
  %3204 = vst.msk [vmem:[#allocation2 + $0x180] sm:$0xff] %vm3155, %v2947
  %3205 = vst.msk [vmem:[#allocation2 + $0x188] sm:$0xff] %vm3155, %v2948
  %3206 = vst.msk [vmem:[#allocation2 + $0x190] sm:$0xff] %vm3155, %v2949
  %3207 = vst.msk [vmem:[#allocation2 + $0x198] sm:$0xff] %vm3155, %v2950
  %3208 = vst.msk [vmem:[#allocation2 + $0x1a0] sm:$0xff] %vm3155, %v2951
  %3209 = vst.msk [vmem:[#allocation2 + $0x1a8] sm:$0xff] %vm3155, %v2952
  %3210 = vst.msk [vmem:[#allocation2 + $0x1b0] sm:$0xff] %vm3155, %v2953
  %3211 = vst.msk [vmem:[#allocation2 + $0x1b8] sm:$0xff] %vm3155, %v2954
  %3212 = vst.msk [vmem:[#allocation2 + $0x1c0] sm:$0xff] %vm3155, %v2955
  %3213 = vst.msk [vmem:[#allocation2 + $0x1c8] sm:$0xff] %vm3155, %v2956
  %3214 = vst.msk [vmem:[#allocation2 + $0x1d0] sm:$0xff] %vm3155, %v2957
  %3215 = vst.msk [vmem:[#allocation2 + $0x1d8] sm:$0xff] %vm3155, %v2958
  %3216 = vst.msk [vmem:[#allocation2 + $0x1e0] sm:$0xff] %vm3155, %v2959
  %3217 = vst.msk [vmem:[#allocation2 + $0x1e8] sm:$0xff] %vm3155, %v2960
  %3218 = vst.msk [vmem:[#allocation2 + $0x1f0] sm:$0xff] %vm3155, %v2961
  %3219 = vst.msk [vmem:[#allocation2 + $0x1f8] sm:$0xff] %vm3155, %v2962
  %3220 = vst.msk [vmem:[#allocation2 + $0x200] sm:$0xff] %vm3155, %v2963
  %3221 = vst.msk [vmem:[#allocation2 + $0x208] sm:$0xff] %vm3155, %v2964
  %3222 = vst.msk [vmem:[#allocation2 + $0x210] sm:$0xff] %vm3155, %v2965
  %3223 = vst.msk [vmem:[#allocation2 + $0x218] sm:$0xff] %vm3155, %v2966
  %3224 = vst.msk [vmem:[#allocation2 + $0x220] sm:$0xff] %vm3155, %v2967
  %3225 = vst.msk [vmem:[#allocation2 + $0x228] sm:$0xff] %vm3155, %v2968
  %3226 = vst.msk [vmem:[#allocation2 + $0x230] sm:$0xff] %vm3155, %v2969
  %3227 = vst.msk [vmem:[#allocation2 + $0x238] sm:$0xff] %vm3155, %v2970
  %3228 = vst.msk [vmem:[#allocation2 + $0x240] sm:$0xff] %vm3155, %v2971
  %3229 = vst.msk [vmem:[#allocation2 + $0x248] sm:$0xff] %vm3155, %v2972
  %3230 = vst.msk [vmem:[#allocation2 + $0x250] sm:$0xff] %vm3155, %v2973
  %3231 = vst.msk [vmem:[#allocation2 + $0x258] sm:$0xff] %vm3155, %v2974
  %3232 = vst.msk [vmem:[#allocation2 + $0x260] sm:$0xff] %vm3155, %v2975
  %3233 = vst.msk [vmem:[#allocation2 + $0x268] sm:$0xff] %vm3155, %v2976
  %3234 = vst.msk [vmem:[#allocation2 + $0x270] sm:$0xff] %vm3155, %v2977
  %3235 = vst.msk [vmem:[#allocation2 + $0x278] sm:$0xff] %vm3155, %v2978
  %3236 = vst.msk [vmem:[#allocation2 + $0x280] sm:$0xff] %vm3155, %v2979
  %3237 = vst.msk [vmem:[#allocation2 + $0x288] sm:$0xff] %vm3155, %v2980
  %3238 = vst.msk [vmem:[#allocation2 + $0x290] sm:$0xff] %vm3155, %v2981
  %3239 = vst.msk [vmem:[#allocation2 + $0x298] sm:$0xff] %vm3155, %v2982
  %3240 = vst.msk [vmem:[#allocation2 + $0x2a0] sm:$0xff] %vm3155, %v2983
  %3241 = vst.msk [vmem:[#allocation2 + $0x2a8] sm:$0xff] %vm3155, %v2984
  %3242 = vst.msk [vmem:[#allocation2 + $0x2b0] sm:$0xff] %vm3155, %v2985
  %3243 = vst.msk [vmem:[#allocation2 + $0x2b8] sm:$0xff] %vm3155, %v2986
  %3244 = vst.msk [vmem:[#allocation2 + $0x2c0] sm:$0xff] %vm3155, %v2987
  %3245 = vst.msk [vmem:[#allocation2 + $0x2c8] sm:$0xff] %vm3155, %v2988
  %3246 = vst.msk [vmem:[#allocation2 + $0x2d0] sm:$0xff] %vm3155, %v2989
  %3247 = vst.msk [vmem:[#allocation2 + $0x2d8] sm:$0xff] %vm3155, %v2990
  %3248 = vst.msk [vmem:[#allocation2 + $0x2e0] sm:$0xff] %vm3155, %v2991
  %3249 = vst.msk [vmem:[#allocation2 + $0x2e8] sm:$0xff] %vm3155, %v2992
  %3250 = vst.msk [vmem:[#allocation2 + $0x2f0] sm:$0xff] %vm3155, %v2993
  %3251 = vst.msk [vmem:[#allocation2 + $0x2f8] sm:$0xff] %vm3155, %v2994
  %3252 = vst.msk [vmem:[#allocation2 + $0x300] sm:$0xff] %vm3155, %v2995
  %3253 = vst.msk [vmem:[#allocation2 + $0x308] sm:$0xff] %vm3155, %v2996
  %3254 = vst.msk [vmem:[#allocation2 + $0x310] sm:$0xff] %vm3155, %v2997
  %3255 = vst.msk [vmem:[#allocation2 + $0x318] sm:$0xff] %vm3155, %v2998
  %3256 = vst.msk [vmem:[#allocation2 + $0x320] sm:$0xff] %vm3155, %v2999
  %3257 = vst.msk [vmem:[#allocation2 + $0x328] sm:$0xff] %vm3155, %v3000
  %3258 = vst.msk [vmem:[#allocation2 + $0x330] sm:$0xff] %vm3155, %v3001
  %3259 = vst.msk [vmem:[#allocation2 + $0x338] sm:$0xff] %vm3155, %v3002
  %3260 = vst.msk [vmem:[#allocation2 + $0x340] sm:$0xff] %vm3155, %v3003
  %3261 = vst.msk [vmem:[#allocation2 + $0x348] sm:$0xff] %vm3155, %v3004
  %3262 = vst.msk [vmem:[#allocation2 + $0x350] sm:$0xff] %vm3155, %v3005
  %3263 = vst.msk [vmem:[#allocation2 + $0x358] sm:$0xff] %vm3155, %v3006
  %3264 = vst.msk [vmem:[#allocation2 + $0x360] sm:$0xff] %vm3155, %v3007
  %3265 = vst.msk [vmem:[#allocation2 + $0x368] sm:$0xff] %vm3155, %v3008
  %3266 = vst.msk [vmem:[#allocation2 + $0x370] sm:$0xff] %vm3155, %v3009
  %3267 = vst.msk [vmem:[#allocation2 + $0x378] sm:$0xff] %vm3155, %v3010
  %3268 = vst.msk [vmem:[#allocation2 + $0x380] sm:$0xff] %vm3155, %v3011
  %3269 = vst.msk [vmem:[#allocation2 + $0x388] sm:$0xff] %vm3155, %v3012
  %3270 = vst.msk [vmem:[#allocation2 + $0x390] sm:$0xff] %vm3155, %v3013
  %3271 = vst.msk [vmem:[#allocation2 + $0x398] sm:$0xff] %vm3155, %v3014
  %3272 = vst.msk [vmem:[#allocation2 + $0x3a0] sm:$0xff] %vm3155, %v3015
  %3273 = vst.msk [vmem:[#allocation2 + $0x3a8] sm:$0xff] %vm3155, %v3016
  %3274 = vst.msk [vmem:[#allocation2 + $0x3b0] sm:$0xff] %vm3155, %v3017
  %3275 = vst.msk [vmem:[#allocation2 + $0x3b8] sm:$0xff] %vm3155, %v3018
  %3276 = vst.msk [vmem:[#allocation2 + $0x3c0] sm:$0xff] %vm3155, %v3019
  %3277 = vst.msk [vmem:[#allocation2 + $0x3c8] sm:$0xff] %vm3155, %v3020
  %3278 = vst.msk [vmem:[#allocation2 + $0x3d0] sm:$0xff] %vm3155, %v3021
  %3279 = vst.msk [vmem:[#allocation2 + $0x3d8] sm:$0xff] %vm3155, %v3022
  %3280 = vst.msk [vmem:[#allocation2 + $0x3e0] sm:$0xff] %vm3155, %v3023
  %3281 = vst.msk [vmem:[#allocation2 + $0x3e8] sm:$0xff] %vm3155, %v3024
  %3282 = vst.msk [vmem:[#allocation2 + $0x3f0] sm:$0xff] %vm3155, %v3025
  %3283 = vst.msk [vmem:[#allocation2 + $0x3f8] sm:$0xff] %vm3155, %v3026
  %3284 = vst.msk [vmem:[#allocation2 + $0x400] sm:$0xff] %vm3155, %v3027
  %3285 = vst.msk [vmem:[#allocation2 + $0x408] sm:$0xff] %vm3155, %v3028
  %3286 = vst.msk [vmem:[#allocation2 + $0x410] sm:$0xff] %vm3155, %v3029
  %3287 = vst.msk [vmem:[#allocation2 + $0x418] sm:$0xff] %vm3155, %v3030
  %3288 = vst.msk [vmem:[#allocation2 + $0x420] sm:$0xff] %vm3155, %v3031
  %3289 = vst.msk [vmem:[#allocation2 + $0x428] sm:$0xff] %vm3155, %v3032
  %3290 = vst.msk [vmem:[#allocation2 + $0x430] sm:$0xff] %vm3155, %v3033
  %3291 = vst.msk [vmem:[#allocation2 + $0x438] sm:$0xff] %vm3155, %v3034
  %3292 = vst.msk [vmem:[#allocation2 + $0x440] sm:$0xff] %vm3155, %v3035
  %3293 = vst.msk [vmem:[#allocation2 + $0x448] sm:$0xff] %vm3155, %v3036
  %3294 = vst.msk [vmem:[#allocation2 + $0x450] sm:$0xff] %vm3155, %v3037
  %3295 = vst.msk [vmem:[#allocation2 + $0x458] sm:$0xff] %vm3155, %v3038
  %3296 = vst.msk [vmem:[#allocation2 + $0x460] sm:$0xff] %vm3155, %v3039
  %3297 = vst.msk [vmem:[#allocation2 + $0x468] sm:$0xff] %vm3155, %v3040
  %3298 = vst.msk [vmem:[#allocation2 + $0x470] sm:$0xff] %vm3155, %v3041
  %3299 = vst.msk [vmem:[#allocation2 + $0x478] sm:$0xff] %vm3155, %v3042
  %3300 = vst.msk [vmem:[#allocation2 + $0x480] sm:$0xff] %vm3155, %v3043
  %3301 = vst.msk [vmem:[#allocation2 + $0x488] sm:$0xff] %vm3155, %v3044
  %3302 = vst.msk [vmem:[#allocation2 + $0x490] sm:$0xff] %vm3155, %v3045
  %3303 = vst.msk [vmem:[#allocation2 + $0x498] sm:$0xff] %vm3155, %v3046
  %3304 = vst.msk [vmem:[#allocation2 + $0x4a0] sm:$0xff] %vm3155, %v3047
  %3305 = vst.msk [vmem:[#allocation2 + $0x4a8] sm:$0xff] %vm3155, %v3048
  %3306 = vst.msk [vmem:[#allocation2 + $0x4b0] sm:$0xff] %vm3155, %v3049
  %3307 = vst.msk [vmem:[#allocation2 + $0x4b8] sm:$0xff] %vm3155, %v3050
  %3308 = vst.msk [vmem:[#allocation2 + $0x4c0] sm:$0xff] %vm3155, %v3051
  %3309 = vst.msk [vmem:[#allocation2 + $0x4c8] sm:$0xff] %vm3155, %v3052
  %3310 = vst.msk [vmem:[#allocation2 + $0x4d0] sm:$0xff] %vm3155, %v3053
  %3311 = vst.msk [vmem:[#allocation2 + $0x4d8] sm:$0xff] %vm3155, %v3054
  %3312 = vst.msk [vmem:[#allocation2 + $0x4e0] sm:$0xff] %vm3155, %v3055
  %3313 = vst.msk [vmem:[#allocation2 + $0x4e8] sm:$0xff] %vm3155, %v3056
  %3314 = vst.msk [vmem:[#allocation2 + $0x4f0] sm:$0xff] %vm3155, %v3057
  %3315 = vst.msk [vmem:[#allocation2 + $0x4f8] sm:$0xff] %vm3155, %v3058
  %3316 = vst.msk [vmem:[#allocation2 + $0x500] sm:$0xff] %vm3155, %v3059
  %3317 = vst.msk [vmem:[#allocation2 + $0x508] sm:$0xff] %vm3155, %v3060
  %3318 = vst.msk [vmem:[#allocation2 + $0x510] sm:$0xff] %vm3155, %v3061
  %3319 = vst.msk [vmem:[#allocation2 + $0x518] sm:$0xff] %vm3155, %v3062
  %3320 = vst.msk [vmem:[#allocation2 + $0x520] sm:$0xff] %vm3155, %v3063
  %3321 = vst.msk [vmem:[#allocation2 + $0x528] sm:$0xff] %vm3155, %v3064
  %3322 = vst.msk [vmem:[#allocation2 + $0x530] sm:$0xff] %vm3155, %v3065
  %3323 = vst.msk [vmem:[#allocation2 + $0x538] sm:$0xff] %vm3155, %v3066
  %3324 = vst.msk [vmem:[#allocation2 + $0x540] sm:$0xff] %vm3155, %v3067
  %3325 = vst.msk [vmem:[#allocation2 + $0x548] sm:$0xff] %vm3155, %v3068
  %3326 = vst.msk [vmem:[#allocation2 + $0x550] sm:$0xff] %vm3155, %v3069
  %3327 = vst.msk [vmem:[#allocation2 + $0x558] sm:$0xff] %vm3155, %v3070
  %3328 = vst.msk [vmem:[#allocation2 + $0x560] sm:$0xff] %vm3155, %v3071
  %3329 = vst.msk [vmem:[#allocation2 + $0x568] sm:$0xff] %vm3155, %v3072
  %3330 = vst.msk [vmem:[#allocation2 + $0x570] sm:$0xff] %vm3155, %v3073
  %3331 = vst.msk [vmem:[#allocation2 + $0x578] sm:$0xff] %vm3155, %v3074
  %3332 = vst.msk [vmem:[#allocation2 + $0x580] sm:$0xff] %vm3155, %v3075
  %3333 = vst.msk [vmem:[#allocation2 + $0x588] sm:$0xff] %vm3155, %v3076
  %3334 = vst.msk [vmem:[#allocation2 + $0x590] sm:$0xff] %vm3155, %v3077
  %3335 = vst.msk [vmem:[#allocation2 + $0x598] sm:$0xff] %vm3155, %v3078
  %3336 = vst.msk [vmem:[#allocation2 + $0x5a0] sm:$0xff] %vm3155, %v3079
  %3337 = vst.msk [vmem:[#allocation2 + $0x5a8] sm:$0xff] %vm3155, %v3080
  %3338 = vst.msk [vmem:[#allocation2 + $0x5b0] sm:$0xff] %vm3155, %v3081
  %3339 = vst.msk [vmem:[#allocation2 + $0x5b8] sm:$0xff] %vm3155, %v3082
  %3340 = vst.msk [vmem:[#allocation2 + $0x5c0] sm:$0xff] %vm3155, %v3083
  %3341 = vst.msk [vmem:[#allocation2 + $0x5c8] sm:$0xff] %vm3155, %v3084
  %3342 = vst.msk [vmem:[#allocation2 + $0x5d0] sm:$0xff] %vm3155, %v3085
  %3343 = vst.msk [vmem:[#allocation2 + $0x5d8] sm:$0xff] %vm3155, %v3086
  %3344 = vst.msk [vmem:[#allocation2 + $0x5e0] sm:$0xff] %vm3155, %v3087
  %3345 = vst.msk [vmem:[#allocation2 + $0x5e8] sm:$0xff] %vm3155, %v3088
  %3346 = vst.msk [vmem:[#allocation2 + $0x5f0] sm:$0xff] %vm3155, %v3089
  %3347 = vst.msk [vmem:[#allocation2 + $0x5f8] sm:$0xff] %vm3155, %v3090
  %3348 = vst.msk [vmem:[#allocation2 + $0x600] sm:$0xff] %vm3155, %v3091
  %3349 = vst.msk [vmem:[#allocation2 + $0x608] sm:$0xff] %vm3155, %v3092
  %3350 = vst.msk [vmem:[#allocation2 + $0x610] sm:$0xff] %vm3155, %v3093
  %3351 = vst.msk [vmem:[#allocation2 + $0x618] sm:$0xff] %vm3155, %v3094
  %3352 = vst.msk [vmem:[#allocation2 + $0x620] sm:$0xff] %vm3155, %v3095
  %3353 = vst.msk [vmem:[#allocation2 + $0x628] sm:$0xff] %vm3155, %v3096
  %3354 = vst.msk [vmem:[#allocation2 + $0x630] sm:$0xff] %vm3155, %v3097
  %3355 = vst.msk [vmem:[#allocation2 + $0x638] sm:$0xff] %vm3155, %v3098
  %3356 = vst.msk [vmem:[#allocation2 + $0x640] sm:$0xff] %vm3155, %v3099
  %3357 = vst.msk [vmem:[#allocation2 + $0x648] sm:$0xff] %vm3155, %v3100
  %3358 = vst.msk [vmem:[#allocation2 + $0x650] sm:$0xff] %vm3155, %v3101
  %3359 = vst.msk [vmem:[#allocation2 + $0x658] sm:$0xff] %vm3155, %v3102
  %3360 = vst.msk [vmem:[#allocation2 + $0x660] sm:$0xff] %vm3155, %v3103
  %3361 = vst.msk [vmem:[#allocation2 + $0x668] sm:$0xff] %vm3155, %v3104
  %3362 = vst.msk [vmem:[#allocation2 + $0x670] sm:$0xff] %vm3155, %v3105
  %3363 = vst.msk [vmem:[#allocation2 + $0x678] sm:$0xff] %vm3155, %v3106
  %3364 = vst.msk [vmem:[#allocation2 + $0x680] sm:$0xff] %vm3155, %v3107
  %3365 = vst.msk [vmem:[#allocation2 + $0x688] sm:$0xff] %vm3155, %v3108
  %3366 = vst.msk [vmem:[#allocation2 + $0x690] sm:$0xff] %vm3155, %v3109
  %3367 = vst.msk [vmem:[#allocation2 + $0x698] sm:$0xff] %vm3155, %v3110
  %3368 = vst.msk [vmem:[#allocation2 + $0x6a0] sm:$0xff] %vm3155, %v3111
  %3369 = vst.msk [vmem:[#allocation2 + $0x6a8] sm:$0xff] %vm3155, %v3112
  %3370 = vst.msk [vmem:[#allocation2 + $0x6b0] sm:$0xff] %vm3155, %v3113
  %3371 = vst.msk [vmem:[#allocation2 + $0x6b8] sm:$0xff] %vm3155, %v3114
  %3372 = vst.msk [vmem:[#allocation2 + $0x6c0] sm:$0xff] %vm3155, %v3115
  %3373 = vst.msk [vmem:[#allocation2 + $0x6c8] sm:$0xff] %vm3155, %v3116
  %3374 = vst.msk [vmem:[#allocation2 + $0x6d0] sm:$0xff] %vm3155, %v3117
  %3375 = vst.msk [vmem:[#allocation2 + $0x6d8] sm:$0xff] %vm3155, %v3118
  %3376 = vst.msk [vmem:[#allocation2 + $0x6e0] sm:$0xff] %vm3155, %v3119
  %3377 = vst.msk [vmem:[#allocation2 + $0x6e8] sm:$0xff] %vm3155, %v3120
  %3378 = vst.msk [vmem:[#allocation2 + $0x6f0] sm:$0xff] %vm3155, %v3121
  %3379 = vst.msk [vmem:[#allocation2 + $0x6f8] sm:$0xff] %vm3155, %v3122
  %3380 = vst.msk [vmem:[#allocation2 + $0x700] sm:$0xff] %vm3155, %v3123
  %3381 = vst.msk [vmem:[#allocation2 + $0x708] sm:$0xff] %vm3155, %v3124
  %3382 = vst.msk [vmem:[#allocation2 + $0x710] sm:$0xff] %vm3155, %v3125
  %3383 = vst.msk [vmem:[#allocation2 + $0x718] sm:$0xff] %vm3155, %v3126
  %3384 = vst.msk [vmem:[#allocation2 + $0x720] sm:$0xff] %vm3155, %v3127
  %3385 = vst.msk [vmem:[#allocation2 + $0x728] sm:$0xff] %vm3155, %v3128
  %3386 = vst.msk [vmem:[#allocation2 + $0x730] sm:$0xff] %vm3155, %v3129
  %3387 = vst.msk [vmem:[#allocation2 + $0x738] sm:$0xff] %vm3155, %v3130
  %3388 = vst.msk [vmem:[#allocation2 + $0x740] sm:$0xff] %vm3155, %v3131
  %3389 = vst.msk [vmem:[#allocation2 + $0x748] sm:$0xff] %vm3155, %v3132
  %3390 = vst.msk [vmem:[#allocation2 + $0x750] sm:$0xff] %vm3155, %v3133
  %3391 = vst.msk [vmem:[#allocation2 + $0x758] sm:$0xff] %vm3155, %v3134
  %3392 = vst.msk [vmem:[#allocation2 + $0x760] sm:$0xff] %vm3155, %v3135
  %3393 = vst.msk [vmem:[#allocation2 + $0x768] sm:$0xff] %vm3155, %v3136
  %3394 = vst.msk [vmem:[#allocation2 + $0x770] sm:$0xff] %vm3155, %v3137
  %3395 = vst.msk [vmem:[#allocation2 + $0x778] sm:$0xff] %vm3155, %v3138
  %3396 = vst.msk [vmem:[#allocation2 + $0x780] sm:$0xff] %vm3155, %v3139
  %3397 = vst.msk [vmem:[#allocation2 + $0x788] sm:$0xff] %vm3155, %v3140
  %3398 = vst.msk [vmem:[#allocation2 + $0x790] sm:$0xff] %vm3155, %v3141
  %3399 = vst.msk [vmem:[#allocation2 + $0x798] sm:$0xff] %vm3155, %v3142
  %3400 = vst.msk [vmem:[#allocation2 + $0x7a0] sm:$0xff] %vm3155, %v3143
  %3401 = vst.msk [vmem:[#allocation2 + $0x7a8] sm:$0xff] %vm3155, %v3144
  %3402 = vst.msk [vmem:[#allocation2 + $0x7b0] sm:$0xff] %vm3155, %v3145
  %3403 = vst.msk [vmem:[#allocation2 + $0x7b8] sm:$0xff] %vm3155, %v3146
  %3404 = vst.msk [vmem:[#allocation2 + $0x7c0] sm:$0xff] %vm3155, %v3147
  %3405 = vst.msk [vmem:[#allocation2 + $0x7c8] sm:$0xff] %vm3155, %v3148
  %3406 = vst.msk [vmem:[#allocation2 + $0x7d0] sm:$0xff] %vm3155, %v3149
  %3407 = vst.msk [vmem:[#allocation2 + $0x7d8] sm:$0xff] %vm3155, %v3150
  %3408 = vst.msk [vmem:[#allocation2 + $0x7e0] sm:$0xff] %vm3155, %v3151
  %3409 = vst.msk [vmem:[#allocation2 + $0x7e8] sm:$0xff] %vm3155, %v3152
  %3410 = vst.msk [vmem:[#allocation2 + $0x7f0] sm:$0xff] %vm3155, %v3153
  %3411 = vst.msk [vmem:[#allocation2 + $0x7f8] sm:$0xff] %vm3155, %v3154
  // Predicated region
  $region22: #{tpu_custom_call.1} parent=0 // pred_check
    %p3412 = pneg %p18
  $region23: #{tpu_custom_call.1} parent=0 // pred_check_branch
    %3414 = sbr.rel (%p3412) target = $region25
  $region24: #{tpu_custom_call.1} parent=0 // pred_region
    %v3415 = vld [vmem:[#allocation2] sm:$0xff]
    %v3416 = vld [vmem:[#allocation2 + $0x8] sm:$0xff]
    %v3417 = vld [vmem:[#allocation2 + $0x10] sm:$0xff]
    %v3418 = vld [vmem:[#allocation2 + $0x18] sm:$0xff]
    %v3419 = vld [vmem:[#allocation2 + $0x20] sm:$0xff]
    %v3420 = vld [vmem:[#allocation2 + $0x28] sm:$0xff]
    %v3421 = vld [vmem:[#allocation2 + $0x30] sm:$0xff]
    %v3422 = vld [vmem:[#allocation2 + $0x38] sm:$0xff]
    %v3423 = vld [vmem:[#allocation2 + $0x40] sm:$0xff]
    %v3424 = vld [vmem:[#allocation2 + $0x48] sm:$0xff]
    %v3425 = vld [vmem:[#allocation2 + $0x50] sm:$0xff]
    %v3426 = vld [vmem:[#allocation2 + $0x58] sm:$0xff]
    %v3427 = vld [vmem:[#allocation2 + $0x60] sm:$0xff]
    %v3428 = vld [vmem:[#allocation2 + $0x68] sm:$0xff]
    %v3429 = vld [vmem:[#allocation2 + $0x70] sm:$0xff]
    %v3430 = vld [vmem:[#allocation2 + $0x78] sm:$0xff]
    %v3431 = vld [vmem:[#allocation2 + $0x80] sm:$0xff]
    %v3432 = vld [vmem:[#allocation2 + $0x88] sm:$0xff]
    %v3433 = vld [vmem:[#allocation2 + $0x90] sm:$0xff]
    %v3434 = vld [vmem:[#allocation2 + $0x98] sm:$0xff]
    %v3435 = vld [vmem:[#allocation2 + $0xa0] sm:$0xff]
    %v3436 = vld [vmem:[#allocation2 + $0xa8] sm:$0xff]
    %v3437 = vld [vmem:[#allocation2 + $0xb0] sm:$0xff]
    %v3438 = vld [vmem:[#allocation2 + $0xb8] sm:$0xff]
    %v3439 = vld [vmem:[#allocation2 + $0xc0] sm:$0xff]
    %v3440 = vld [vmem:[#allocation2 + $0xc8] sm:$0xff]
    %v3441 = vld [vmem:[#allocation2 + $0xd0] sm:$0xff]
    %v3442 = vld [vmem:[#allocation2 + $0xd8] sm:$0xff]
    %v3443 = vld [vmem:[#allocation2 + $0xe0] sm:$0xff]
    %v3444 = vld [vmem:[#allocation2 + $0xe8] sm:$0xff]
    %v3445 = vld [vmem:[#allocation2 + $0xf0] sm:$0xff]
    %v3446 = vld [vmem:[#allocation2 + $0xf8] sm:$0xff]
    %v3447 = vld [vmem:[#allocation2 + $0x100] sm:$0xff]
    %v3448 = vld [vmem:[#allocation2 + $0x108] sm:$0xff]
    %v3449 = vld [vmem:[#allocation2 + $0x110] sm:$0xff]
    %v3450 = vld [vmem:[#allocation2 + $0x118] sm:$0xff]
    %v3451 = vld [vmem:[#allocation2 + $0x120] sm:$0xff]
    %v3452 = vld [vmem:[#allocation2 + $0x128] sm:$0xff]
    %v3453 = vld [vmem:[#allocation2 + $0x130] sm:$0xff]
    %v3454 = vld [vmem:[#allocation2 + $0x138] sm:$0xff]
    %v3455 = vld [vmem:[#allocation2 + $0x140] sm:$0xff]
    %v3456 = vld [vmem:[#allocation2 + $0x148] sm:$0xff]
    %v3457 = vld [vmem:[#allocation2 + $0x150] sm:$0xff]
    %v3458 = vld [vmem:[#allocation2 + $0x158] sm:$0xff]
    %v3459 = vld [vmem:[#allocation2 + $0x160] sm:$0xff]
    %v3460 = vld [vmem:[#allocation2 + $0x168] sm:$0xff]
    %v3461 = vld [vmem:[#allocation2 + $0x170] sm:$0xff]
    %v3462 = vld [vmem:[#allocation2 + $0x178] sm:$0xff]
    %v3463 = vld [vmem:[#allocation2 + $0x180] sm:$0xff]
    %v3464 = vld [vmem:[#allocation2 + $0x188] sm:$0xff]
    %v3465 = vld [vmem:[#allocation2 + $0x190] sm:$0xff]
    %v3466 = vld [vmem:[#allocation2 + $0x198] sm:$0xff]
    %v3467 = vld [vmem:[#allocation2 + $0x1a0] sm:$0xff]
    %v3468 = vld [vmem:[#allocation2 + $0x1a8] sm:$0xff]
    %v3469 = vld [vmem:[#allocation2 + $0x1b0] sm:$0xff]
    %v3470 = vld [vmem:[#allocation2 + $0x1b8] sm:$0xff]
    %v3471 = vld [vmem:[#allocation2 + $0x1c0] sm:$0xff]
    %v3472 = vld [vmem:[#allocation2 + $0x1c8] sm:$0xff]
    %v3473 = vld [vmem:[#allocation2 + $0x1d0] sm:$0xff]
    %v3474 = vld [vmem:[#allocation2 + $0x1d8] sm:$0xff]
    %v3475 = vld [vmem:[#allocation2 + $0x1e0] sm:$0xff]
    %v3476 = vld [vmem:[#allocation2 + $0x1e8] sm:$0xff]
    %v3477 = vld [vmem:[#allocation2 + $0x1f0] sm:$0xff]
    %v3478 = vld [vmem:[#allocation2 + $0x1f8] sm:$0xff]
    %v3479 = vld [vmem:[#allocation2 + $0x200] sm:$0xff]
    %v3480 = vld [vmem:[#allocation2 + $0x208] sm:$0xff]
    %v3481 = vld [vmem:[#allocation2 + $0x210] sm:$0xff]
    %v3482 = vld [vmem:[#allocation2 + $0x218] sm:$0xff]
    %v3483 = vld [vmem:[#allocation2 + $0x220] sm:$0xff]
    %v3484 = vld [vmem:[#allocation2 + $0x228] sm:$0xff]
    %v3485 = vld [vmem:[#allocation2 + $0x230] sm:$0xff]
    %v3486 = vld [vmem:[#allocation2 + $0x238] sm:$0xff]
    %v3487 = vld [vmem:[#allocation2 + $0x240] sm:$0xff]
    %v3488 = vld [vmem:[#allocation2 + $0x248] sm:$0xff]
    %v3489 = vld [vmem:[#allocation2 + $0x250] sm:$0xff]
    %v3490 = vld [vmem:[#allocation2 + $0x258] sm:$0xff]
    %v3491 = vld [vmem:[#allocation2 + $0x260] sm:$0xff]
    %v3492 = vld [vmem:[#allocation2 + $0x268] sm:$0xff]
    %v3493 = vld [vmem:[#allocation2 + $0x270] sm:$0xff]
    %v3494 = vld [vmem:[#allocation2 + $0x278] sm:$0xff]
    %v3495 = vld [vmem:[#allocation2 + $0x280] sm:$0xff]
    %v3496 = vld [vmem:[#allocation2 + $0x288] sm:$0xff]
    %v3497 = vld [vmem:[#allocation2 + $0x290] sm:$0xff]
    %v3498 = vld [vmem:[#allocation2 + $0x298] sm:$0xff]
    %v3499 = vld [vmem:[#allocation2 + $0x2a0] sm:$0xff]
    %v3500 = vld [vmem:[#allocation2 + $0x2a8] sm:$0xff]
    %v3501 = vld [vmem:[#allocation2 + $0x2b0] sm:$0xff]
    %v3502 = vld [vmem:[#allocation2 + $0x2b8] sm:$0xff]
    %v3503 = vld [vmem:[#allocation2 + $0x2c0] sm:$0xff]
    %v3504 = vld [vmem:[#allocation2 + $0x2c8] sm:$0xff]
    %v3505 = vld [vmem:[#allocation2 + $0x2d0] sm:$0xff]
    %v3506 = vld [vmem:[#allocation2 + $0x2d8] sm:$0xff]
    %v3507 = vld [vmem:[#allocation2 + $0x2e0] sm:$0xff]
    %v3508 = vld [vmem:[#allocation2 + $0x2e8] sm:$0xff]
    %v3509 = vld [vmem:[#allocation2 + $0x2f0] sm:$0xff]
    %v3510 = vld [vmem:[#allocation2 + $0x2f8] sm:$0xff]
    %v3511 = vld [vmem:[#allocation2 + $0x300] sm:$0xff]
    %v3512 = vld [vmem:[#allocation2 + $0x308] sm:$0xff]
    %v3513 = vld [vmem:[#allocation2 + $0x310] sm:$0xff]
    %v3514 = vld [vmem:[#allocation2 + $0x318] sm:$0xff]
    %v3515 = vld [vmem:[#allocation2 + $0x320] sm:$0xff]
    %v3516 = vld [vmem:[#allocation2 + $0x328] sm:$0xff]
    %v3517 = vld [vmem:[#allocation2 + $0x330] sm:$0xff]
    %v3518 = vld [vmem:[#allocation2 + $0x338] sm:$0xff]
    %v3519 = vld [vmem:[#allocation2 + $0x340] sm:$0xff]
    %v3520 = vld [vmem:[#allocation2 + $0x348] sm:$0xff]
    %v3521 = vld [vmem:[#allocation2 + $0x350] sm:$0xff]
    %v3522 = vld [vmem:[#allocation2 + $0x358] sm:$0xff]
    %v3523 = vld [vmem:[#allocation2 + $0x360] sm:$0xff]
    %v3524 = vld [vmem:[#allocation2 + $0x368] sm:$0xff]
    %v3525 = vld [vmem:[#allocation2 + $0x370] sm:$0xff]
    %v3526 = vld [vmem:[#allocation2 + $0x378] sm:$0xff]
    %v3527 = vld [vmem:[#allocation2 + $0x380] sm:$0xff]
    %v3528 = vld [vmem:[#allocation2 + $0x388] sm:$0xff]
    %v3529 = vld [vmem:[#allocation2 + $0x390] sm:$0xff]
    %v3530 = vld [vmem:[#allocation2 + $0x398] sm:$0xff]
    %v3531 = vld [vmem:[#allocation2 + $0x3a0] sm:$0xff]
    %v3532 = vld [vmem:[#allocation2 + $0x3a8] sm:$0xff]
    %v3533 = vld [vmem:[#allocation2 + $0x3b0] sm:$0xff]
    %v3534 = vld [vmem:[#allocation2 + $0x3b8] sm:$0xff]
    %v3535 = vld [vmem:[#allocation2 + $0x3c0] sm:$0xff]
    %v3536 = vld [vmem:[#allocation2 + $0x3c8] sm:$0xff]
    %v3537 = vld [vmem:[#allocation2 + $0x3d0] sm:$0xff]
    %v3538 = vld [vmem:[#allocation2 + $0x3d8] sm:$0xff]
    %v3539 = vld [vmem:[#allocation2 + $0x3e0] sm:$0xff]
    %v3540 = vld [vmem:[#allocation2 + $0x3e8] sm:$0xff]
    %v3541 = vld [vmem:[#allocation2 + $0x3f0] sm:$0xff]
    %v3542 = vld [vmem:[#allocation2 + $0x3f8] sm:$0xff]
    %v3543 = vld [vmem:[#allocation2 + $0x400] sm:$0xff]
    %v3544 = vld [vmem:[#allocation2 + $0x408] sm:$0xff]
    %v3545 = vld [vmem:[#allocation2 + $0x410] sm:$0xff]
    %v3546 = vld [vmem:[#allocation2 + $0x418] sm:$0xff]
    %v3547 = vld [vmem:[#allocation2 + $0x420] sm:$0xff]
    %v3548 = vld [vmem:[#allocation2 + $0x428] sm:$0xff]
    %v3549 = vld [vmem:[#allocation2 + $0x430] sm:$0xff]
    %v3550 = vld [vmem:[#allocation2 + $0x438] sm:$0xff]
    %v3551 = vld [vmem:[#allocation2 + $0x440] sm:$0xff]
    %v3552 = vld [vmem:[#allocation2 + $0x448] sm:$0xff]
    %v3553 = vld [vmem:[#allocation2 + $0x450] sm:$0xff]
    %v3554 = vld [vmem:[#allocation2 + $0x458] sm:$0xff]
    %v3555 = vld [vmem:[#allocation2 + $0x460] sm:$0xff]
    %v3556 = vld [vmem:[#allocation2 + $0x468] sm:$0xff]
    %v3557 = vld [vmem:[#allocation2 + $0x470] sm:$0xff]
    %v3558 = vld [vmem:[#allocation2 + $0x478] sm:$0xff]
    %v3559 = vld [vmem:[#allocation2 + $0x480] sm:$0xff]
    %v3560 = vld [vmem:[#allocation2 + $0x488] sm:$0xff]
    %v3561 = vld [vmem:[#allocation2 + $0x490] sm:$0xff]
    %v3562 = vld [vmem:[#allocation2 + $0x498] sm:$0xff]
    %v3563 = vld [vmem:[#allocation2 + $0x4a0] sm:$0xff]
    %v3564 = vld [vmem:[#allocation2 + $0x4a8] sm:$0xff]
    %v3565 = vld [vmem:[#allocation2 + $0x4b0] sm:$0xff]
    %v3566 = vld [vmem:[#allocation2 + $0x4b8] sm:$0xff]
    %v3567 = vld [vmem:[#allocation2 + $0x4c0] sm:$0xff]
    %v3568 = vld [vmem:[#allocation2 + $0x4c8] sm:$0xff]
    %v3569 = vld [vmem:[#allocation2 + $0x4d0] sm:$0xff]
    %v3570 = vld [vmem:[#allocation2 + $0x4d8] sm:$0xff]
    %v3571 = vld [vmem:[#allocation2 + $0x4e0] sm:$0xff]
    %v3572 = vld [vmem:[#allocation2 + $0x4e8] sm:$0xff]
    %v3573 = vld [vmem:[#allocation2 + $0x4f0] sm:$0xff]
    %v3574 = vld [vmem:[#allocation2 + $0x4f8] sm:$0xff]
    %v3575 = vld [vmem:[#allocation2 + $0x500] sm:$0xff]
    %v3576 = vld [vmem:[#allocation2 + $0x508] sm:$0xff]
    %v3577 = vld [vmem:[#allocation2 + $0x510] sm:$0xff]
    %v3578 = vld [vmem:[#allocation2 + $0x518] sm:$0xff]
    %v3579 = vld [vmem:[#allocation2 + $0x520] sm:$0xff]
    %v3580 = vld [vmem:[#allocation2 + $0x528] sm:$0xff]
    %v3581 = vld [vmem:[#allocation2 + $0x530] sm:$0xff]
    %v3582 = vld [vmem:[#allocation2 + $0x538] sm:$0xff]
    %v3583 = vld [vmem:[#allocation2 + $0x540] sm:$0xff]
    %v3584 = vld [vmem:[#allocation2 + $0x548] sm:$0xff]
    %v3585 = vld [vmem:[#allocation2 + $0x550] sm:$0xff]
    %v3586 = vld [vmem:[#allocation2 + $0x558] sm:$0xff]
    %v3587 = vld [vmem:[#allocation2 + $0x560] sm:$0xff]
    %v3588 = vld [vmem:[#allocation2 + $0x568] sm:$0xff]
    %v3589 = vld [vmem:[#allocation2 + $0x570] sm:$0xff]
    %v3590 = vld [vmem:[#allocation2 + $0x578] sm:$0xff]
    %v3591 = vld [vmem:[#allocation2 + $0x580] sm:$0xff]
    %v3592 = vld [vmem:[#allocation2 + $0x588] sm:$0xff]
    %v3593 = vld [vmem:[#allocation2 + $0x590] sm:$0xff]
    %v3594 = vld [vmem:[#allocation2 + $0x598] sm:$0xff]
    %v3595 = vld [vmem:[#allocation2 + $0x5a0] sm:$0xff]
    %v3596 = vld [vmem:[#allocation2 + $0x5a8] sm:$0xff]
    %v3597 = vld [vmem:[#allocation2 + $0x5b0] sm:$0xff]
    %v3598 = vld [vmem:[#allocation2 + $0x5b8] sm:$0xff]
    %v3599 = vld [vmem:[#allocation2 + $0x5c0] sm:$0xff]
    %v3600 = vld [vmem:[#allocation2 + $0x5c8] sm:$0xff]
    %v3601 = vld [vmem:[#allocation2 + $0x5d0] sm:$0xff]
    %v3602 = vld [vmem:[#allocation2 + $0x5d8] sm:$0xff]
    %v3603 = vld [vmem:[#allocation2 + $0x5e0] sm:$0xff]
    %v3604 = vld [vmem:[#allocation2 + $0x5e8] sm:$0xff]
    %v3605 = vld [vmem:[#allocation2 + $0x5f0] sm:$0xff]
    %v3606 = vld [vmem:[#allocation2 + $0x5f8] sm:$0xff]
    %v3607 = vld [vmem:[#allocation2 + $0x600] sm:$0xff]
    %v3608 = vld [vmem:[#allocation2 + $0x608] sm:$0xff]
    %v3609 = vld [vmem:[#allocation2 + $0x610] sm:$0xff]
    %v3610 = vld [vmem:[#allocation2 + $0x618] sm:$0xff]
    %v3611 = vld [vmem:[#allocation2 + $0x620] sm:$0xff]
    %v3612 = vld [vmem:[#allocation2 + $0x628] sm:$0xff]
    %v3613 = vld [vmem:[#allocation2 + $0x630] sm:$0xff]
    %v3614 = vld [vmem:[#allocation2 + $0x638] sm:$0xff]
    %v3615 = vld [vmem:[#allocation2 + $0x640] sm:$0xff]
    %v3616 = vld [vmem:[#allocation2 + $0x648] sm:$0xff]
    %v3617 = vld [vmem:[#allocation2 + $0x650] sm:$0xff]
    %v3618 = vld [vmem:[#allocation2 + $0x658] sm:$0xff]
    %v3619 = vld [vmem:[#allocation2 + $0x660] sm:$0xff]
    %v3620 = vld [vmem:[#allocation2 + $0x668] sm:$0xff]
    %v3621 = vld [vmem:[#allocation2 + $0x670] sm:$0xff]
    %v3622 = vld [vmem:[#allocation2 + $0x678] sm:$0xff]
    %v3623 = vld [vmem:[#allocation2 + $0x680] sm:$0xff]
    %v3624 = vld [vmem:[#allocation2 + $0x688] sm:$0xff]
    %v3625 = vld [vmem:[#allocation2 + $0x690] sm:$0xff]
    %v3626 = vld [vmem:[#allocation2 + $0x698] sm:$0xff]
    %v3627 = vld [vmem:[#allocation2 + $0x6a0] sm:$0xff]
    %v3628 = vld [vmem:[#allocation2 + $0x6a8] sm:$0xff]
    %v3629 = vld [vmem:[#allocation2 + $0x6b0] sm:$0xff]
    %v3630 = vld [vmem:[#allocation2 + $0x6b8] sm:$0xff]
    %v3631 = vld [vmem:[#allocation2 + $0x6c0] sm:$0xff]
    %v3632 = vld [vmem:[#allocation2 + $0x6c8] sm:$0xff]
    %v3633 = vld [vmem:[#allocation2 + $0x6d0] sm:$0xff]
    %v3634 = vld [vmem:[#allocation2 + $0x6d8] sm:$0xff]
    %v3635 = vld [vmem:[#allocation2 + $0x6e0] sm:$0xff]
    %v3636 = vld [vmem:[#allocation2 + $0x6e8] sm:$0xff]
    %v3637 = vld [vmem:[#allocation2 + $0x6f0] sm:$0xff]
    %v3638 = vld [vmem:[#allocation2 + $0x6f8] sm:$0xff]
    %v3639 = vld [vmem:[#allocation2 + $0x700] sm:$0xff]
    %v3640 = vld [vmem:[#allocation2 + $0x708] sm:$0xff]
    %v3641 = vld [vmem:[#allocation2 + $0x710] sm:$0xff]
    %v3642 = vld [vmem:[#allocation2 + $0x718] sm:$0xff]
    %v3643 = vld [vmem:[#allocation2 + $0x720] sm:$0xff]
    %v3644 = vld [vmem:[#allocation2 + $0x728] sm:$0xff]
    %v3645 = vld [vmem:[#allocation2 + $0x730] sm:$0xff]
    %v3646 = vld [vmem:[#allocation2 + $0x738] sm:$0xff]
    %v3647 = vld [vmem:[#allocation2 + $0x740] sm:$0xff]
    %v3648 = vld [vmem:[#allocation2 + $0x748] sm:$0xff]
    %v3649 = vld [vmem:[#allocation2 + $0x750] sm:$0xff]
    %v3650 = vld [vmem:[#allocation2 + $0x758] sm:$0xff]
    %v3651 = vld [vmem:[#allocation2 + $0x760] sm:$0xff]
    %v3652 = vld [vmem:[#allocation2 + $0x768] sm:$0xff]
    %v3653 = vld [vmem:[#allocation2 + $0x770] sm:$0xff]
    %v3654 = vld [vmem:[#allocation2 + $0x778] sm:$0xff]
    %v3655 = vld [vmem:[#allocation2 + $0x780] sm:$0xff]
    %v3656 = vld [vmem:[#allocation2 + $0x788] sm:$0xff]
    %v3657 = vld [vmem:[#allocation2 + $0x790] sm:$0xff]
    %v3658 = vld [vmem:[#allocation2 + $0x798] sm:$0xff]
    %v3659 = vld [vmem:[#allocation2 + $0x7a0] sm:$0xff]
    %v3660 = vld [vmem:[#allocation2 + $0x7a8] sm:$0xff]
    %v3661 = vld [vmem:[#allocation2 + $0x7b0] sm:$0xff]
    %v3662 = vld [vmem:[#allocation2 + $0x7b8] sm:$0xff]
    %v3663 = vld [vmem:[#allocation2 + $0x7c0] sm:$0xff]
    %v3664 = vld [vmem:[#allocation2 + $0x7c8] sm:$0xff]
    %v3665 = vld [vmem:[#allocation2 + $0x7d0] sm:$0xff]
    %v3666 = vld [vmem:[#allocation2 + $0x7d8] sm:$0xff]
    %v3667 = vld [vmem:[#allocation2 + $0x7e0] sm:$0xff]
    %v3668 = vld [vmem:[#allocation2 + $0x7e8] sm:$0xff]
    %v3669 = vld [vmem:[#allocation2 + $0x7f0] sm:$0xff]
    %v3670 = vld [vmem:[#allocation2 + $0x7f8] sm:$0xff]
    %v3671 = vld [vmem:[%s2] sm:$0x1]
    %v3673 = vlaneseq
    %v3674 = vshrl.u32 %v3673, 7
    %v3675 = vsub.s32 0, %v3674
    %v3676 = vrot.slane %v3671, %v3675
    %v3678 = vmul.f32 %v3415, %v3676
    %v3679 = vmul.f32 %v3416, %v3676
    %v3680 = vmul.f32 %v3417, %v3676
    %v3681 = vmul.f32 %v3418, %v3676
    %v3682 = vmul.f32 %v3419, %v3676
    %v3683 = vmul.f32 %v3420, %v3676
    %v3684 = vmul.f32 %v3421, %v3676
    %v3685 = vmul.f32 %v3422, %v3676
    %v3686 = vmul.f32 %v3423, %v3676
    %v3687 = vmul.f32 %v3424, %v3676
    %v3688 = vmul.f32 %v3425, %v3676
    %v3689 = vmul.f32 %v3426, %v3676
    %v3690 = vmul.f32 %v3427, %v3676
    %v3691 = vmul.f32 %v3428, %v3676
    %v3692 = vmul.f32 %v3429, %v3676
    %v3693 = vmul.f32 %v3430, %v3676
    %v3694 = vmul.f32 %v3431, %v3676
    %v3695 = vmul.f32 %v3432, %v3676
    %v3696 = vmul.f32 %v3433, %v3676
    %v3697 = vmul.f32 %v3434, %v3676
    %v3698 = vmul.f32 %v3435, %v3676
    %v3699 = vmul.f32 %v3436, %v3676
    %v3700 = vmul.f32 %v3437, %v3676
    %v3701 = vmul.f32 %v3438, %v3676
    %v3702 = vmul.f32 %v3439, %v3676
    %v3703 = vmul.f32 %v3440, %v3676
    %v3704 = vmul.f32 %v3441, %v3676
    %v3705 = vmul.f32 %v3442, %v3676
    %v3706 = vmul.f32 %v3443, %v3676
    %v3707 = vmul.f32 %v3444, %v3676
    %v3708 = vmul.f32 %v3445, %v3676
    %v3709 = vmul.f32 %v3446, %v3676
    %v3710 = vmul.f32 %v3447, %v3676
    %v3711 = vmul.f32 %v3448, %v3676
    %v3712 = vmul.f32 %v3449, %v3676
    %v3713 = vmul.f32 %v3450, %v3676
    %v3714 = vmul.f32 %v3451, %v3676
    %v3715 = vmul.f32 %v3452, %v3676
    %v3716 = vmul.f32 %v3453, %v3676
    %v3717 = vmul.f32 %v3454, %v3676
    %v3718 = vmul.f32 %v3455, %v3676
    %v3719 = vmul.f32 %v3456, %v3676
    %v3720 = vmul.f32 %v3457, %v3676
    %v3721 = vmul.f32 %v3458, %v3676
    %v3722 = vmul.f32 %v3459, %v3676
    %v3723 = vmul.f32 %v3460, %v3676
    %v3724 = vmul.f32 %v3461, %v3676
    %v3725 = vmul.f32 %v3462, %v3676
    %v3726 = vmul.f32 %v3463, %v3676
    %v3727 = vmul.f32 %v3464, %v3676
    %v3728 = vmul.f32 %v3465, %v3676
    %v3729 = vmul.f32 %v3466, %v3676
    %v3730 = vmul.f32 %v3467, %v3676
    %v3731 = vmul.f32 %v3468, %v3676
    %v3732 = vmul.f32 %v3469, %v3676
    %v3733 = vmul.f32 %v3470, %v3676
    %v3734 = vmul.f32 %v3471, %v3676
    %v3735 = vmul.f32 %v3472, %v3676
    %v3736 = vmul.f32 %v3473, %v3676
    %v3737 = vmul.f32 %v3474, %v3676
    %v3738 = vmul.f32 %v3475, %v3676
    %v3739 = vmul.f32 %v3476, %v3676
    %v3740 = vmul.f32 %v3477, %v3676
    %v3741 = vmul.f32 %v3478, %v3676
    %v3742 = vmul.f32 %v3479, %v3676
    %v3743 = vmul.f32 %v3480, %v3676
    %v3744 = vmul.f32 %v3481, %v3676
    %v3745 = vmul.f32 %v3482, %v3676
    %v3746 = vmul.f32 %v3483, %v3676
    %v3747 = vmul.f32 %v3484, %v3676
    %v3748 = vmul.f32 %v3485, %v3676
    %v3749 = vmul.f32 %v3486, %v3676
    %v3750 = vmul.f32 %v3487, %v3676
    %v3751 = vmul.f32 %v3488, %v3676
    %v3752 = vmul.f32 %v3489, %v3676
    %v3753 = vmul.f32 %v3490, %v3676
    %v3754 = vmul.f32 %v3491, %v3676
    %v3755 = vmul.f32 %v3492, %v3676
    %v3756 = vmul.f32 %v3493, %v3676
    %v3757 = vmul.f32 %v3494, %v3676
    %v3758 = vmul.f32 %v3495, %v3676
    %v3759 = vmul.f32 %v3496, %v3676
    %v3760 = vmul.f32 %v3497, %v3676
    %v3761 = vmul.f32 %v3498, %v3676
    %v3762 = vmul.f32 %v3499, %v3676
    %v3763 = vmul.f32 %v3500, %v3676
    %v3764 = vmul.f32 %v3501, %v3676
    %v3765 = vmul.f32 %v3502, %v3676
    %v3766 = vmul.f32 %v3503, %v3676
    %v3767 = vmul.f32 %v3504, %v3676
    %v3768 = vmul.f32 %v3505, %v3676
    %v3769 = vmul.f32 %v3506, %v3676
    %v3770 = vmul.f32 %v3507, %v3676
    %v3771 = vmul.f32 %v3508, %v3676
    %v3772 = vmul.f32 %v3509, %v3676
    %v3773 = vmul.f32 %v3510, %v3676
    %v3774 = vmul.f32 %v3511, %v3676
    %v3775 = vmul.f32 %v3512, %v3676
    %v3776 = vmul.f32 %v3513, %v3676
    %v3777 = vmul.f32 %v3514, %v3676
    %v3778 = vmul.f32 %v3515, %v3676
    %v3779 = vmul.f32 %v3516, %v3676
    %v3780 = vmul.f32 %v3517, %v3676
    %v3781 = vmul.f32 %v3518, %v3676
    %v3782 = vmul.f32 %v3519, %v3676
    %v3783 = vmul.f32 %v3520, %v3676
    %v3784 = vmul.f32 %v3521, %v3676
    %v3785 = vmul.f32 %v3522, %v3676
    %v3786 = vmul.f32 %v3523, %v3676
    %v3787 = vmul.f32 %v3524, %v3676
    %v3788 = vmul.f32 %v3525, %v3676
    %v3789 = vmul.f32 %v3526, %v3676
    %v3790 = vmul.f32 %v3527, %v3676
    %v3791 = vmul.f32 %v3528, %v3676
    %v3792 = vmul.f32 %v3529, %v3676
    %v3793 = vmul.f32 %v3530, %v3676
    %v3794 = vmul.f32 %v3531, %v3676
    %v3795 = vmul.f32 %v3532, %v3676
    %v3796 = vmul.f32 %v3533, %v3676
    %v3797 = vmul.f32 %v3534, %v3676
    %v3798 = vmul.f32 %v3535, %v3676
    %v3799 = vmul.f32 %v3536, %v3676
    %v3800 = vmul.f32 %v3537, %v3676
    %v3801 = vmul.f32 %v3538, %v3676
    %v3802 = vmul.f32 %v3539, %v3676
    %v3803 = vmul.f32 %v3540, %v3676
    %v3804 = vmul.f32 %v3541, %v3676
    %v3805 = vmul.f32 %v3542, %v3676
    %v3806 = vmul.f32 %v3543, %v3676
    %v3807 = vmul.f32 %v3544, %v3676
    %v3808 = vmul.f32 %v3545, %v3676
    %v3809 = vmul.f32 %v3546, %v3676
    %v3810 = vmul.f32 %v3547, %v3676
    %v3811 = vmul.f32 %v3548, %v3676
    %v3812 = vmul.f32 %v3549, %v3676
    %v3813 = vmul.f32 %v3550, %v3676
    %v3814 = vmul.f32 %v3551, %v3676
    %v3815 = vmul.f32 %v3552, %v3676
    %v3816 = vmul.f32 %v3553, %v3676
    %v3817 = vmul.f32 %v3554, %v3676
    %v3818 = vmul.f32 %v3555, %v3676
    %v3819 = vmul.f32 %v3556, %v3676
    %v3820 = vmul.f32 %v3557, %v3676
    %v3821 = vmul.f32 %v3558, %v3676
    %v3822 = vmul.f32 %v3559, %v3676
    %v3823 = vmul.f32 %v3560, %v3676
    %v3824 = vmul.f32 %v3561, %v3676
    %v3825 = vmul.f32 %v3562, %v3676
    %v3826 = vmul.f32 %v3563, %v3676
    %v3827 = vmul.f32 %v3564, %v3676
    %v3828 = vmul.f32 %v3565, %v3676
    %v3829 = vmul.f32 %v3566, %v3676
    %v3830 = vmul.f32 %v3567, %v3676
    %v3831 = vmul.f32 %v3568, %v3676
    %v3832 = vmul.f32 %v3569, %v3676
    %v3833 = vmul.f32 %v3570, %v3676
    %v3834 = vmul.f32 %v3571, %v3676
    %v3835 = vmul.f32 %v3572, %v3676
    %v3836 = vmul.f32 %v3573, %v3676
    %v3837 = vmul.f32 %v3574, %v3676
    %v3838 = vmul.f32 %v3575, %v3676
    %v3839 = vmul.f32 %v3576, %v3676
    %v3840 = vmul.f32 %v3577, %v3676
    %v3841 = vmul.f32 %v3578, %v3676
    %v3842 = vmul.f32 %v3579, %v3676
    %v3843 = vmul.f32 %v3580, %v3676
    %v3844 = vmul.f32 %v3581, %v3676
    %v3845 = vmul.f32 %v3582, %v3676
    %v3846 = vmul.f32 %v3583, %v3676
    %v3847 = vmul.f32 %v3584, %v3676
    %v3848 = vmul.f32 %v3585, %v3676
    %v3849 = vmul.f32 %v3586, %v3676
    %v3850 = vmul.f32 %v3587, %v3676
    %v3851 = vmul.f32 %v3588, %v3676
    %v3852 = vmul.f32 %v3589, %v3676
    %v3853 = vmul.f32 %v3590, %v3676
    %v3854 = vmul.f32 %v3591, %v3676
    %v3855 = vmul.f32 %v3592, %v3676
    %v3856 = vmul.f32 %v3593, %v3676
    %v3857 = vmul.f32 %v3594, %v3676
    %v3858 = vmul.f32 %v3595, %v3676
    %v3859 = vmul.f32 %v3596, %v3676
    %v3860 = vmul.f32 %v3597, %v3676
    %v3861 = vmul.f32 %v3598, %v3676
    %v3862 = vmul.f32 %v3599, %v3676
    %v3863 = vmul.f32 %v3600, %v3676
    %v3864 = vmul.f32 %v3601, %v3676
    %v3865 = vmul.f32 %v3602, %v3676
    %v3866 = vmul.f32 %v3603, %v3676
    %v3867 = vmul.f32 %v3604, %v3676
    %v3868 = vmul.f32 %v3605, %v3676
    %v3869 = vmul.f32 %v3606, %v3676
    %v3870 = vmul.f32 %v3607, %v3676
    %v3871 = vmul.f32 %v3608, %v3676
    %v3872 = vmul.f32 %v3609, %v3676
    %v3873 = vmul.f32 %v3610, %v3676
    %v3874 = vmul.f32 %v3611, %v3676
    %v3875 = vmul.f32 %v3612, %v3676
    %v3876 = vmul.f32 %v3613, %v3676
    %v3877 = vmul.f32 %v3614, %v3676
    %v3878 = vmul.f32 %v3615, %v3676
    %v3879 = vmul.f32 %v3616, %v3676
    %v3880 = vmul.f32 %v3617, %v3676
    %v3881 = vmul.f32 %v3618, %v3676
    %v3882 = vmul.f32 %v3619, %v3676
    %v3883 = vmul.f32 %v3620, %v3676
    %v3884 = vmul.f32 %v3621, %v3676
    %v3885 = vmul.f32 %v3622, %v3676
    %v3886 = vmul.f32 %v3623, %v3676
    %v3887 = vmul.f32 %v3624, %v3676
    %v3888 = vmul.f32 %v3625, %v3676
    %v3889 = vmul.f32 %v3626, %v3676
    %v3890 = vmul.f32 %v3627, %v3676
    %v3891 = vmul.f32 %v3628, %v3676
    %v3892 = vmul.f32 %v3629, %v3676
    %v3893 = vmul.f32 %v3630, %v3676
    %v3894 = vmul.f32 %v3631, %v3676
    %v3895 = vmul.f32 %v3632, %v3676
    %v3896 = vmul.f32 %v3633, %v3676
    %v3897 = vmul.f32 %v3634, %v3676
    %v3898 = vmul.f32 %v3635, %v3676
    %v3899 = vmul.f32 %v3636, %v3676
    %v3900 = vmul.f32 %v3637, %v3676
    %v3901 = vmul.f32 %v3638, %v3676
    %v3902 = vmul.f32 %v3639, %v3676
    %v3903 = vmul.f32 %v3640, %v3676
    %v3904 = vmul.f32 %v3641, %v3676
    %v3905 = vmul.f32 %v3642, %v3676
    %v3906 = vmul.f32 %v3643, %v3676
    %v3907 = vmul.f32 %v3644, %v3676
    %v3908 = vmul.f32 %v3645, %v3676
    %v3909 = vmul.f32 %v3646, %v3676
    %v3910 = vmul.f32 %v3647, %v3676
    %v3911 = vmul.f32 %v3648, %v3676
    %v3912 = vmul.f32 %v3649, %v3676
    %v3913 = vmul.f32 %v3650, %v3676
    %v3914 = vmul.f32 %v3651, %v3676
    %v3915 = vmul.f32 %v3652, %v3676
    %v3916 = vmul.f32 %v3653, %v3676
    %v3917 = vmul.f32 %v3654, %v3676
    %v3918 = vmul.f32 %v3655, %v3676
    %v3919 = vmul.f32 %v3656, %v3676
    %v3920 = vmul.f32 %v3657, %v3676
    %v3921 = vmul.f32 %v3658, %v3676
    %v3922 = vmul.f32 %v3659, %v3676
    %v3923 = vmul.f32 %v3660, %v3676
    %v3924 = vmul.f32 %v3661, %v3676
    %v3925 = vmul.f32 %v3662, %v3676
    %v3926 = vmul.f32 %v3663, %v3676
    %v3927 = vmul.f32 %v3664, %v3676
    %v3928 = vmul.f32 %v3665, %v3676
    %v3929 = vmul.f32 %v3666, %v3676
    %v3930 = vmul.f32 %v3667, %v3676
    %v3931 = vmul.f32 %v3668, %v3676
    %v3932 = vmul.f32 %v3669, %v3676
    %v3933 = vmul.f32 %v3670, %v3676
    %v3934 = vld [vmem:[%s3] sm:$0x1]
    %v3936 = vlaneseq
    %v3937 = vshrl.u32 %v3936, 7
    %v3938 = vsub.s32 0, %v3937
    %v3939 = vrot.slane %v3934, %v3938
    %v3941 = vadd.f32 %v3678, %v3939
    %v3942 = vadd.f32 %v3679, %v3939
    %v3943 = vadd.f32 %v3680, %v3939
    %v3944 = vadd.f32 %v3681, %v3939
    %v3945 = vadd.f32 %v3682, %v3939
    %v3946 = vadd.f32 %v3683, %v3939
    %v3947 = vadd.f32 %v3684, %v3939
    %v3948 = vadd.f32 %v3685, %v3939
    %v3949 = vadd.f32 %v3686, %v3939
    %v3950 = vadd.f32 %v3687, %v3939
    %v3951 = vadd.f32 %v3688, %v3939
    %v3952 = vadd.f32 %v3689, %v3939
    %v3953 = vadd.f32 %v3690, %v3939
    %v3954 = vadd.f32 %v3691, %v3939
    %v3955 = vadd.f32 %v3692, %v3939
    %v3956 = vadd.f32 %v3693, %v3939
    %v3957 = vadd.f32 %v3694, %v3939
    %v3958 = vadd.f32 %v3695, %v3939
    %v3959 = vadd.f32 %v3696, %v3939
    %v3960 = vadd.f32 %v3697, %v3939
    %v3961 = vadd.f32 %v3698, %v3939
    %v3962 = vadd.f32 %v3699, %v3939
    %v3963 = vadd.f32 %v3700, %v3939
    %v3964 = vadd.f32 %v3701, %v3939
    %v3965 = vadd.f32 %v3702, %v3939
    %v3966 = vadd.f32 %v3703, %v3939
    %v3967 = vadd.f32 %v3704, %v3939
    %v3968 = vadd.f32 %v3705, %v3939
    %v3969 = vadd.f32 %v3706, %v3939
    %v3970 = vadd.f32 %v3707, %v3939
    %v3971 = vadd.f32 %v3708, %v3939
    %v3972 = vadd.f32 %v3709, %v3939
    %v3973 = vadd.f32 %v3710, %v3939
    %v3974 = vadd.f32 %v3711, %v3939
    %v3975 = vadd.f32 %v3712, %v3939
    %v3976 = vadd.f32 %v3713, %v3939
    %v3977 = vadd.f32 %v3714, %v3939
    %v3978 = vadd.f32 %v3715, %v3939
    %v3979 = vadd.f32 %v3716, %v3939
    %v3980 = vadd.f32 %v3717, %v3939
    %v3981 = vadd.f32 %v3718, %v3939
    %v3982 = vadd.f32 %v3719, %v3939
    %v3983 = vadd.f32 %v3720, %v3939
    %v3984 = vadd.f32 %v3721, %v3939
    %v3985 = vadd.f32 %v3722, %v3939
    %v3986 = vadd.f32 %v3723, %v3939
    %v3987 = vadd.f32 %v3724, %v3939
    %v3988 = vadd.f32 %v3725, %v3939
    %v3989 = vadd.f32 %v3726, %v3939
    %v3990 = vadd.f32 %v3727, %v3939
    %v3991 = vadd.f32 %v3728, %v3939
    %v3992 = vadd.f32 %v3729, %v3939
    %v3993 = vadd.f32 %v3730, %v3939
    %v3994 = vadd.f32 %v3731, %v3939
    %v3995 = vadd.f32 %v3732, %v3939
    %v3996 = vadd.f32 %v3733, %v3939
    %v3997 = vadd.f32 %v3734, %v3939
    %v3998 = vadd.f32 %v3735, %v3939
    %v3999 = vadd.f32 %v3736, %v3939
    %v4000 = vadd.f32 %v3737, %v3939
    %v4001 = vadd.f32 %v3738, %v3939
    %v4002 = vadd.f32 %v3739, %v3939
    %v4003 = vadd.f32 %v3740, %v3939
    %v4004 = vadd.f32 %v3741, %v3939
    %v4005 = vadd.f32 %v3742, %v3939
    %v4006 = vadd.f32 %v3743, %v3939
    %v4007 = vadd.f32 %v3744, %v3939
    %v4008 = vadd.f32 %v3745, %v3939
    %v4009 = vadd.f32 %v3746, %v3939
    %v4010 = vadd.f32 %v3747, %v3939
    %v4011 = vadd.f32 %v3748, %v3939
    %v4012 = vadd.f32 %v3749, %v3939
    %v4013 = vadd.f32 %v3750, %v3939
    %v4014 = vadd.f32 %v3751, %v3939
    %v4015 = vadd.f32 %v3752, %v3939
    %v4016 = vadd.f32 %v3753, %v3939
    %v4017 = vadd.f32 %v3754, %v3939
    %v4018 = vadd.f32 %v3755, %v3939
    %v4019 = vadd.f32 %v3756, %v3939
    %v4020 = vadd.f32 %v3757, %v3939
    %v4021 = vadd.f32 %v3758, %v3939
    %v4022 = vadd.f32 %v3759, %v3939
    %v4023 = vadd.f32 %v3760, %v3939
    %v4024 = vadd.f32 %v3761, %v3939
    %v4025 = vadd.f32 %v3762, %v3939
    %v4026 = vadd.f32 %v3763, %v3939
    %v4027 = vadd.f32 %v3764, %v3939
    %v4028 = vadd.f32 %v3765, %v3939
    %v4029 = vadd.f32 %v3766, %v3939
    %v4030 = vadd.f32 %v3767, %v3939
    %v4031 = vadd.f32 %v3768, %v3939
    %v4032 = vadd.f32 %v3769, %v3939
    %v4033 = vadd.f32 %v3770, %v3939
    %v4034 = vadd.f32 %v3771, %v3939
    %v4035 = vadd.f32 %v3772, %v3939
    %v4036 = vadd.f32 %v3773, %v3939
    %v4037 = vadd.f32 %v3774, %v3939
    %v4038 = vadd.f32 %v3775, %v3939
    %v4039 = vadd.f32 %v3776, %v3939
    %v4040 = vadd.f32 %v3777, %v3939
    %v4041 = vadd.f32 %v3778, %v3939
    %v4042 = vadd.f32 %v3779, %v3939
    %v4043 = vadd.f32 %v3780, %v3939
    %v4044 = vadd.f32 %v3781, %v3939
    %v4045 = vadd.f32 %v3782, %v3939
    %v4046 = vadd.f32 %v3783, %v3939
    %v4047 = vadd.f32 %v3784, %v3939
    %v4048 = vadd.f32 %v3785, %v3939
    %v4049 = vadd.f32 %v3786, %v3939
    %v4050 = vadd.f32 %v3787, %v3939
    %v4051 = vadd.f32 %v3788, %v3939
    %v4052 = vadd.f32 %v3789, %v3939
    %v4053 = vadd.f32 %v3790, %v3939
    %v4054 = vadd.f32 %v3791, %v3939
    %v4055 = vadd.f32 %v3792, %v3939
    %v4056 = vadd.f32 %v3793, %v3939
    %v4057 = vadd.f32 %v3794, %v3939
    %v4058 = vadd.f32 %v3795, %v3939
    %v4059 = vadd.f32 %v3796, %v3939
    %v4060 = vadd.f32 %v3797, %v3939
    %v4061 = vadd.f32 %v3798, %v3939
    %v4062 = vadd.f32 %v3799, %v3939
    %v4063 = vadd.f32 %v3800, %v3939
    %v4064 = vadd.f32 %v3801, %v3939
    %v4065 = vadd.f32 %v3802, %v3939
    %v4066 = vadd.f32 %v3803, %v3939
    %v4067 = vadd.f32 %v3804, %v3939
    %v4068 = vadd.f32 %v3805, %v3939
    %v4069 = vadd.f32 %v3806, %v3939
    %v4070 = vadd.f32 %v3807, %v3939
    %v4071 = vadd.f32 %v3808, %v3939
    %v4072 = vadd.f32 %v3809, %v3939
    %v4073 = vadd.f32 %v3810, %v3939
    %v4074 = vadd.f32 %v3811, %v3939
    %v4075 = vadd.f32 %v3812, %v3939
    %v4076 = vadd.f32 %v3813, %v3939
    %v4077 = vadd.f32 %v3814, %v3939
    %v4078 = vadd.f32 %v3815, %v3939
    %v4079 = vadd.f32 %v3816, %v3939
    %v4080 = vadd.f32 %v3817, %v3939
    %v4081 = vadd.f32 %v3818, %v3939
    %v4082 = vadd.f32 %v3819, %v3939
    %v4083 = vadd.f32 %v3820, %v3939
    %v4084 = vadd.f32 %v3821, %v3939
    %v4085 = vadd.f32 %v3822, %v3939
    %v4086 = vadd.f32 %v3823, %v3939
    %v4087 = vadd.f32 %v3824, %v3939
    %v4088 = vadd.f32 %v3825, %v3939
    %v4089 = vadd.f32 %v3826, %v3939
    %v4090 = vadd.f32 %v3827, %v3939
    %v4091 = vadd.f32 %v3828, %v3939
    %v4092 = vadd.f32 %v3829, %v3939
    %v4093 = vadd.f32 %v3830, %v3939
    %v4094 = vadd.f32 %v3831, %v3939
    %v4095 = vadd.f32 %v3832, %v3939
    %v4096 = vadd.f32 %v3833, %v3939
    %v4097 = vadd.f32 %v3834, %v3939
    %v4098 = vadd.f32 %v3835, %v3939
    %v4099 = vadd.f32 %v3836, %v3939
    %v4100 = vadd.f32 %v3837, %v3939
    %v4101 = vadd.f32 %v3838, %v3939
    %v4102 = vadd.f32 %v3839, %v3939
    %v4103 = vadd.f32 %v3840, %v3939
    %v4104 = vadd.f32 %v3841, %v3939
    %v4105 = vadd.f32 %v3842, %v3939
    %v4106 = vadd.f32 %v3843, %v3939
    %v4107 = vadd.f32 %v3844, %v3939
    %v4108 = vadd.f32 %v3845, %v3939
    %v4109 = vadd.f32 %v3846, %v3939
    %v4110 = vadd.f32 %v3847, %v3939
    %v4111 = vadd.f32 %v3848, %v3939
    %v4112 = vadd.f32 %v3849, %v3939
    %v4113 = vadd.f32 %v3850, %v3939
    %v4114 = vadd.f32 %v3851, %v3939
    %v4115 = vadd.f32 %v3852, %v3939
    %v4116 = vadd.f32 %v3853, %v3939
    %v4117 = vadd.f32 %v3854, %v3939
    %v4118 = vadd.f32 %v3855, %v3939
    %v4119 = vadd.f32 %v3856, %v3939
    %v4120 = vadd.f32 %v3857, %v3939
    %v4121 = vadd.f32 %v3858, %v3939
    %v4122 = vadd.f32 %v3859, %v3939
    %v4123 = vadd.f32 %v3860, %v3939
    %v4124 = vadd.f32 %v3861, %v3939
    %v4125 = vadd.f32 %v3862, %v3939
    %v4126 = vadd.f32 %v3863, %v3939
    %v4127 = vadd.f32 %v3864, %v3939
    %v4128 = vadd.f32 %v3865, %v3939
    %v4129 = vadd.f32 %v3866, %v3939
    %v4130 = vadd.f32 %v3867, %v3939
    %v4131 = vadd.f32 %v3868, %v3939
    %v4132 = vadd.f32 %v3869, %v3939
    %v4133 = vadd.f32 %v3870, %v3939
    %v4134 = vadd.f32 %v3871, %v3939
    %v4135 = vadd.f32 %v3872, %v3939
    %v4136 = vadd.f32 %v3873, %v3939
    %v4137 = vadd.f32 %v3874, %v3939
    %v4138 = vadd.f32 %v3875, %v3939
    %v4139 = vadd.f32 %v3876, %v3939
    %v4140 = vadd.f32 %v3877, %v3939
    %v4141 = vadd.f32 %v3878, %v3939
    %v4142 = vadd.f32 %v3879, %v3939
    %v4143 = vadd.f32 %v3880, %v3939
    %v4144 = vadd.f32 %v3881, %v3939
    %v4145 = vadd.f32 %v3882, %v3939
    %v4146 = vadd.f32 %v3883, %v3939
    %v4147 = vadd.f32 %v3884, %v3939
    %v4148 = vadd.f32 %v3885, %v3939
    %v4149 = vadd.f32 %v3886, %v3939
    %v4150 = vadd.f32 %v3887, %v3939
    %v4151 = vadd.f32 %v3888, %v3939
    %v4152 = vadd.f32 %v3889, %v3939
    %v4153 = vadd.f32 %v3890, %v3939
    %v4154 = vadd.f32 %v3891, %v3939
    %v4155 = vadd.f32 %v3892, %v3939
    %v4156 = vadd.f32 %v3893, %v3939
    %v4157 = vadd.f32 %v3894, %v3939
    %v4158 = vadd.f32 %v3895, %v3939
    %v4159 = vadd.f32 %v3896, %v3939
    %v4160 = vadd.f32 %v3897, %v3939
    %v4161 = vadd.f32 %v3898, %v3939
    %v4162 = vadd.f32 %v3899, %v3939
    %v4163 = vadd.f32 %v3900, %v3939
    %v4164 = vadd.f32 %v3901, %v3939
    %v4165 = vadd.f32 %v3902, %v3939
    %v4166 = vadd.f32 %v3903, %v3939
    %v4167 = vadd.f32 %v3904, %v3939
    %v4168 = vadd.f32 %v3905, %v3939
    %v4169 = vadd.f32 %v3906, %v3939
    %v4170 = vadd.f32 %v3907, %v3939
    %v4171 = vadd.f32 %v3908, %v3939
    %v4172 = vadd.f32 %v3909, %v3939
    %v4173 = vadd.f32 %v3910, %v3939
    %v4174 = vadd.f32 %v3911, %v3939
    %v4175 = vadd.f32 %v3912, %v3939
    %v4176 = vadd.f32 %v3913, %v3939
    %v4177 = vadd.f32 %v3914, %v3939
    %v4178 = vadd.f32 %v3915, %v3939
    %v4179 = vadd.f32 %v3916, %v3939
    %v4180 = vadd.f32 %v3917, %v3939
    %v4181 = vadd.f32 %v3918, %v3939
    %v4182 = vadd.f32 %v3919, %v3939
    %v4183 = vadd.f32 %v3920, %v3939
    %v4184 = vadd.f32 %v3921, %v3939
    %v4185 = vadd.f32 %v3922, %v3939
    %v4186 = vadd.f32 %v3923, %v3939
    %v4187 = vadd.f32 %v3924, %v3939
    %v4188 = vadd.f32 %v3925, %v3939
    %v4189 = vadd.f32 %v3926, %v3939
    %v4190 = vadd.f32 %v3927, %v3939
    %v4191 = vadd.f32 %v3928, %v3939
    %v4192 = vadd.f32 %v3929, %v3939
    %v4193 = vadd.f32 %v3930, %v3939
    %v4194 = vadd.f32 %v3931, %v3939
    %v4195 = vadd.f32 %v3932, %v3939
    %v4196 = vadd.f32 %v3933, %v3939
    %v4197 = vmax.f32 %v3941, 0.0
    %v4198 = vmax.f32 %v3942, 0.0
    %v4199 = vmax.f32 %v3943, 0.0
    %v4200 = vmax.f32 %v3944, 0.0
    %v4201 = vmax.f32 %v3945, 0.0
    %v4202 = vmax.f32 %v3946, 0.0
    %v4203 = vmax.f32 %v3947, 0.0
    %v4204 = vmax.f32 %v3948, 0.0
    %v4205 = vmax.f32 %v3949, 0.0
    %v4206 = vmax.f32 %v3950, 0.0
    %v4207 = vmax.f32 %v3951, 0.0
    %v4208 = vmax.f32 %v3952, 0.0
    %v4209 = vmax.f32 %v3953, 0.0
    %v4210 = vmax.f32 %v3954, 0.0
    %v4211 = vmax.f32 %v3955, 0.0
    %v4212 = vmax.f32 %v3956, 0.0
    %v4213 = vmax.f32 %v3957, 0.0
    %v4214 = vmax.f32 %v3958, 0.0
    %v4215 = vmax.f32 %v3959, 0.0
    %v4216 = vmax.f32 %v3960, 0.0
    %v4217 = vmax.f32 %v3961, 0.0
    %v4218 = vmax.f32 %v3962, 0.0
    %v4219 = vmax.f32 %v3963, 0.0
    %v4220 = vmax.f32 %v3964, 0.0
    %v4221 = vmax.f32 %v3965, 0.0
    %v4222 = vmax.f32 %v3966, 0.0
    %v4223 = vmax.f32 %v3967, 0.0
    %v4224 = vmax.f32 %v3968, 0.0
    %v4225 = vmax.f32 %v3969, 0.0
    %v4226 = vmax.f32 %v3970, 0.0
    %v4227 = vmax.f32 %v3971, 0.0
    %v4228 = vmax.f32 %v3972, 0.0
    %v4229 = vmax.f32 %v3973, 0.0
    %v4230 = vmax.f32 %v3974, 0.0
    %v4231 = vmax.f32 %v3975, 0.0
    %v4232 = vmax.f32 %v3976, 0.0
    %v4233 = vmax.f32 %v3977, 0.0
    %v4234 = vmax.f32 %v3978, 0.0
    %v4235 = vmax.f32 %v3979, 0.0
    %v4236 = vmax.f32 %v3980, 0.0
    %v4237 = vmax.f32 %v3981, 0.0
    %v4238 = vmax.f32 %v3982, 0.0
    %v4239 = vmax.f32 %v3983, 0.0
    %v4240 = vmax.f32 %v3984, 0.0
    %v4241 = vmax.f32 %v3985, 0.0
    %v4242 = vmax.f32 %v3986, 0.0
    %v4243 = vmax.f32 %v3987, 0.0
    %v4244 = vmax.f32 %v3988, 0.0
    %v4245 = vmax.f32 %v3989, 0.0
    %v4246 = vmax.f32 %v3990, 0.0
    %v4247 = vmax.f32 %v3991, 0.0
    %v4248 = vmax.f32 %v3992, 0.0
    %v4249 = vmax.f32 %v3993, 0.0
    %v4250 = vmax.f32 %v3994, 0.0
    %v4251 = vmax.f32 %v3995, 0.0
    %v4252 = vmax.f32 %v3996, 0.0
    %v4253 = vmax.f32 %v3997, 0.0
    %v4254 = vmax.f32 %v3998, 0.0
    %v4255 = vmax.f32 %v3999, 0.0
    %v4256 = vmax.f32 %v4000, 0.0
    %v4257 = vmax.f32 %v4001, 0.0
    %v4258 = vmax.f32 %v4002, 0.0
    %v4259 = vmax.f32 %v4003, 0.0
    %v4260 = vmax.f32 %v4004, 0.0
    %v4261 = vmax.f32 %v4005, 0.0
    %v4262 = vmax.f32 %v4006, 0.0
    %v4263 = vmax.f32 %v4007, 0.0
    %v4264 = vmax.f32 %v4008, 0.0
    %v4265 = vmax.f32 %v4009, 0.0
    %v4266 = vmax.f32 %v4010, 0.0
    %v4267 = vmax.f32 %v4011, 0.0
    %v4268 = vmax.f32 %v4012, 0.0
    %v4269 = vmax.f32 %v4013, 0.0
    %v4270 = vmax.f32 %v4014, 0.0
    %v4271 = vmax.f32 %v4015, 0.0
    %v4272 = vmax.f32 %v4016, 0.0
    %v4273 = vmax.f32 %v4017, 0.0
    %v4274 = vmax.f32 %v4018, 0.0
    %v4275 = vmax.f32 %v4019, 0.0
    %v4276 = vmax.f32 %v4020, 0.0
    %v4277 = vmax.f32 %v4021, 0.0
    %v4278 = vmax.f32 %v4022, 0.0
    %v4279 = vmax.f32 %v4023, 0.0
    %v4280 = vmax.f32 %v4024, 0.0
    %v4281 = vmax.f32 %v4025, 0.0
    %v4282 = vmax.f32 %v4026, 0.0
    %v4283 = vmax.f32 %v4027, 0.0
    %v4284 = vmax.f32 %v4028, 0.0
    %v4285 = vmax.f32 %v4029, 0.0
    %v4286 = vmax.f32 %v4030, 0.0
    %v4287 = vmax.f32 %v4031, 0.0
    %v4288 = vmax.f32 %v4032, 0.0
    %v4289 = vmax.f32 %v4033, 0.0
    %v4290 = vmax.f32 %v4034, 0.0
    %v4291 = vmax.f32 %v4035, 0.0
    %v4292 = vmax.f32 %v4036, 0.0
    %v4293 = vmax.f32 %v4037, 0.0
    %v4294 = vmax.f32 %v4038, 0.0
    %v4295 = vmax.f32 %v4039, 0.0
    %v4296 = vmax.f32 %v4040, 0.0
    %v4297 = vmax.f32 %v4041, 0.0
    %v4298 = vmax.f32 %v4042, 0.0
    %v4299 = vmax.f32 %v4043, 0.0
    %v4300 = vmax.f32 %v4044, 0.0
    %v4301 = vmax.f32 %v4045, 0.0
    %v4302 = vmax.f32 %v4046, 0.0
    %v4303 = vmax.f32 %v4047, 0.0
    %v4304 = vmax.f32 %v4048, 0.0
    %v4305 = vmax.f32 %v4049, 0.0
    %v4306 = vmax.f32 %v4050, 0.0
    %v4307 = vmax.f32 %v4051, 0.0
    %v4308 = vmax.f32 %v4052, 0.0
    %v4309 = vmax.f32 %v4053, 0.0
    %v4310 = vmax.f32 %v4054, 0.0
    %v4311 = vmax.f32 %v4055, 0.0
    %v4312 = vmax.f32 %v4056, 0.0
    %v4313 = vmax.f32 %v4057, 0.0
    %v4314 = vmax.f32 %v4058, 0.0
    %v4315 = vmax.f32 %v4059, 0.0
    %v4316 = vmax.f32 %v4060, 0.0
    %v4317 = vmax.f32 %v4061, 0.0
    %v4318 = vmax.f32 %v4062, 0.0
    %v4319 = vmax.f32 %v4063, 0.0
    %v4320 = vmax.f32 %v4064, 0.0
    %v4321 = vmax.f32 %v4065, 0.0
    %v4322 = vmax.f32 %v4066, 0.0
    %v4323 = vmax.f32 %v4067, 0.0
    %v4324 = vmax.f32 %v4068, 0.0
    %v4325 = vmax.f32 %v4069, 0.0
    %v4326 = vmax.f32 %v4070, 0.0
    %v4327 = vmax.f32 %v4071, 0.0
    %v4328 = vmax.f32 %v4072, 0.0
    %v4329 = vmax.f32 %v4073, 0.0
    %v4330 = vmax.f32 %v4074, 0.0
    %v4331 = vmax.f32 %v4075, 0.0
    %v4332 = vmax.f32 %v4076, 0.0
    %v4333 = vmax.f32 %v4077, 0.0
    %v4334 = vmax.f32 %v4078, 0.0
    %v4335 = vmax.f32 %v4079, 0.0
    %v4336 = vmax.f32 %v4080, 0.0
    %v4337 = vmax.f32 %v4081, 0.0
    %v4338 = vmax.f32 %v4082, 0.0
    %v4339 = vmax.f32 %v4083, 0.0
    %v4340 = vmax.f32 %v4084, 0.0
    %v4341 = vmax.f32 %v4085, 0.0
    %v4342 = vmax.f32 %v4086, 0.0
    %v4343 = vmax.f32 %v4087, 0.0
    %v4344 = vmax.f32 %v4088, 0.0
    %v4345 = vmax.f32 %v4089, 0.0
    %v4346 = vmax.f32 %v4090, 0.0
    %v4347 = vmax.f32 %v4091, 0.0
    %v4348 = vmax.f32 %v4092, 0.0
    %v4349 = vmax.f32 %v4093, 0.0
    %v4350 = vmax.f32 %v4094, 0.0
    %v4351 = vmax.f32 %v4095, 0.0
    %v4352 = vmax.f32 %v4096, 0.0
    %v4353 = vmax.f32 %v4097, 0.0
    %v4354 = vmax.f32 %v4098, 0.0
    %v4355 = vmax.f32 %v4099, 0.0
    %v4356 = vmax.f32 %v4100, 0.0
    %v4357 = vmax.f32 %v4101, 0.0
    %v4358 = vmax.f32 %v4102, 0.0
    %v4359 = vmax.f32 %v4103, 0.0
    %v4360 = vmax.f32 %v4104, 0.0
    %v4361 = vmax.f32 %v4105, 0.0
    %v4362 = vmax.f32 %v4106, 0.0
    %v4363 = vmax.f32 %v4107, 0.0
    %v4364 = vmax.f32 %v4108, 0.0
    %v4365 = vmax.f32 %v4109, 0.0
    %v4366 = vmax.f32 %v4110, 0.0
    %v4367 = vmax.f32 %v4111, 0.0
    %v4368 = vmax.f32 %v4112, 0.0
    %v4369 = vmax.f32 %v4113, 0.0
    %v4370 = vmax.f32 %v4114, 0.0
    %v4371 = vmax.f32 %v4115, 0.0
    %v4372 = vmax.f32 %v4116, 0.0
    %v4373 = vmax.f32 %v4117, 0.0
    %v4374 = vmax.f32 %v4118, 0.0
    %v4375 = vmax.f32 %v4119, 0.0
    %v4376 = vmax.f32 %v4120, 0.0
    %v4377 = vmax.f32 %v4121, 0.0
    %v4378 = vmax.f32 %v4122, 0.0
    %v4379 = vmax.f32 %v4123, 0.0
    %v4380 = vmax.f32 %v4124, 0.0
    %v4381 = vmax.f32 %v4125, 0.0
    %v4382 = vmax.f32 %v4126, 0.0
    %v4383 = vmax.f32 %v4127, 0.0
    %v4384 = vmax.f32 %v4128, 0.0
    %v4385 = vmax.f32 %v4129, 0.0
    %v4386 = vmax.f32 %v4130, 0.0
    %v4387 = vmax.f32 %v4131, 0.0
    %v4388 = vmax.f32 %v4132, 0.0
    %v4389 = vmax.f32 %v4133, 0.0
    %v4390 = vmax.f32 %v4134, 0.0
    %v4391 = vmax.f32 %v4135, 0.0
    %v4392 = vmax.f32 %v4136, 0.0
    %v4393 = vmax.f32 %v4137, 0.0
    %v4394 = vmax.f32 %v4138, 0.0
    %v4395 = vmax.f32 %v4139, 0.0
    %v4396 = vmax.f32 %v4140, 0.0
    %v4397 = vmax.f32 %v4141, 0.0
    %v4398 = vmax.f32 %v4142, 0.0
    %v4399 = vmax.f32 %v4143, 0.0
    %v4400 = vmax.f32 %v4144, 0.0
    %v4401 = vmax.f32 %v4145, 0.0
    %v4402 = vmax.f32 %v4146, 0.0
    %v4403 = vmax.f32 %v4147, 0.0
    %v4404 = vmax.f32 %v4148, 0.0
    %v4405 = vmax.f32 %v4149, 0.0
    %v4406 = vmax.f32 %v4150, 0.0
    %v4407 = vmax.f32 %v4151, 0.0
    %v4408 = vmax.f32 %v4152, 0.0
    %v4409 = vmax.f32 %v4153, 0.0
    %v4410 = vmax.f32 %v4154, 0.0
    %v4411 = vmax.f32 %v4155, 0.0
    %v4412 = vmax.f32 %v4156, 0.0
    %v4413 = vmax.f32 %v4157, 0.0
    %v4414 = vmax.f32 %v4158, 0.0
    %v4415 = vmax.f32 %v4159, 0.0
    %v4416 = vmax.f32 %v4160, 0.0
    %v4417 = vmax.f32 %v4161, 0.0
    %v4418 = vmax.f32 %v4162, 0.0
    %v4419 = vmax.f32 %v4163, 0.0
    %v4420 = vmax.f32 %v4164, 0.0
    %v4421 = vmax.f32 %v4165, 0.0
    %v4422 = vmax.f32 %v4166, 0.0
    %v4423 = vmax.f32 %v4167, 0.0
    %v4424 = vmax.f32 %v4168, 0.0
    %v4425 = vmax.f32 %v4169, 0.0
    %v4426 = vmax.f32 %v4170, 0.0
    %v4427 = vmax.f32 %v4171, 0.0
    %v4428 = vmax.f32 %v4172, 0.0
    %v4429 = vmax.f32 %v4173, 0.0
    %v4430 = vmax.f32 %v4174, 0.0
    %v4431 = vmax.f32 %v4175, 0.0
    %v4432 = vmax.f32 %v4176, 0.0
    %v4433 = vmax.f32 %v4177, 0.0
    %v4434 = vmax.f32 %v4178, 0.0
    %v4435 = vmax.f32 %v4179, 0.0
    %v4436 = vmax.f32 %v4180, 0.0
    %v4437 = vmax.f32 %v4181, 0.0
    %v4438 = vmax.f32 %v4182, 0.0
    %v4439 = vmax.f32 %v4183, 0.0
    %v4440 = vmax.f32 %v4184, 0.0
    %v4441 = vmax.f32 %v4185, 0.0
    %v4442 = vmax.f32 %v4186, 0.0
    %v4443 = vmax.f32 %v4187, 0.0
    %v4444 = vmax.f32 %v4188, 0.0
    %v4445 = vmax.f32 %v4189, 0.0
    %v4446 = vmax.f32 %v4190, 0.0
    %v4447 = vmax.f32 %v4191, 0.0
    %v4448 = vmax.f32 %v4192, 0.0
    %v4449 = vmax.f32 %v4193, 0.0
    %v4450 = vmax.f32 %v4194, 0.0
    %v4451 = vmax.f32 %v4195, 0.0
    %v4452 = vmax.f32 %v4196, 0.0
    %v4453 = vpack.c.bf16 %v4198, %v4197
    %v4454 = vpack.c.bf16 %v4200, %v4199
    %v4455 = vpack.c.bf16 %v4202, %v4201
    %v4456 = vpack.c.bf16 %v4204, %v4203
    %v4457 = vpack.c.bf16 %v4206, %v4205
    %v4458 = vpack.c.bf16 %v4208, %v4207
    %v4459 = vpack.c.bf16 %v4210, %v4209
    %v4460 = vpack.c.bf16 %v4212, %v4211
    %v4461 = vpack.c.bf16 %v4214, %v4213
    %v4462 = vpack.c.bf16 %v4216, %v4215
    %v4463 = vpack.c.bf16 %v4218, %v4217
    %v4464 = vpack.c.bf16 %v4220, %v4219
    %v4465 = vpack.c.bf16 %v4222, %v4221
    %v4466 = vpack.c.bf16 %v4224, %v4223
    %v4467 = vpack.c.bf16 %v4226, %v4225
    %v4468 = vpack.c.bf16 %v4228, %v4227
    %v4469 = vpack.c.bf16 %v4230, %v4229
    %v4470 = vpack.c.bf16 %v4232, %v4231
    %v4471 = vpack.c.bf16 %v4234, %v4233
    %v4472 = vpack.c.bf16 %v4236, %v4235
    %v4473 = vpack.c.bf16 %v4238, %v4237
    %v4474 = vpack.c.bf16 %v4240, %v4239
    %v4475 = vpack.c.bf16 %v4242, %v4241
    %v4476 = vpack.c.bf16 %v4244, %v4243
    %v4477 = vpack.c.bf16 %v4246, %v4245
    %v4478 = vpack.c.bf16 %v4248, %v4247
    %v4479 = vpack.c.bf16 %v4250, %v4249
    %v4480 = vpack.c.bf16 %v4252, %v4251
    %v4481 = vpack.c.bf16 %v4254, %v4253
    %v4482 = vpack.c.bf16 %v4256, %v4255
    %v4483 = vpack.c.bf16 %v4258, %v4257
    %v4484 = vpack.c.bf16 %v4260, %v4259
    %v4485 = vpack.c.bf16 %v4262, %v4261
    %v4486 = vpack.c.bf16 %v4264, %v4263
    %v4487 = vpack.c.bf16 %v4266, %v4265
    %v4488 = vpack.c.bf16 %v4268, %v4267
    %v4489 = vpack.c.bf16 %v4270, %v4269
    %v4490 = vpack.c.bf16 %v4272, %v4271
    %v4491 = vpack.c.bf16 %v4274, %v4273
    %v4492 = vpack.c.bf16 %v4276, %v4275
    %v4493 = vpack.c.bf16 %v4278, %v4277
    %v4494 = vpack.c.bf16 %v4280, %v4279
    %v4495 = vpack.c.bf16 %v4282, %v4281
    %v4496 = vpack.c.bf16 %v4284, %v4283
    %v4497 = vpack.c.bf16 %v4286, %v4285
    %v4498 = vpack.c.bf16 %v4288, %v4287
    %v4499 = vpack.c.bf16 %v4290, %v4289
    %v4500 = vpack.c.bf16 %v4292, %v4291
    %v4501 = vpack.c.bf16 %v4294, %v4293
    %v4502 = vpack.c.bf16 %v4296, %v4295
    %v4503 = vpack.c.bf16 %v4298, %v4297
    %v4504 = vpack.c.bf16 %v4300, %v4299
    %v4505 = vpack.c.bf16 %v4302, %v4301
    %v4506 = vpack.c.bf16 %v4304, %v4303
    %v4507 = vpack.c.bf16 %v4306, %v4305
    %v4508 = vpack.c.bf16 %v4308, %v4307
    %v4509 = vpack.c.bf16 %v4310, %v4309
    %v4510 = vpack.c.bf16 %v4312, %v4311
    %v4511 = vpack.c.bf16 %v4314, %v4313
    %v4512 = vpack.c.bf16 %v4316, %v4315
    %v4513 = vpack.c.bf16 %v4318, %v4317
    %v4514 = vpack.c.bf16 %v4320, %v4319
    %v4515 = vpack.c.bf16 %v4322, %v4321
    %v4516 = vpack.c.bf16 %v4324, %v4323
    %v4517 = vpack.c.bf16 %v4326, %v4325
    %v4518 = vpack.c.bf16 %v4328, %v4327
    %v4519 = vpack.c.bf16 %v4330, %v4329
    %v4520 = vpack.c.bf16 %v4332, %v4331
    %v4521 = vpack.c.bf16 %v4334, %v4333
    %v4522 = vpack.c.bf16 %v4336, %v4335
    %v4523 = vpack.c.bf16 %v4338, %v4337
    %v4524 = vpack.c.bf16 %v4340, %v4339
    %v4525 = vpack.c.bf16 %v4342, %v4341
    %v4526 = vpack.c.bf16 %v4344, %v4343
    %v4527 = vpack.c.bf16 %v4346, %v4345
    %v4528 = vpack.c.bf16 %v4348, %v4347
    %v4529 = vpack.c.bf16 %v4350, %v4349
    %v4530 = vpack.c.bf16 %v4352, %v4351
    %v4531 = vpack.c.bf16 %v4354, %v4353
    %v4532 = vpack.c.bf16 %v4356, %v4355
    %v4533 = vpack.c.bf16 %v4358, %v4357
    %v4534 = vpack.c.bf16 %v4360, %v4359
    %v4535 = vpack.c.bf16 %v4362, %v4361
    %v4536 = vpack.c.bf16 %v4364, %v4363
    %v4537 = vpack.c.bf16 %v4366, %v4365
    %v4538 = vpack.c.bf16 %v4368, %v4367
    %v4539 = vpack.c.bf16 %v4370, %v4369
    %v4540 = vpack.c.bf16 %v4372, %v4371
    %v4541 = vpack.c.bf16 %v4374, %v4373
    %v4542 = vpack.c.bf16 %v4376, %v4375
    %v4543 = vpack.c.bf16 %v4378, %v4377
    %v4544 = vpack.c.bf16 %v4380, %v4379
    %v4545 = vpack.c.bf16 %v4382, %v4381
    %v4546 = vpack.c.bf16 %v4384, %v4383
    %v4547 = vpack.c.bf16 %v4386, %v4385
    %v4548 = vpack.c.bf16 %v4388, %v4387
    %v4549 = vpack.c.bf16 %v4390, %v4389
    %v4550 = vpack.c.bf16 %v4392, %v4391
    %v4551 = vpack.c.bf16 %v4394, %v4393
    %v4552 = vpack.c.bf16 %v4396, %v4395
    %v4553 = vpack.c.bf16 %v4398, %v4397
    %v4554 = vpack.c.bf16 %v4400, %v4399
    %v4555 = vpack.c.bf16 %v4402, %v4401
    %v4556 = vpack.c.bf16 %v4404, %v4403
    %v4557 = vpack.c.bf16 %v4406, %v4405
    %v4558 = vpack.c.bf16 %v4408, %v4407
    %v4559 = vpack.c.bf16 %v4410, %v4409
    %v4560 = vpack.c.bf16 %v4412, %v4411
    %v4561 = vpack.c.bf16 %v4414, %v4413
    %v4562 = vpack.c.bf16 %v4416, %v4415
    %v4563 = vpack.c.bf16 %v4418, %v4417
    %v4564 = vpack.c.bf16 %v4420, %v4419
    %v4565 = vpack.c.bf16 %v4422, %v4421
    %v4566 = vpack.c.bf16 %v4424, %v4423
    %v4567 = vpack.c.bf16 %v4426, %v4425
    %v4568 = vpack.c.bf16 %v4428, %v4427
    %v4569 = vpack.c.bf16 %v4430, %v4429
    %v4570 = vpack.c.bf16 %v4432, %v4431
    %v4571 = vpack.c.bf16 %v4434, %v4433
    %v4572 = vpack.c.bf16 %v4436, %v4435
    %v4573 = vpack.c.bf16 %v4438, %v4437
    %v4574 = vpack.c.bf16 %v4440, %v4439
    %v4575 = vpack.c.bf16 %v4442, %v4441
    %v4576 = vpack.c.bf16 %v4444, %v4443
    %v4577 = vpack.c.bf16 %v4446, %v4445
    %v4578 = vpack.c.bf16 %v4448, %v4447
    %v4579 = vpack.c.bf16 %v4450, %v4449
    %v4580 = vpack.c.bf16 %v4452, %v4451
    %v4709 = vunpack.c.l.b16 %v4453
    %v4710 = vunpack.c.h.b16 %v4453
    %v4711 = vunpack.c.l.b16 %v4454
    %v4712 = vunpack.c.h.b16 %v4454
    %v4713 = vunpack.c.l.b16 %v4455
    %v4714 = vunpack.c.h.b16 %v4455
    %v4715 = vunpack.c.l.b16 %v4456
    %v4716 = vunpack.c.h.b16 %v4456
    %v4717 = vunpack.c.l.b16 %v4457
    %v4718 = vunpack.c.h.b16 %v4457
    %v4719 = vunpack.c.l.b16 %v4458
    %v4720 = vunpack.c.h.b16 %v4458
    %v4721 = vunpack.c.l.b16 %v4459
    %v4722 = vunpack.c.h.b16 %v4459
    %v4723 = vunpack.c.l.b16 %v4460
    %v4724 = vunpack.c.h.b16 %v4460
    %v4725 = vunpack.c.l.b16 %v4461
    %v4726 = vunpack.c.h.b16 %v4461
    %v4727 = vunpack.c.l.b16 %v4462
    %v4728 = vunpack.c.h.b16 %v4462
    %v4729 = vunpack.c.l.b16 %v4463
    %v4730 = vunpack.c.h.b16 %v4463
    %v4731 = vunpack.c.l.b16 %v4464
    %v4732 = vunpack.c.h.b16 %v4464
    %v4733 = vunpack.c.l.b16 %v4465
    %v4734 = vunpack.c.h.b16 %v4465
    %v4735 = vunpack.c.l.b16 %v4466
    %v4736 = vunpack.c.h.b16 %v4466
    %v4737 = vunpack.c.l.b16 %v4467
    %v4738 = vunpack.c.h.b16 %v4467
    %v4739 = vunpack.c.l.b16 %v4468
    %v4740 = vunpack.c.h.b16 %v4468
    %v4741 = vunpack.c.l.b16 %v4469
    %v4742 = vunpack.c.h.b16 %v4469
    %v4743 = vunpack.c.l.b16 %v4470
    %v4744 = vunpack.c.h.b16 %v4470
    %v4745 = vunpack.c.l.b16 %v4471
    %v4746 = vunpack.c.h.b16 %v4471
    %v4747 = vunpack.c.l.b16 %v4472
    %v4748 = vunpack.c.h.b16 %v4472
    %v4749 = vunpack.c.l.b16 %v4473
    %v4750 = vunpack.c.h.b16 %v4473
    %v4751 = vunpack.c.l.b16 %v4474
    %v4752 = vunpack.c.h.b16 %v4474
    %v4753 = vunpack.c.l.b16 %v4475
    %v4754 = vunpack.c.h.b16 %v4475
    %v4755 = vunpack.c.l.b16 %v4476
    %v4756 = vunpack.c.h.b16 %v4476
    %v4757 = vunpack.c.l.b16 %v4477
    %v4758 = vunpack.c.h.b16 %v4477
    %v4759 = vunpack.c.l.b16 %v4478
    %v4760 = vunpack.c.h.b16 %v4478
    %v4761 = vunpack.c.l.b16 %v4479
    %v4762 = vunpack.c.h.b16 %v4479
    %v4763 = vunpack.c.l.b16 %v4480
    %v4764 = vunpack.c.h.b16 %v4480
    %v4765 = vunpack.c.l.b16 %v4481
    %v4766 = vunpack.c.h.b16 %v4481
    %v4767 = vunpack.c.l.b16 %v4482
    %v4768 = vunpack.c.h.b16 %v4482
    %v4769 = vunpack.c.l.b16 %v4483
    %v4770 = vunpack.c.h.b16 %v4483
    %v4771 = vunpack.c.l.b16 %v4484
    %v4772 = vunpack.c.h.b16 %v4484
    %v4773 = vunpack.c.l.b16 %v4485
    %v4774 = vunpack.c.h.b16 %v4485
    %v4775 = vunpack.c.l.b16 %v4486
    %v4776 = vunpack.c.h.b16 %v4486
    %v4777 = vunpack.c.l.b16 %v4487
    %v4778 = vunpack.c.h.b16 %v4487
    %v4779 = vunpack.c.l.b16 %v4488
    %v4780 = vunpack.c.h.b16 %v4488
    %v4781 = vunpack.c.l.b16 %v4489
    %v4782 = vunpack.c.h.b16 %v4489
    %v4783 = vunpack.c.l.b16 %v4490
    %v4784 = vunpack.c.h.b16 %v4490
    %v4785 = vunpack.c.l.b16 %v4491
    %v4786 = vunpack.c.h.b16 %v4491
    %v4787 = vunpack.c.l.b16 %v4492
    %v4788 = vunpack.c.h.b16 %v4492
    %v4789 = vunpack.c.l.b16 %v4493
    %v4790 = vunpack.c.h.b16 %v4493
    %v4791 = vunpack.c.l.b16 %v4494
    %v4792 = vunpack.c.h.b16 %v4494
    %v4793 = vunpack.c.l.b16 %v4495
    %v4794 = vunpack.c.h.b16 %v4495
    %v4795 = vunpack.c.l.b16 %v4496
    %v4796 = vunpack.c.h.b16 %v4496
    %v4797 = vunpack.c.l.b16 %v4497
    %v4798 = vunpack.c.h.b16 %v4497
    %v4799 = vunpack.c.l.b16 %v4498
    %v4800 = vunpack.c.h.b16 %v4498
    %v4801 = vunpack.c.l.b16 %v4499
    %v4802 = vunpack.c.h.b16 %v4499
    %v4803 = vunpack.c.l.b16 %v4500
    %v4804 = vunpack.c.h.b16 %v4500
    %v4805 = vunpack.c.l.b16 %v4501
    %v4806 = vunpack.c.h.b16 %v4501
    %v4807 = vunpack.c.l.b16 %v4502
    %v4808 = vunpack.c.h.b16 %v4502
    %v4809 = vunpack.c.l.b16 %v4503
    %v4810 = vunpack.c.h.b16 %v4503
    %v4811 = vunpack.c.l.b16 %v4504
    %v4812 = vunpack.c.h.b16 %v4504
    %v4813 = vunpack.c.l.b16 %v4505
    %v4814 = vunpack.c.h.b16 %v4505
    %v4815 = vunpack.c.l.b16 %v4506
    %v4816 = vunpack.c.h.b16 %v4506
    %v4817 = vunpack.c.l.b16 %v4507
    %v4818 = vunpack.c.h.b16 %v4507
    %v4819 = vunpack.c.l.b16 %v4508
    %v4820 = vunpack.c.h.b16 %v4508
    %v4821 = vunpack.c.l.b16 %v4509
    %v4822 = vunpack.c.h.b16 %v4509
    %v4823 = vunpack.c.l.b16 %v4510
    %v4824 = vunpack.c.h.b16 %v4510
    %v4825 = vunpack.c.l.b16 %v4511
    %v4826 = vunpack.c.h.b16 %v4511
    %v4827 = vunpack.c.l.b16 %v4512
    %v4828 = vunpack.c.h.b16 %v4512
    %v4829 = vunpack.c.l.b16 %v4513
    %v4830 = vunpack.c.h.b16 %v4513
    %v4831 = vunpack.c.l.b16 %v4514
    %v4832 = vunpack.c.h.b16 %v4514
    %v4833 = vunpack.c.l.b16 %v4515
    %v4834 = vunpack.c.h.b16 %v4515
    %v4835 = vunpack.c.l.b16 %v4516
    %v4836 = vunpack.c.h.b16 %v4516
    %v4837 = vunpack.c.l.b16 %v4517
    %v4838 = vunpack.c.h.b16 %v4517
    %v4839 = vunpack.c.l.b16 %v4518
    %v4840 = vunpack.c.h.b16 %v4518
    %v4841 = vunpack.c.l.b16 %v4519
    %v4842 = vunpack.c.h.b16 %v4519
    %v4843 = vunpack.c.l.b16 %v4520
    %v4844 = vunpack.c.h.b16 %v4520
    %v4845 = vunpack.c.l.b16 %v4521
    %v4846 = vunpack.c.h.b16 %v4521
    %v4847 = vunpack.c.l.b16 %v4522
    %v4848 = vunpack.c.h.b16 %v4522
    %v4849 = vunpack.c.l.b16 %v4523
    %v4850 = vunpack.c.h.b16 %v4523
    %v4851 = vunpack.c.l.b16 %v4524
    %v4852 = vunpack.c.h.b16 %v4524
    %v4853 = vunpack.c.l.b16 %v4525
    %v4854 = vunpack.c.h.b16 %v4525
    %v4855 = vunpack.c.l.b16 %v4526
    %v4856 = vunpack.c.h.b16 %v4526
    %v4857 = vunpack.c.l.b16 %v4527
    %v4858 = vunpack.c.h.b16 %v4527
    %v4859 = vunpack.c.l.b16 %v4528
    %v4860 = vunpack.c.h.b16 %v4528
    %v4861 = vunpack.c.l.b16 %v4529
    %v4862 = vunpack.c.h.b16 %v4529
    %v4863 = vunpack.c.l.b16 %v4530
    %v4864 = vunpack.c.h.b16 %v4530
    %v4865 = vunpack.c.l.b16 %v4531
    %v4866 = vunpack.c.h.b16 %v4531
    %v4867 = vunpack.c.l.b16 %v4532
    %v4868 = vunpack.c.h.b16 %v4532
    %v4869 = vunpack.c.l.b16 %v4533
    %v4870 = vunpack.c.h.b16 %v4533
    %v4871 = vunpack.c.l.b16 %v4534
    %v4872 = vunpack.c.h.b16 %v4534
    %v4873 = vunpack.c.l.b16 %v4535
    %v4874 = vunpack.c.h.b16 %v4535
    %v4875 = vunpack.c.l.b16 %v4536
    %v4876 = vunpack.c.h.b16 %v4536
    %v4877 = vunpack.c.l.b16 %v4537
    %v4878 = vunpack.c.h.b16 %v4537
    %v4879 = vunpack.c.l.b16 %v4538
    %v4880 = vunpack.c.h.b16 %v4538
    %v4881 = vunpack.c.l.b16 %v4539
    %v4882 = vunpack.c.h.b16 %v4539
    %v4883 = vunpack.c.l.b16 %v4540
    %v4884 = vunpack.c.h.b16 %v4540
    %v4885 = vunpack.c.l.b16 %v4541
    %v4886 = vunpack.c.h.b16 %v4541
    %v4887 = vunpack.c.l.b16 %v4542
    %v4888 = vunpack.c.h.b16 %v4542
    %v4889 = vunpack.c.l.b16 %v4543
    %v4890 = vunpack.c.h.b16 %v4543
    %v4891 = vunpack.c.l.b16 %v4544
    %v4892 = vunpack.c.h.b16 %v4544
    %v4893 = vunpack.c.l.b16 %v4545
    %v4894 = vunpack.c.h.b16 %v4545
    %v4895 = vunpack.c.l.b16 %v4546
    %v4896 = vunpack.c.h.b16 %v4546
    %v4897 = vunpack.c.l.b16 %v4547
    %v4898 = vunpack.c.h.b16 %v4547
    %v4899 = vunpack.c.l.b16 %v4548
    %v4900 = vunpack.c.h.b16 %v4548
    %v4901 = vunpack.c.l.b16 %v4549
    %v4902 = vunpack.c.h.b16 %v4549
    %v4903 = vunpack.c.l.b16 %v4550
    %v4904 = vunpack.c.h.b16 %v4550
    %v4905 = vunpack.c.l.b16 %v4551
    %v4906 = vunpack.c.h.b16 %v4551
    %v4907 = vunpack.c.l.b16 %v4552
    %v4908 = vunpack.c.h.b16 %v4552
    %v4909 = vunpack.c.l.b16 %v4553
    %v4910 = vunpack.c.h.b16 %v4553
    %v4911 = vunpack.c.l.b16 %v4554
    %v4912 = vunpack.c.h.b16 %v4554
    %v4913 = vunpack.c.l.b16 %v4555
    %v4914 = vunpack.c.h.b16 %v4555
    %v4915 = vunpack.c.l.b16 %v4556
    %v4916 = vunpack.c.h.b16 %v4556
    %v4917 = vunpack.c.l.b16 %v4557
    %v4918 = vunpack.c.h.b16 %v4557
    %v4919 = vunpack.c.l.b16 %v4558
    %v4920 = vunpack.c.h.b16 %v4558
    %v4921 = vunpack.c.l.b16 %v4559
    %v4922 = vunpack.c.h.b16 %v4559
    %v4923 = vunpack.c.l.b16 %v4560
    %v4924 = vunpack.c.h.b16 %v4560
    %v4925 = vunpack.c.l.b16 %v4561
    %v4926 = vunpack.c.h.b16 %v4561
    %v4927 = vunpack.c.l.b16 %v4562
    %v4928 = vunpack.c.h.b16 %v4562
    %v4929 = vunpack.c.l.b16 %v4563
    %v4930 = vunpack.c.h.b16 %v4563
    %v4931 = vunpack.c.l.b16 %v4564
    %v4932 = vunpack.c.h.b16 %v4564
    %v4933 = vunpack.c.l.b16 %v4565
    %v4934 = vunpack.c.h.b16 %v4565
    %v4935 = vunpack.c.l.b16 %v4566
    %v4936 = vunpack.c.h.b16 %v4566
    %v4937 = vunpack.c.l.b16 %v4567
    %v4938 = vunpack.c.h.b16 %v4567
    %v4939 = vunpack.c.l.b16 %v4568
    %v4940 = vunpack.c.h.b16 %v4568
    %v4941 = vunpack.c.l.b16 %v4569
    %v4942 = vunpack.c.h.b16 %v4569
    %v4943 = vunpack.c.l.b16 %v4570
    %v4944 = vunpack.c.h.b16 %v4570
    %v4945 = vunpack.c.l.b16 %v4571
    %v4946 = vunpack.c.h.b16 %v4571
    %v4947 = vunpack.c.l.b16 %v4572
    %v4948 = vunpack.c.h.b16 %v4572
    %v4949 = vunpack.c.l.b16 %v4573
    %v4950 = vunpack.c.h.b16 %v4573
    %v4951 = vunpack.c.l.b16 %v4574
    %v4952 = vunpack.c.h.b16 %v4574
    %v4953 = vunpack.c.l.b16 %v4575
    %v4954 = vunpack.c.h.b16 %v4575
    %v4955 = vunpack.c.l.b16 %v4576
    %v4956 = vunpack.c.h.b16 %v4576
    %v4957 = vunpack.c.l.b16 %v4577
    %v4958 = vunpack.c.h.b16 %v4577
    %v4959 = vunpack.c.l.b16 %v4578
    %v4960 = vunpack.c.h.b16 %v4578
    %v4961 = vunpack.c.l.b16 %v4579
    %v4962 = vunpack.c.h.b16 %v4579
    %v4963 = vunpack.c.l.b16 %v4580
    %v4964 = vunpack.c.h.b16 %v4580
    %v4965 = vpack.c.b16 %v4709, %v4709
    %v4966 = vpack.c.b16 %v4710, %v4710
    %v4967 = vpack.c.b16 %v4711, %v4711
    %v4968 = vpack.c.b16 %v4712, %v4712
    %v4969 = vpack.c.b16 %v4713, %v4713
    %v4970 = vpack.c.b16 %v4714, %v4714
    %v4971 = vpack.c.b16 %v4715, %v4715
    %v4972 = vpack.c.b16 %v4716, %v4716
    %v4973 = vpack.c.b16 %v4717, %v4717
    %v4974 = vpack.c.b16 %v4718, %v4718
    %v4975 = vpack.c.b16 %v4719, %v4719
    %v4976 = vpack.c.b16 %v4720, %v4720
    %v4977 = vpack.c.b16 %v4721, %v4721
    %v4978 = vpack.c.b16 %v4722, %v4722
    %v4979 = vpack.c.b16 %v4723, %v4723
    %v4980 = vpack.c.b16 %v4724, %v4724
    %v4981 = vpack.c.b16 %v4725, %v4725
    %v4982 = vpack.c.b16 %v4726, %v4726
    %v4983 = vpack.c.b16 %v4727, %v4727
    %v4984 = vpack.c.b16 %v4728, %v4728
    %v4985 = vpack.c.b16 %v4729, %v4729
    %v4986 = vpack.c.b16 %v4730, %v4730
    %v4987 = vpack.c.b16 %v4731, %v4731
    %v4988 = vpack.c.b16 %v4732, %v4732
    %v4989 = vpack.c.b16 %v4733, %v4733
    %v4990 = vpack.c.b16 %v4734, %v4734
    %v4991 = vpack.c.b16 %v4735, %v4735
    %v4992 = vpack.c.b16 %v4736, %v4736
    %v4993 = vpack.c.b16 %v4737, %v4737
    %v4994 = vpack.c.b16 %v4738, %v4738
    %v4995 = vpack.c.b16 %v4739, %v4739
    %v4996 = vpack.c.b16 %v4740, %v4740
    %v4997 = vpack.c.b16 %v4741, %v4741
    %v4998 = vpack.c.b16 %v4742, %v4742
    %v4999 = vpack.c.b16 %v4743, %v4743
    %v5000 = vpack.c.b16 %v4744, %v4744
    %v5001 = vpack.c.b16 %v4745, %v4745
    %v5002 = vpack.c.b16 %v4746, %v4746
    %v5003 = vpack.c.b16 %v4747, %v4747
    %v5004 = vpack.c.b16 %v4748, %v4748
    %v5005 = vpack.c.b16 %v4749, %v4749
    %v5006 = vpack.c.b16 %v4750, %v4750
    %v5007 = vpack.c.b16 %v4751, %v4751
    %v5008 = vpack.c.b16 %v4752, %v4752
    %v5009 = vpack.c.b16 %v4753, %v4753
    %v5010 = vpack.c.b16 %v4754, %v4754
    %v5011 = vpack.c.b16 %v4755, %v4755
    %v5012 = vpack.c.b16 %v4756, %v4756
    %v5013 = vpack.c.b16 %v4757, %v4757
    %v5014 = vpack.c.b16 %v4758, %v4758
    %v5015 = vpack.c.b16 %v4759, %v4759
    %v5016 = vpack.c.b16 %v4760, %v4760
    %v5017 = vpack.c.b16 %v4761, %v4761
    %v5018 = vpack.c.b16 %v4762, %v4762
    %v5019 = vpack.c.b16 %v4763, %v4763
    %v5020 = vpack.c.b16 %v4764, %v4764
    %v5021 = vpack.c.b16 %v4765, %v4765
    %v5022 = vpack.c.b16 %v4766, %v4766
    %v5023 = vpack.c.b16 %v4767, %v4767
    %v5024 = vpack.c.b16 %v4768, %v4768
    %v5025 = vpack.c.b16 %v4769, %v4769
    %v5026 = vpack.c.b16 %v4770, %v4770
    %v5027 = vpack.c.b16 %v4771, %v4771
    %v5028 = vpack.c.b16 %v4772, %v4772
    %v5029 = vpack.c.b16 %v4773, %v4773
    %v5030 = vpack.c.b16 %v4774, %v4774
    %v5031 = vpack.c.b16 %v4775, %v4775
    %v5032 = vpack.c.b16 %v4776, %v4776
    %v5033 = vpack.c.b16 %v4777, %v4777
    %v5034 = vpack.c.b16 %v4778, %v4778
    %v5035 = vpack.c.b16 %v4779, %v4779
    %v5036 = vpack.c.b16 %v4780, %v4780
    %v5037 = vpack.c.b16 %v4781, %v4781
    %v5038 = vpack.c.b16 %v4782, %v4782
    %v5039 = vpack.c.b16 %v4783, %v4783
    %v5040 = vpack.c.b16 %v4784, %v4784
    %v5041 = vpack.c.b16 %v4785, %v4785
    %v5042 = vpack.c.b16 %v4786, %v4786
    %v5043 = vpack.c.b16 %v4787, %v4787
    %v5044 = vpack.c.b16 %v4788, %v4788
    %v5045 = vpack.c.b16 %v4789, %v4789
    %v5046 = vpack.c.b16 %v4790, %v4790
    %v5047 = vpack.c.b16 %v4791, %v4791
    %v5048 = vpack.c.b16 %v4792, %v4792
    %v5049 = vpack.c.b16 %v4793, %v4793
    %v5050 = vpack.c.b16 %v4794, %v4794
    %v5051 = vpack.c.b16 %v4795, %v4795
    %v5052 = vpack.c.b16 %v4796, %v4796
    %v5053 = vpack.c.b16 %v4797, %v4797
    %v5054 = vpack.c.b16 %v4798, %v4798
    %v5055 = vpack.c.b16 %v4799, %v4799
    %v5056 = vpack.c.b16 %v4800, %v4800
    %v5057 = vpack.c.b16 %v4801, %v4801
    %v5058 = vpack.c.b16 %v4802, %v4802
    %v5059 = vpack.c.b16 %v4803, %v4803
    %v5060 = vpack.c.b16 %v4804, %v4804
    %v5061 = vpack.c.b16 %v4805, %v4805
    %v5062 = vpack.c.b16 %v4806, %v4806
    %v5063 = vpack.c.b16 %v4807, %v4807
    %v5064 = vpack.c.b16 %v4808, %v4808
    %v5065 = vpack.c.b16 %v4809, %v4809
    %v5066 = vpack.c.b16 %v4810, %v4810
    %v5067 = vpack.c.b16 %v4811, %v4811
    %v5068 = vpack.c.b16 %v4812, %v4812
    %v5069 = vpack.c.b16 %v4813, %v4813
    %v5070 = vpack.c.b16 %v4814, %v4814
    %v5071 = vpack.c.b16 %v4815, %v4815
    %v5072 = vpack.c.b16 %v4816, %v4816
    %v5073 = vpack.c.b16 %v4817, %v4817
    %v5074 = vpack.c.b16 %v4818, %v4818
    %v5075 = vpack.c.b16 %v4819, %v4819
    %v5076 = vpack.c.b16 %v4820, %v4820
    %v5077 = vpack.c.b16 %v4821, %v4821
    %v5078 = vpack.c.b16 %v4822, %v4822
    %v5079 = vpack.c.b16 %v4823, %v4823
    %v5080 = vpack.c.b16 %v4824, %v4824
    %v5081 = vpack.c.b16 %v4825, %v4825
    %v5082 = vpack.c.b16 %v4826, %v4826
    %v5083 = vpack.c.b16 %v4827, %v4827
    %v5084 = vpack.c.b16 %v4828, %v4828
    %v5085 = vpack.c.b16 %v4829, %v4829
    %v5086 = vpack.c.b16 %v4830, %v4830
    %v5087 = vpack.c.b16 %v4831, %v4831
    %v5088 = vpack.c.b16 %v4832, %v4832
    %v5089 = vpack.c.b16 %v4833, %v4833
    %v5090 = vpack.c.b16 %v4834, %v4834
    %v5091 = vpack.c.b16 %v4835, %v4835
    %v5092 = vpack.c.b16 %v4836, %v4836
    %v5093 = vpack.c.b16 %v4837, %v4837
    %v5094 = vpack.c.b16 %v4838, %v4838
    %v5095 = vpack.c.b16 %v4839, %v4839
    %v5096 = vpack.c.b16 %v4840, %v4840
    %v5097 = vpack.c.b16 %v4841, %v4841
    %v5098 = vpack.c.b16 %v4842, %v4842
    %v5099 = vpack.c.b16 %v4843, %v4843
    %v5100 = vpack.c.b16 %v4844, %v4844
    %v5101 = vpack.c.b16 %v4845, %v4845
    %v5102 = vpack.c.b16 %v4846, %v4846
    %v5103 = vpack.c.b16 %v4847, %v4847
    %v5104 = vpack.c.b16 %v4848, %v4848
    %v5105 = vpack.c.b16 %v4849, %v4849
    %v5106 = vpack.c.b16 %v4850, %v4850
    %v5107 = vpack.c.b16 %v4851, %v4851
    %v5108 = vpack.c.b16 %v4852, %v4852
    %v5109 = vpack.c.b16 %v4853, %v4853
    %v5110 = vpack.c.b16 %v4854, %v4854
    %v5111 = vpack.c.b16 %v4855, %v4855
    %v5112 = vpack.c.b16 %v4856, %v4856
    %v5113 = vpack.c.b16 %v4857, %v4857
    %v5114 = vpack.c.b16 %v4858, %v4858
    %v5115 = vpack.c.b16 %v4859, %v4859
    %v5116 = vpack.c.b16 %v4860, %v4860
    %v5117 = vpack.c.b16 %v4861, %v4861
    %v5118 = vpack.c.b16 %v4862, %v4862
    %v5119 = vpack.c.b16 %v4863, %v4863
    %v5120 = vpack.c.b16 %v4864, %v4864
    %v5121 = vpack.c.b16 %v4865, %v4865
    %v5122 = vpack.c.b16 %v4866, %v4866
    %v5123 = vpack.c.b16 %v4867, %v4867
    %v5124 = vpack.c.b16 %v4868, %v4868
    %v5125 = vpack.c.b16 %v4869, %v4869
    %v5126 = vpack.c.b16 %v4870, %v4870
    %v5127 = vpack.c.b16 %v4871, %v4871
    %v5128 = vpack.c.b16 %v4872, %v4872
    %v5129 = vpack.c.b16 %v4873, %v4873
    %v5130 = vpack.c.b16 %v4874, %v4874
    %v5131 = vpack.c.b16 %v4875, %v4875
    %v5132 = vpack.c.b16 %v4876, %v4876
    %v5133 = vpack.c.b16 %v4877, %v4877
    %v5134 = vpack.c.b16 %v4878, %v4878
    %v5135 = vpack.c.b16 %v4879, %v4879
    %v5136 = vpack.c.b16 %v4880, %v4880
    %v5137 = vpack.c.b16 %v4881, %v4881
    %v5138 = vpack.c.b16 %v4882, %v4882
    %v5139 = vpack.c.b16 %v4883, %v4883
    %v5140 = vpack.c.b16 %v4884, %v4884
    %v5141 = vpack.c.b16 %v4885, %v4885
    %v5142 = vpack.c.b16 %v4886, %v4886
    %v5143 = vpack.c.b16 %v4887, %v4887
    %v5144 = vpack.c.b16 %v4888, %v4888
    %v5145 = vpack.c.b16 %v4889, %v4889
    %v5146 = vpack.c.b16 %v4890, %v4890
    %v5147 = vpack.c.b16 %v4891, %v4891
    %v5148 = vpack.c.b16 %v4892, %v4892
    %v5149 = vpack.c.b16 %v4893, %v4893
    %v5150 = vpack.c.b16 %v4894, %v4894
    %v5151 = vpack.c.b16 %v4895, %v4895
    %v5152 = vpack.c.b16 %v4896, %v4896
    %v5153 = vpack.c.b16 %v4897, %v4897
    %v5154 = vpack.c.b16 %v4898, %v4898
    %v5155 = vpack.c.b16 %v4899, %v4899
    %v5156 = vpack.c.b16 %v4900, %v4900
    %v5157 = vpack.c.b16 %v4901, %v4901
    %v5158 = vpack.c.b16 %v4902, %v4902
    %v5159 = vpack.c.b16 %v4903, %v4903
    %v5160 = vpack.c.b16 %v4904, %v4904
    %v5161 = vpack.c.b16 %v4905, %v4905
    %v5162 = vpack.c.b16 %v4906, %v4906
    %v5163 = vpack.c.b16 %v4907, %v4907
    %v5164 = vpack.c.b16 %v4908, %v4908
    %v5165 = vpack.c.b16 %v4909, %v4909
    %v5166 = vpack.c.b16 %v4910, %v4910
    %v5167 = vpack.c.b16 %v4911, %v4911
    %v5168 = vpack.c.b16 %v4912, %v4912
    %v5169 = vpack.c.b16 %v4913, %v4913
    %v5170 = vpack.c.b16 %v4914, %v4914
    %v5171 = vpack.c.b16 %v4915, %v4915
    %v5172 = vpack.c.b16 %v4916, %v4916
    %v5173 = vpack.c.b16 %v4917, %v4917
    %v5174 = vpack.c.b16 %v4918, %v4918
    %v5175 = vpack.c.b16 %v4919, %v4919
    %v5176 = vpack.c.b16 %v4920, %v4920
    %v5177 = vpack.c.b16 %v4921, %v4921
    %v5178 = vpack.c.b16 %v4922, %v4922
    %v5179 = vpack.c.b16 %v4923, %v4923
    %v5180 = vpack.c.b16 %v4924, %v4924
    %v5181 = vpack.c.b16 %v4925, %v4925
    %v5182 = vpack.c.b16 %v4926, %v4926
    %v5183 = vpack.c.b16 %v4927, %v4927
    %v5184 = vpack.c.b16 %v4928, %v4928
    %v5185 = vpack.c.b16 %v4929, %v4929
    %v5186 = vpack.c.b16 %v4930, %v4930
    %v5187 = vpack.c.b16 %v4931, %v4931
    %v5188 = vpack.c.b16 %v4932, %v4932
    %v5189 = vpack.c.b16 %v4933, %v4933
    %v5190 = vpack.c.b16 %v4934, %v4934
    %v5191 = vpack.c.b16 %v4935, %v4935
    %v5192 = vpack.c.b16 %v4936, %v4936
    %v5193 = vpack.c.b16 %v4937, %v4937
    %v5194 = vpack.c.b16 %v4938, %v4938
    %v5195 = vpack.c.b16 %v4939, %v4939
    %v5196 = vpack.c.b16 %v4940, %v4940
    %v5197 = vpack.c.b16 %v4941, %v4941
    %v5198 = vpack.c.b16 %v4942, %v4942
    %v5199 = vpack.c.b16 %v4943, %v4943
    %v5200 = vpack.c.b16 %v4944, %v4944
    %v5201 = vpack.c.b16 %v4945, %v4945
    %v5202 = vpack.c.b16 %v4946, %v4946
    %v5203 = vpack.c.b16 %v4947, %v4947
    %v5204 = vpack.c.b16 %v4948, %v4948
    %v5205 = vpack.c.b16 %v4949, %v4949
    %v5206 = vpack.c.b16 %v4950, %v4950
    %v5207 = vpack.c.b16 %v4951, %v4951
    %v5208 = vpack.c.b16 %v4952, %v4952
    %v5209 = vpack.c.b16 %v4953, %v4953
    %v5210 = vpack.c.b16 %v4954, %v4954
    %v5211 = vpack.c.b16 %v4955, %v4955
    %v5212 = vpack.c.b16 %v4956, %v4956
    %v5213 = vpack.c.b16 %v4957, %v4957
    %v5214 = vpack.c.b16 %v4958, %v4958
    %v5215 = vpack.c.b16 %v4959, %v4959
    %v5216 = vpack.c.b16 %v4960, %v4960
    %v5217 = vpack.c.b16 %v4961, %v4961
    %v5218 = vpack.c.b16 %v4962, %v4962
    %v5219 = vpack.c.b16 %v4963, %v4963
    %v5220 = vpack.c.b16 %v4964, %v4964
    %vm5477 = vcmask 519168
    %5478 = vst.msk [vmem:[%s4] sm:$0xf] %vm5477, %v4965
    %5479 = vst.msk [vmem:[%s4 + $0x4] sm:$0xf] %vm5477, %v4966
    %5480 = vst.msk [vmem:[%s4 + $0x8] sm:$0xf] %vm5477, %v4967
    %5481 = vst.msk [vmem:[%s4 + $0xc] sm:$0xf] %vm5477, %v4968
    %5482 = vst.msk [vmem:[%s4 + $0x10] sm:$0xf] %vm5477, %v4969
    %5483 = vst.msk [vmem:[%s4 + $0x14] sm:$0xf] %vm5477, %v4970
    %5484 = vst.msk [vmem:[%s4 + $0x18] sm:$0xf] %vm5477, %v4971
    %5485 = vst.msk [vmem:[%s4 + $0x1c] sm:$0xf] %vm5477, %v4972
    %5486 = vst.msk [vmem:[%s4 + $0x20] sm:$0xf] %vm5477, %v4973
    %5487 = vst.msk [vmem:[%s4 + $0x24] sm:$0xf] %vm5477, %v4974
    %5488 = vst.msk [vmem:[%s4 + $0x28] sm:$0xf] %vm5477, %v4975
    %5489 = vst.msk [vmem:[%s4 + $0x2c] sm:$0xf] %vm5477, %v4976
    %5490 = vst.msk [vmem:[%s4 + $0x30] sm:$0xf] %vm5477, %v4977
    %5491 = vst.msk [vmem:[%s4 + $0x34] sm:$0xf] %vm5477, %v4978
    %5492 = vst.msk [vmem:[%s4 + $0x38] sm:$0xf] %vm5477, %v4979
    %5493 = vst.msk [vmem:[%s4 + $0x3c] sm:$0xf] %vm5477, %v4980
    %5494 = vst.msk [vmem:[%s4 + $0x40] sm:$0xf] %vm5477, %v4981
    %5495 = vst.msk [vmem:[%s4 + $0x44] sm:$0xf] %vm5477, %v4982
    %5496 = vst.msk [vmem:[%s4 + $0x48] sm:$0xf] %vm5477, %v4983
    %5497 = vst.msk [vmem:[%s4 + $0x4c] sm:$0xf] %vm5477, %v4984
    %5498 = vst.msk [vmem:[%s4 + $0x50] sm:$0xf] %vm5477, %v4985
    %5499 = vst.msk [vmem:[%s4 + $0x54] sm:$0xf] %vm5477, %v4986
    %5500 = vst.msk [vmem:[%s4 + $0x58] sm:$0xf] %vm5477, %v4987
    %5501 = vst.msk [vmem:[%s4 + $0x5c] sm:$0xf] %vm5477, %v4988
    %5502 = vst.msk [vmem:[%s4 + $0x60] sm:$0xf] %vm5477, %v4989
    %5503 = vst.msk [vmem:[%s4 + $0x64] sm:$0xf] %vm5477, %v4990
    %5504 = vst.msk [vmem:[%s4 + $0x68] sm:$0xf] %vm5477, %v4991
    %5505 = vst.msk [vmem:[%s4 + $0x6c] sm:$0xf] %vm5477, %v4992
    %5506 = vst.msk [vmem:[%s4 + $0x70] sm:$0xf] %vm5477, %v4993
    %5507 = vst.msk [vmem:[%s4 + $0x74] sm:$0xf] %vm5477, %v4994
    %5508 = vst.msk [vmem:[%s4 + $0x78] sm:$0xf] %vm5477, %v4995
    %5509 = vst.msk [vmem:[%s4 + $0x7c] sm:$0xf] %vm5477, %v4996
    %5510 = vst.msk [vmem:[%s4 + $0x80] sm:$0xf] %vm5477, %v4997
    %5511 = vst.msk [vmem:[%s4 + $0x84] sm:$0xf] %vm5477, %v4998
    %5512 = vst.msk [vmem:[%s4 + $0x88] sm:$0xf] %vm5477, %v4999
    %5513 = vst.msk [vmem:[%s4 + $0x8c] sm:$0xf] %vm5477, %v5000
    %5514 = vst.msk [vmem:[%s4 + $0x90] sm:$0xf] %vm5477, %v5001
    %5515 = vst.msk [vmem:[%s4 + $0x94] sm:$0xf] %vm5477, %v5002
    %5516 = vst.msk [vmem:[%s4 + $0x98] sm:$0xf] %vm5477, %v5003
    %5517 = vst.msk [vmem:[%s4 + $0x9c] sm:$0xf] %vm5477, %v5004
    %5518 = vst.msk [vmem:[%s4 + $0xa0] sm:$0xf] %vm5477, %v5005
    %5519 = vst.msk [vmem:[%s4 + $0xa4] sm:$0xf] %vm5477, %v5006
    %5520 = vst.msk [vmem:[%s4 + $0xa8] sm:$0xf] %vm5477, %v5007
    %5521 = vst.msk [vmem:[%s4 + $0xac] sm:$0xf] %vm5477, %v5008
    %5522 = vst.msk [vmem:[%s4 + $0xb0] sm:$0xf] %vm5477, %v5009
    %5523 = vst.msk [vmem:[%s4 + $0xb4] sm:$0xf] %vm5477, %v5010
    %5524 = vst.msk [vmem:[%s4 + $0xb8] sm:$0xf] %vm5477, %v5011
    %5525 = vst.msk [vmem:[%s4 + $0xbc] sm:$0xf] %vm5477, %v5012
    %5526 = vst.msk [vmem:[%s4 + $0xc0] sm:$0xf] %vm5477, %v5013
    %5527 = vst.msk [vmem:[%s4 + $0xc4] sm:$0xf] %vm5477, %v5014
    %5528 = vst.msk [vmem:[%s4 + $0xc8] sm:$0xf] %vm5477, %v5015
    %5529 = vst.msk [vmem:[%s4 + $0xcc] sm:$0xf] %vm5477, %v5016
    %5530 = vst.msk [vmem:[%s4 + $0xd0] sm:$0xf] %vm5477, %v5017
    %5531 = vst.msk [vmem:[%s4 + $0xd4] sm:$0xf] %vm5477, %v5018
    %5532 = vst.msk [vmem:[%s4 + $0xd8] sm:$0xf] %vm5477, %v5019
    %5533 = vst.msk [vmem:[%s4 + $0xdc] sm:$0xf] %vm5477, %v5020
    %5534 = vst.msk [vmem:[%s4 + $0xe0] sm:$0xf] %vm5477, %v5021
    %5535 = vst.msk [vmem:[%s4 + $0xe4] sm:$0xf] %vm5477, %v5022
    %5536 = vst.msk [vmem:[%s4 + $0xe8] sm:$0xf] %vm5477, %v5023
    %5537 = vst.msk [vmem:[%s4 + $0xec] sm:$0xf] %vm5477, %v5024
    %5538 = vst.msk [vmem:[%s4 + $0xf0] sm:$0xf] %vm5477, %v5025
    %5539 = vst.msk [vmem:[%s4 + $0xf4] sm:$0xf] %vm5477, %v5026
    %5540 = vst.msk [vmem:[%s4 + $0xf8] sm:$0xf] %vm5477, %v5027
    %5541 = vst.msk [vmem:[%s4 + $0xfc] sm:$0xf] %vm5477, %v5028
    %5542 = vst.msk [vmem:[%s4 + $0x100] sm:$0xf] %vm5477, %v5029
    %5543 = vst.msk [vmem:[%s4 + $0x104] sm:$0xf] %vm5477, %v5030
    %5544 = vst.msk [vmem:[%s4 + $0x108] sm:$0xf] %vm5477, %v5031
    %5545 = vst.msk [vmem:[%s4 + $0x10c] sm:$0xf] %vm5477, %v5032
    %5546 = vst.msk [vmem:[%s4 + $0x110] sm:$0xf] %vm5477, %v5033
    %5547 = vst.msk [vmem:[%s4 + $0x114] sm:$0xf] %vm5477, %v5034
    %5548 = vst.msk [vmem:[%s4 + $0x118] sm:$0xf] %vm5477, %v5035
    %5549 = vst.msk [vmem:[%s4 + $0x11c] sm:$0xf] %vm5477, %v5036
    %5550 = vst.msk [vmem:[%s4 + $0x120] sm:$0xf] %vm5477, %v5037
    %5551 = vst.msk [vmem:[%s4 + $0x124] sm:$0xf] %vm5477, %v5038
    %5552 = vst.msk [vmem:[%s4 + $0x128] sm:$0xf] %vm5477, %v5039
    %5553 = vst.msk [vmem:[%s4 + $0x12c] sm:$0xf] %vm5477, %v5040
    %5554 = vst.msk [vmem:[%s4 + $0x130] sm:$0xf] %vm5477, %v5041
    %5555 = vst.msk [vmem:[%s4 + $0x134] sm:$0xf] %vm5477, %v5042
    %5556 = vst.msk [vmem:[%s4 + $0x138] sm:$0xf] %vm5477, %v5043
    %5557 = vst.msk [vmem:[%s4 + $0x13c] sm:$0xf] %vm5477, %v5044
    %5558 = vst.msk [vmem:[%s4 + $0x140] sm:$0xf] %vm5477, %v5045
    %5559 = vst.msk [vmem:[%s4 + $0x144] sm:$0xf] %vm5477, %v5046
    %5560 = vst.msk [vmem:[%s4 + $0x148] sm:$0xf] %vm5477, %v5047
    %5561 = vst.msk [vmem:[%s4 + $0x14c] sm:$0xf] %vm5477, %v5048
    %5562 = vst.msk [vmem:[%s4 + $0x150] sm:$0xf] %vm5477, %v5049
    %5563 = vst.msk [vmem:[%s4 + $0x154] sm:$0xf] %vm5477, %v5050
    %5564 = vst.msk [vmem:[%s4 + $0x158] sm:$0xf] %vm5477, %v5051
    %5565 = vst.msk [vmem:[%s4 + $0x15c] sm:$0xf] %vm5477, %v5052
    %5566 = vst.msk [vmem:[%s4 + $0x160] sm:$0xf] %vm5477, %v5053
    %5567 = vst.msk [vmem:[%s4 + $0x164] sm:$0xf] %vm5477, %v5054
    %5568 = vst.msk [vmem:[%s4 + $0x168] sm:$0xf] %vm5477, %v5055
    %5569 = vst.msk [vmem:[%s4 + $0x16c] sm:$0xf] %vm5477, %v5056
    %5570 = vst.msk [vmem:[%s4 + $0x170] sm:$0xf] %vm5477, %v5057
    %5571 = vst.msk [vmem:[%s4 + $0x174] sm:$0xf] %vm5477, %v5058
    %5572 = vst.msk [vmem:[%s4 + $0x178] sm:$0xf] %vm5477, %v5059
    %5573 = vst.msk [vmem:[%s4 + $0x17c] sm:$0xf] %vm5477, %v5060
    %5574 = vst.msk [vmem:[%s4 + $0x180] sm:$0xf] %vm5477, %v5061
    %5575 = vst.msk [vmem:[%s4 + $0x184] sm:$0xf] %vm5477, %v5062
    %5576 = vst.msk [vmem:[%s4 + $0x188] sm:$0xf] %vm5477, %v5063
    %5577 = vst.msk [vmem:[%s4 + $0x18c] sm:$0xf] %vm5477, %v5064
    %5578 = vst.msk [vmem:[%s4 + $0x190] sm:$0xf] %vm5477, %v5065
    %5579 = vst.msk [vmem:[%s4 + $0x194] sm:$0xf] %vm5477, %v5066
    %5580 = vst.msk [vmem:[%s4 + $0x198] sm:$0xf] %vm5477, %v5067
    %5581 = vst.msk [vmem:[%s4 + $0x19c] sm:$0xf] %vm5477, %v5068
    %5582 = vst.msk [vmem:[%s4 + $0x1a0] sm:$0xf] %vm5477, %v5069
    %5583 = vst.msk [vmem:[%s4 + $0x1a4] sm:$0xf] %vm5477, %v5070
    %5584 = vst.msk [vmem:[%s4 + $0x1a8] sm:$0xf] %vm5477, %v5071
    %5585 = vst.msk [vmem:[%s4 + $0x1ac] sm:$0xf] %vm5477, %v5072
    %5586 = vst.msk [vmem:[%s4 + $0x1b0] sm:$0xf] %vm5477, %v5073
    %5587 = vst.msk [vmem:[%s4 + $0x1b4] sm:$0xf] %vm5477, %v5074
    %5588 = vst.msk [vmem:[%s4 + $0x1b8] sm:$0xf] %vm5477, %v5075
    %5589 = vst.msk [vmem:[%s4 + $0x1bc] sm:$0xf] %vm5477, %v5076
    %5590 = vst.msk [vmem:[%s4 + $0x1c0] sm:$0xf] %vm5477, %v5077
    %5591 = vst.msk [vmem:[%s4 + $0x1c4] sm:$0xf] %vm5477, %v5078
    %5592 = vst.msk [vmem:[%s4 + $0x1c8] sm:$0xf] %vm5477, %v5079
    %5593 = vst.msk [vmem:[%s4 + $0x1cc] sm:$0xf] %vm5477, %v5080
    %5594 = vst.msk [vmem:[%s4 + $0x1d0] sm:$0xf] %vm5477, %v5081
    %5595 = vst.msk [vmem:[%s4 + $0x1d4] sm:$0xf] %vm5477, %v5082
    %5596 = vst.msk [vmem:[%s4 + $0x1d8] sm:$0xf] %vm5477, %v5083
    %5597 = vst.msk [vmem:[%s4 + $0x1dc] sm:$0xf] %vm5477, %v5084
    %5598 = vst.msk [vmem:[%s4 + $0x1e0] sm:$0xf] %vm5477, %v5085
    %5599 = vst.msk [vmem:[%s4 + $0x1e4] sm:$0xf] %vm5477, %v5086
    %5600 = vst.msk [vmem:[%s4 + $0x1e8] sm:$0xf] %vm5477, %v5087
    %5601 = vst.msk [vmem:[%s4 + $0x1ec] sm:$0xf] %vm5477, %v5088
    %5602 = vst.msk [vmem:[%s4 + $0x1f0] sm:$0xf] %vm5477, %v5089
    %5603 = vst.msk [vmem:[%s4 + $0x1f4] sm:$0xf] %vm5477, %v5090
    %5604 = vst.msk [vmem:[%s4 + $0x1f8] sm:$0xf] %vm5477, %v5091
    %5605 = vst.msk [vmem:[%s4 + $0x1fc] sm:$0xf] %vm5477, %v5092
    %5606 = vst.msk [vmem:[%s4 + $0x200] sm:$0xf] %vm5477, %v5093
    %5607 = vst.msk [vmem:[%s4 + $0x204] sm:$0xf] %vm5477, %v5094
    %5608 = vst.msk [vmem:[%s4 + $0x208] sm:$0xf] %vm5477, %v5095
    %5609 = vst.msk [vmem:[%s4 + $0x20c] sm:$0xf] %vm5477, %v5096
    %5610 = vst.msk [vmem:[%s4 + $0x210] sm:$0xf] %vm5477, %v5097
    %5611 = vst.msk [vmem:[%s4 + $0x214] sm:$0xf] %vm5477, %v5098
    %5612 = vst.msk [vmem:[%s4 + $0x218] sm:$0xf] %vm5477, %v5099
    %5613 = vst.msk [vmem:[%s4 + $0x21c] sm:$0xf] %vm5477, %v5100
    %5614 = vst.msk [vmem:[%s4 + $0x220] sm:$0xf] %vm5477, %v5101
    %5615 = vst.msk [vmem:[%s4 + $0x224] sm:$0xf] %vm5477, %v5102
    %5616 = vst.msk [vmem:[%s4 + $0x228] sm:$0xf] %vm5477, %v5103
    %5617 = vst.msk [vmem:[%s4 + $0x22c] sm:$0xf] %vm5477, %v5104
    %5618 = vst.msk [vmem:[%s4 + $0x230] sm:$0xf] %vm5477, %v5105
    %5619 = vst.msk [vmem:[%s4 + $0x234] sm:$0xf] %vm5477, %v5106
    %5620 = vst.msk [vmem:[%s4 + $0x238] sm:$0xf] %vm5477, %v5107
    %5621 = vst.msk [vmem:[%s4 + $0x23c] sm:$0xf] %vm5477, %v5108
    %5622 = vst.msk [vmem:[%s4 + $0x240] sm:$0xf] %vm5477, %v5109
    %5623 = vst.msk [vmem:[%s4 + $0x244] sm:$0xf] %vm5477, %v5110
    %5624 = vst.msk [vmem:[%s4 + $0x248] sm:$0xf] %vm5477, %v5111
    %5625 = vst.msk [vmem:[%s4 + $0x24c] sm:$0xf] %vm5477, %v5112
    %5626 = vst.msk [vmem:[%s4 + $0x250] sm:$0xf] %vm5477, %v5113
    %5627 = vst.msk [vmem:[%s4 + $0x254] sm:$0xf] %vm5477, %v5114
    %5628 = vst.msk [vmem:[%s4 + $0x258] sm:$0xf] %vm5477, %v5115
    %5629 = vst.msk [vmem:[%s4 + $0x25c] sm:$0xf] %vm5477, %v5116
    %5630 = vst.msk [vmem:[%s4 + $0x260] sm:$0xf] %vm5477, %v5117
    %5631 = vst.msk [vmem:[%s4 + $0x264] sm:$0xf] %vm5477, %v5118
    %5632 = vst.msk [vmem:[%s4 + $0x268] sm:$0xf] %vm5477, %v5119
    %5633 = vst.msk [vmem:[%s4 + $0x26c] sm:$0xf] %vm5477, %v5120
    %5634 = vst.msk [vmem:[%s4 + $0x270] sm:$0xf] %vm5477, %v5121
    %5635 = vst.msk [vmem:[%s4 + $0x274] sm:$0xf] %vm5477, %v5122
    %5636 = vst.msk [vmem:[%s4 + $0x278] sm:$0xf] %vm5477, %v5123
    %5637 = vst.msk [vmem:[%s4 + $0x27c] sm:$0xf] %vm5477, %v5124
    %5638 = vst.msk [vmem:[%s4 + $0x280] sm:$0xf] %vm5477, %v5125
    %5639 = vst.msk [vmem:[%s4 + $0x284] sm:$0xf] %vm5477, %v5126
    %5640 = vst.msk [vmem:[%s4 + $0x288] sm:$0xf] %vm5477, %v5127
    %5641 = vst.msk [vmem:[%s4 + $0x28c] sm:$0xf] %vm5477, %v5128
    %5642 = vst.msk [vmem:[%s4 + $0x290] sm:$0xf] %vm5477, %v5129
    %5643 = vst.msk [vmem:[%s4 + $0x294] sm:$0xf] %vm5477, %v5130
    %5644 = vst.msk [vmem:[%s4 + $0x298] sm:$0xf] %vm5477, %v5131
    %5645 = vst.msk [vmem:[%s4 + $0x29c] sm:$0xf] %vm5477, %v5132
    %5646 = vst.msk [vmem:[%s4 + $0x2a0] sm:$0xf] %vm5477, %v5133
    %5647 = vst.msk [vmem:[%s4 + $0x2a4] sm:$0xf] %vm5477, %v5134
    %5648 = vst.msk [vmem:[%s4 + $0x2a8] sm:$0xf] %vm5477, %v5135
    %5649 = vst.msk [vmem:[%s4 + $0x2ac] sm:$0xf] %vm5477, %v5136
    %5650 = vst.msk [vmem:[%s4 + $0x2b0] sm:$0xf] %vm5477, %v5137
    %5651 = vst.msk [vmem:[%s4 + $0x2b4] sm:$0xf] %vm5477, %v5138
    %5652 = vst.msk [vmem:[%s4 + $0x2b8] sm:$0xf] %vm5477, %v5139
    %5653 = vst.msk [vmem:[%s4 + $0x2bc] sm:$0xf] %vm5477, %v5140
    %5654 = vst.msk [vmem:[%s4 + $0x2c0] sm:$0xf] %vm5477, %v5141
    %5655 = vst.msk [vmem:[%s4 + $0x2c4] sm:$0xf] %vm5477, %v5142
    %5656 = vst.msk [vmem:[%s4 + $0x2c8] sm:$0xf] %vm5477, %v5143
    %5657 = vst.msk [vmem:[%s4 + $0x2cc] sm:$0xf] %vm5477, %v5144
    %5658 = vst.msk [vmem:[%s4 + $0x2d0] sm:$0xf] %vm5477, %v5145
    %5659 = vst.msk [vmem:[%s4 + $0x2d4] sm:$0xf] %vm5477, %v5146
    %5660 = vst.msk [vmem:[%s4 + $0x2d8] sm:$0xf] %vm5477, %v5147
    %5661 = vst.msk [vmem:[%s4 + $0x2dc] sm:$0xf] %vm5477, %v5148
    %5662 = vst.msk [vmem:[%s4 + $0x2e0] sm:$0xf] %vm5477, %v5149
    %5663 = vst.msk [vmem:[%s4 + $0x2e4] sm:$0xf] %vm5477, %v5150
    %5664 = vst.msk [vmem:[%s4 + $0x2e8] sm:$0xf] %vm5477, %v5151
    %5665 = vst.msk [vmem:[%s4 + $0x2ec] sm:$0xf] %vm5477, %v5152
    %5666 = vst.msk [vmem:[%s4 + $0x2f0] sm:$0xf] %vm5477, %v5153
    %5667 = vst.msk [vmem:[%s4 + $0x2f4] sm:$0xf] %vm5477, %v5154
    %5668 = vst.msk [vmem:[%s4 + $0x2f8] sm:$0xf] %vm5477, %v5155
    %5669 = vst.msk [vmem:[%s4 + $0x2fc] sm:$0xf] %vm5477, %v5156
    %5670 = vst.msk [vmem:[%s4 + $0x300] sm:$0xf] %vm5477, %v5157
    %5671 = vst.msk [vmem:[%s4 + $0x304] sm:$0xf] %vm5477, %v5158
    %5672 = vst.msk [vmem:[%s4 + $0x308] sm:$0xf] %vm5477, %v5159
    %5673 = vst.msk [vmem:[%s4 + $0x30c] sm:$0xf] %vm5477, %v5160
    %5674 = vst.msk [vmem:[%s4 + $0x310] sm:$0xf] %vm5477, %v5161
    %5675 = vst.msk [vmem:[%s4 + $0x314] sm:$0xf] %vm5477, %v5162
    %5676 = vst.msk [vmem:[%s4 + $0x318] sm:$0xf] %vm5477, %v5163
    %5677 = vst.msk [vmem:[%s4 + $0x31c] sm:$0xf] %vm5477, %v5164
    %5678 = vst.msk [vmem:[%s4 + $0x320] sm:$0xf] %vm5477, %v5165
    %5679 = vst.msk [vmem:[%s4 + $0x324] sm:$0xf] %vm5477, %v5166
    %5680 = vst.msk [vmem:[%s4 + $0x328] sm:$0xf] %vm5477, %v5167
    %5681 = vst.msk [vmem:[%s4 + $0x32c] sm:$0xf] %vm5477, %v5168
    %5682 = vst.msk [vmem:[%s4 + $0x330] sm:$0xf] %vm5477, %v5169
    %5683 = vst.msk [vmem:[%s4 + $0x334] sm:$0xf] %vm5477, %v5170
    %5684 = vst.msk [vmem:[%s4 + $0x338] sm:$0xf] %vm5477, %v5171
    %5685 = vst.msk [vmem:[%s4 + $0x33c] sm:$0xf] %vm5477, %v5172
    %5686 = vst.msk [vmem:[%s4 + $0x340] sm:$0xf] %vm5477, %v5173
    %5687 = vst.msk [vmem:[%s4 + $0x344] sm:$0xf] %vm5477, %v5174
    %5688 = vst.msk [vmem:[%s4 + $0x348] sm:$0xf] %vm5477, %v5175
    %5689 = vst.msk [vmem:[%s4 + $0x34c] sm:$0xf] %vm5477, %v5176
    %5690 = vst.msk [vmem:[%s4 + $0x350] sm:$0xf] %vm5477, %v5177
    %5691 = vst.msk [vmem:[%s4 + $0x354] sm:$0xf] %vm5477, %v5178
    %5692 = vst.msk [vmem:[%s4 + $0x358] sm:$0xf] %vm5477, %v5179
    %5693 = vst.msk [vmem:[%s4 + $0x35c] sm:$0xf] %vm5477, %v5180
    %5694 = vst.msk [vmem:[%s4 + $0x360] sm:$0xf] %vm5477, %v5181
    %5695 = vst.msk [vmem:[%s4 + $0x364] sm:$0xf] %vm5477, %v5182
    %5696 = vst.msk [vmem:[%s4 + $0x368] sm:$0xf] %vm5477, %v5183
    %5697 = vst.msk [vmem:[%s4 + $0x36c] sm:$0xf] %vm5477, %v5184
    %5698 = vst.msk [vmem:[%s4 + $0x370] sm:$0xf] %vm5477, %v5185
    %5699 = vst.msk [vmem:[%s4 + $0x374] sm:$0xf] %vm5477, %v5186
    %5700 = vst.msk [vmem:[%s4 + $0x378] sm:$0xf] %vm5477, %v5187
    %5701 = vst.msk [vmem:[%s4 + $0x37c] sm:$0xf] %vm5477, %v5188
    %5702 = vst.msk [vmem:[%s4 + $0x380] sm:$0xf] %vm5477, %v5189
    %5703 = vst.msk [vmem:[%s4 + $0x384] sm:$0xf] %vm5477, %v5190
    %5704 = vst.msk [vmem:[%s4 + $0x388] sm:$0xf] %vm5477, %v5191
    %5705 = vst.msk [vmem:[%s4 + $0x38c] sm:$0xf] %vm5477, %v5192
    %5706 = vst.msk [vmem:[%s4 + $0x390] sm:$0xf] %vm5477, %v5193
    %5707 = vst.msk [vmem:[%s4 + $0x394] sm:$0xf] %vm5477, %v5194
    %5708 = vst.msk [vmem:[%s4 + $0x398] sm:$0xf] %vm5477, %v5195
    %5709 = vst.msk [vmem:[%s4 + $0x39c] sm:$0xf] %vm5477, %v5196
    %5710 = vst.msk [vmem:[%s4 + $0x3a0] sm:$0xf] %vm5477, %v5197
    %5711 = vst.msk [vmem:[%s4 + $0x3a4] sm:$0xf] %vm5477, %v5198
    %5712 = vst.msk [vmem:[%s4 + $0x3a8] sm:$0xf] %vm5477, %v5199
    %5713 = vst.msk [vmem:[%s4 + $0x3ac] sm:$0xf] %vm5477, %v5200
    %5714 = vst.msk [vmem:[%s4 + $0x3b0] sm:$0xf] %vm5477, %v5201
    %5715 = vst.msk [vmem:[%s4 + $0x3b4] sm:$0xf] %vm5477, %v5202
    %5716 = vst.msk [vmem:[%s4 + $0x3b8] sm:$0xf] %vm5477, %v5203
    %5717 = vst.msk [vmem:[%s4 + $0x3bc] sm:$0xf] %vm5477, %v5204
    %5718 = vst.msk [vmem:[%s4 + $0x3c0] sm:$0xf] %vm5477, %v5205
    %5719 = vst.msk [vmem:[%s4 + $0x3c4] sm:$0xf] %vm5477, %v5206
    %5720 = vst.msk [vmem:[%s4 + $0x3c8] sm:$0xf] %vm5477, %v5207
    %5721 = vst.msk [vmem:[%s4 + $0x3cc] sm:$0xf] %vm5477, %v5208
    %5722 = vst.msk [vmem:[%s4 + $0x3d0] sm:$0xf] %vm5477, %v5209
    %5723 = vst.msk [vmem:[%s4 + $0x3d4] sm:$0xf] %vm5477, %v5210
    %5724 = vst.msk [vmem:[%s4 + $0x3d8] sm:$0xf] %vm5477, %v5211
    %5725 = vst.msk [vmem:[%s4 + $0x3dc] sm:$0xf] %vm5477, %v5212
    %5726 = vst.msk [vmem:[%s4 + $0x3e0] sm:$0xf] %vm5477, %v5213
    %5727 = vst.msk [vmem:[%s4 + $0x3e4] sm:$0xf] %vm5477, %v5214
    %5728 = vst.msk [vmem:[%s4 + $0x3e8] sm:$0xf] %vm5477, %v5215
    %5729 = vst.msk [vmem:[%s4 + $0x3ec] sm:$0xf] %vm5477, %v5216
    %5730 = vst.msk [vmem:[%s4 + $0x3f0] sm:$0xf] %vm5477, %v5217
    %5731 = vst.msk [vmem:[%s4 + $0x3f4] sm:$0xf] %vm5477, %v5218
    %5732 = vst.msk [vmem:[%s4 + $0x3f8] sm:$0xf] %vm5477, %v5219
    %5733 = vst.msk [vmem:[%s4 + $0x3fc] sm:$0xf] %vm5477, %v5220
  $region25: #{tpu_custom_call.1} parent=0 // pred_fallthru
    _
  // Predicated region
  $region26: #{tpu_custom_call.1} parent=0 // pred_check
    _
  $region27: #{tpu_custom_call.1} parent=0 // pred_check_branch
    %5735 = sbr.rel (0) target = $region29
  $region28: #{tpu_custom_call.1} parent=0 // pred_region
    _
  $region29: #{tpu_custom_call.1} parent=0 // pred_fallthru
    _
  // Predicated region
  $region30: #{tpu_custom_call.1} parent=0 // pred_check
    _
  $region31: #{tpu_custom_call.1} parent=0 // pred_check_branch
    %5737 = sbr.rel (0) target = $region33
  $region32: #{tpu_custom_call.1} parent=0 // pred_region
    _
  $region33: #{tpu_custom_call.1} parent=0 // pred_fallthru
    _

</llo_original>
